<compile_context>
chip_gen: v7x
topology: tpu7x:2x2x1
jax: 0.10.0
libtpu: 0.0.40
codegen_flags: <defaults>
</compile_context>

<pallas_src>
import math
import jax
import jax.numpy as jnp
from jax.experimental import pallas as pl
from jax.experimental.pallas import tpu as pltpu

N_LATENT = 20
D_IN = 784
D_HID = 400

# Lane-padded sizes (multiples of 128).
D_IN_P = 896
D_HID_P = 512
N_PAD = 128


def _round_up(x, m):
    return (x + m - 1) // m * m


def _pad_to(a, shape):
    return jnp.pad(a, [(0, t - s) for s, t in zip(a.shape, shape)])


def _vae_kernel(x_ref, eps_ref,
                w1_ref, b1_ref,
                wh_ref, bh_ref,
                w3_ref, b3_ref,
                w4_ref, b4_ref,
                recon_ref, mu_ref, logvar_ref, z_ref):
    # encode: h1 = relu(x @ W1 + b1)   (bf16 matmul inputs, f32 accumulate)
    h1 = jnp.dot(x_ref[...], w1_ref[...],
                 preferred_element_type=jnp.float32) + b1_ref[...]
    h1 = jnp.maximum(h1, 0.0)

    # fused mu/logvar heads: one (bm,512)@(512,256) matmul, split at lane 128
    heads = jnp.dot(h1.astype(jnp.bfloat16), wh_ref[...],
                    preferred_element_type=jnp.float32) + bh_ref[...]
    mu = heads[:, :N_PAD]
    logvar = heads[:, N_PAD:]

    # reparameterize: z = mu + eps * exp(0.5 * logvar)   (f32 on VPU/EUP)
    std = jnp.exp(0.5 * logvar)
    z = mu + eps_ref[...] * std

    # Emit the small (latent-sized) outputs early so their stores overlap the
    # decoder matmuls under the LLO scheduler.
    mu_ref[...] = mu
    logvar_ref[...] = logvar
    z_ref[...] = z

    # decode: h3 = relu(z @ W3 + b3); recon = sigmoid(h3 @ W4 + b4)
    h3 = jnp.dot(z.astype(jnp.bfloat16), w3_ref[...],
                 preferred_element_type=jnp.float32) + b3_ref[...]
    h3 = jnp.maximum(h3, 0.0)
    logits = jnp.dot(h3.astype(jnp.bfloat16), w4_ref[...],
                     preferred_element_type=jnp.float32) + b4_ref[...]
    recon_ref[...] = jax.nn.sigmoid(logits)


def vae_forward(x_nchw, eps, params, *, bm=256):
    """Fused VAE forward pass. Returns (recon, mu, logvar, z) at original sizes."""
    B = x_nchw.shape[0]
    x = x_nchw.reshape(B, D_IN).astype(jnp.float32)
    (w1, b1, w21, b21, w22, b22, w3, b3, w4, b4) = params

    # Batch tile: multiple of 8 sublanes, capped at bm; pad B to a whole tile.
    bm = min(bm, _round_up(B, 8))
    b_pad = _round_up(B, bm)

    # Pad + cast inputs (zero-padding keeps the math exact).
    x_p = _pad_to(x, (b_pad, D_IN_P)).astype(jnp.bfloat16)
    eps_p = _pad_to(eps.astype(jnp.float32), (b_pad, N_PAD))

    # Pad + cast weights (bf16); biases stay f32, shape (1, out_pad).
    w1_p = _pad_to(w1, (D_IN_P, D_HID_P)).astype(jnp.bfloat16)
    b1_p = _pad_to(b1, (1, D_HID_P))
    wh_p = jnp.concatenate([_pad_to(w21, (D_HID_P, N_PAD)),
                            _pad_to(w22, (D_HID_P, N_PAD))],
                           axis=1).astype(jnp.bfloat16)
    bh_p = jnp.concatenate([_pad_to(b21, (1, N_PAD)),
                            _pad_to(b22, (1, N_PAD))], axis=1)
    w3_p = _pad_to(w3, (N_PAD, D_HID_P)).astype(jnp.bfloat16)
    b3_p = _pad_to(b3, (1, D_HID_P))
    w4_p = _pad_to(w4, (D_HID_P, D_IN_P)).astype(jnp.bfloat16)
    b4_p = _pad_to(b4, (1, D_IN_P))

    grid = (b_pad // bm,)

    def act_spec(lanes):
        return pl.BlockSpec((bm, lanes), lambda i: (i, 0))

    def const_spec(shape):
        return pl.BlockSpec(shape, lambda i: (0, 0))

    in_specs = [
        act_spec(D_IN_P),                       # x
        act_spec(N_PAD),                        # eps
        const_spec((D_IN_P, D_HID_P)),          # w1
        const_spec((1, D_HID_P)),               # b1
        const_spec((D_HID_P, 2 * N_PAD)),       # fused head weight
        const_spec((1, 2 * N_PAD)),             # fused head bias
        const_spec((N_PAD, D_HID_P)),           # w3
        const_spec((1, D_HID_P)),               # b3
        const_spec((D_HID_P, D_IN_P)),          # w4
        const_spec((1, D_IN_P)),                # b4
    ]
    out_specs = (act_spec(D_IN_P), act_spec(N_PAD),
                 act_spec(N_PAD), act_spec(N_PAD))
    out_shape = (
        jax.ShapeDtypeStruct((b_pad, D_IN_P), jnp.float32),   # recon
        jax.ShapeDtypeStruct((b_pad, N_PAD), jnp.float32),    # mu
        jax.ShapeDtypeStruct((b_pad, N_PAD), jnp.float32),    # logvar
        jax.ShapeDtypeStruct((b_pad, N_PAD), jnp.float32),    # z
    )

    flops = 2 * b_pad * (D_IN_P * D_HID_P + D_HID_P * 2 * N_PAD
                         + N_PAD * D_HID_P + D_HID_P * D_IN_P)
    transcendentals = b_pad * (N_PAD + D_IN_P)          # exp + sigmoid
    bytes_accessed = (
        x_p.size * 2 + eps_p.size * 4
        + 2 * (w1_p.size + wh_p.size + w3_p.size + w4_p.size)
        + 4 * (b1_p.size + bh_p.size + b3_p.size + b4_p.size)
        + 4 * b_pad * (D_IN_P + 3 * N_PAD))

    recon, mu, logvar, z = pl.pallas_call(
        _vae_kernel,
        out_shape=out_shape,
        grid=grid,
        in_specs=in_specs,
        out_specs=out_specs,
        compiler_params=pltpu.CompilerParams(
            dimension_semantics=("parallel",)),
        cost_estimate=pl.CostEstimate(
            flops=flops,
            transcendentals=transcendentals,
            bytes_accessed=bytes_accessed),
    )(x_p, eps_p, w1_p, b1_p, wh_p, bh_p, w3_p, b3_p, w4_p, b4_p)

    return (recon[:B, :D_IN], mu[:B, :N_LATENT],
            logvar[:B, :N_LATENT], z[:B, :N_LATENT])


def init_params(key):
    """torch.nn.Linear-style init (uniform +-1/sqrt(fan_in)); weights stored
    transposed as (in_features, out_features), biases as (1, out_features)."""
    def linear(key, fan_in, fan_out):
        kw, kb = jax.random.split(key)
        bound = 1.0 / math.sqrt(fan_in)
        w = jax.random.uniform(kw, (fan_in, fan_out), jnp.float32, -bound, bound)
        b = jax.random.uniform(kb, (1, fan_out), jnp.float32, -bound, bound)
        return w, b

    keys = jax.random.split(key, 5)
    w1, b1 = linear(keys[0], D_IN, D_HID)        # fc1: 784 -> 400
    w21, b21 = linear(keys[1], D_HID, N_LATENT)  # fc21: 400 -> N
    w22, b22 = linear(keys[2], D_HID, N_LATENT)  # fc22: 400 -> N
    w3, b3 = linear(keys[3], N_LATENT, D_HID)    # fc3: N -> 400
    w4, b4 = linear(keys[4], D_HID, D_IN)        # fc4: 400 -> 784
    return (w1, b1, w21, b21, w22, b22, w3, b3, w4, b4)


def _reference_forward_f32(x_nchw, eps, params):
    """Plain-JAX f32 reference (matches the PyTorch module)."""
    (w1, b1, w21, b21, w22, b22, w3, b3, w4, b4) = params
    x = x_nchw.reshape(x_nchw.shape[0], D_IN).astype(jnp.float32)
    h1 = jax.nn.relu(x @ w1 + b1)
    mu = h1 @ w21 + b21
    logvar = h1 @ w22 + b22
    z = mu + eps * jnp.exp(0.5 * logvar)
    h3 = jax.nn.relu(z @ w3 + b3)
    recon = jax.nn.sigmoid(h3 @ w4 + b4)
    return recon, mu, logvar, z


def _reference_forward_bf16(x_nchw, eps, params):
    """Reference mirroring the kernel's bf16-matmul / f32-accumulate scheme."""
    (w1, b1, w21, b21, w22, b22, w3, b3, w4, b4) = params

    def mm(a, w):
        return jnp.dot(a.astype(jnp.bfloat16), w.astype(jnp.bfloat16),
                       preferred_element_type=jnp.float32)

    x = x_nchw.reshape(x_nchw.shape[0], D_IN)
    h1 = jax.nn.relu(mm(x, w1) + b1)
    mu = mm(h1, w21) + b21
    logvar = mm(h1, w22) + b22
    z = mu + eps * jnp.exp(0.5 * logvar)
    h3 = jax.nn.relu(mm(z, w3) + b3)
    recon = jax.nn.sigmoid(mm(h3, w4) + b4)
    return recon, mu, logvar, z


if __name__ == "__main__":
    key = jax.random.PRNGKey(0)
    k_param, k_x, k_eps = jax.random.split(key, 3)

    B = 2
    x = jax.random.uniform(k_x, (B, 1, 28, 28), jnp.float32)   # NCHW, MNIST-like
    eps = jax.random.normal(k_eps, (B, N_LATENT), jnp.float32)
    params = init_params(k_param)

    recon, mu, logvar, z = jax.block_until_ready(vae_forward(x, eps, params))

    assert recon.shape == (B, D_IN)
    assert mu.shape == (B, N_LATENT) and logvar.shape == (B, N_LATENT)
    assert z.shape == (B, N_LATENT)

    # Tight check against a reference using the same bf16 matmul precision.
    br, bm_, blv, bz = _reference_forward_bf16(x, eps, params)
    assert jnp.allclose(recon, br, atol=2e-3, rtol=2e-3)
    assert jnp.allclose(mu, bm_, atol=2e-3, rtol=2e-3)
    assert jnp.allclose(logvar, blv, atol=2e-3, rtol=2e-3)
    assert jnp.allclose(z, bz, atol=2e-3, rtol=2e-3)

    # Looser check against the exact f32 reference (bf16 weight quantization).
    fr, fm, flv, fz = _reference_forward_f32(x, eps, params)
    assert jnp.allclose(recon, fr, atol=1e-1)
    assert jnp.allclose(mu, fm, atol=1e-1)
    assert jnp.allclose(logvar, flv, atol=1e-1)
    assert jnp.allclose(z, fz, atol=1e-1)

    print("KERNEL_OK")
</pallas_src>

<mosaic_0001>
module attributes {stable_mosaic.version = 11 : i64} {
  func.func @_vae_kernel(%arg0: i32, %arg1: memref<8x896xbf16, #tpu.memory_space<vmem>>, %arg2: memref<8x128xf32, #tpu.memory_space<vmem>>, %arg3: memref<896x512xbf16, #tpu.memory_space<vmem>>, %arg4: memref<1x512xf32, #tpu.memory_space<vmem>>, %arg5: memref<512x256xbf16, #tpu.memory_space<vmem>>, %arg6: memref<1x256xf32, #tpu.memory_space<vmem>>, %arg7: memref<128x512xbf16, #tpu.memory_space<vmem>>, %arg8: memref<1x512xf32, #tpu.memory_space<vmem>>, %arg9: memref<512x896xbf16, #tpu.memory_space<vmem>>, %arg10: memref<1x896xf32, #tpu.memory_space<vmem>>, %arg11: memref<8x896xf32, #tpu.memory_space<vmem>>, %arg12: memref<8x128xf32, #tpu.memory_space<vmem>>, %arg13: memref<8x128xf32, #tpu.memory_space<vmem>>, %arg14: memref<8x128xf32, #tpu.memory_space<vmem>>) attributes {dimension_semantics = [#tpu.dimension_semantics<parallel>], iteration_bounds = array<i64: 1>, scalar_prefetch = 0 : i64, scratch_operands = 0 : i64, tpu.core_type = #tpu.core_type<tc>, window_params = [{transform_indices = @transform_0, window_bounds = array<i64: 8, 896>}, {transform_indices = @transform_1, window_bounds = array<i64: 8, 128>}, {pipeline_mode = #tpu.pipeline_mode<synchronous>, transform_indices = @transform_2, window_bounds = array<i64: 896, 512>}, {pipeline_mode = #tpu.pipeline_mode<synchronous>, transform_indices = @transform_3, window_bounds = array<i64: 1, 512>}, {pipeline_mode = #tpu.pipeline_mode<synchronous>, transform_indices = @transform_4, window_bounds = array<i64: 512, 256>}, {pipeline_mode = #tpu.pipeline_mode<synchronous>, transform_indices = @transform_5, window_bounds = array<i64: 1, 256>}, {pipeline_mode = #tpu.pipeline_mode<synchronous>, transform_indices = @transform_6, window_bounds = array<i64: 128, 512>}, {pipeline_mode = #tpu.pipeline_mode<synchronous>, transform_indices = @transform_7, window_bounds = array<i64: 1, 512>}, {pipeline_mode = #tpu.pipeline_mode<synchronous>, transform_indices = @transform_8, window_bounds = array<i64: 512, 896>}, {pipeline_mode = #tpu.pipeline_mode<synchronous>, transform_indices = @transform_9, window_bounds = array<i64: 1, 896>}, {transform_indices = @transform_10, window_bounds = array<i64: 8, 896>}, {transform_indices = @transform_11, window_bounds = array<i64: 8, 128>}, {transform_indices = @transform_12, window_bounds = array<i64: 8, 128>}, {transform_indices = @transform_13, window_bounds = array<i64: 8, 128>}]} {
    %c0 = arith.constant 0 : index
    %c0_0 = arith.constant 0 : index
    %0 = vector.load %arg1[%c0, %c0_0] : memref<8x896xbf16, #tpu.memory_space<vmem>>, vector<8x896xbf16>
    %c0_1 = arith.constant 0 : index
    %c0_2 = arith.constant 0 : index
    %1 = vector.load %arg3[%c0_1, %c0_2] : memref<896x512xbf16, #tpu.memory_space<vmem>>, vector<896x512xbf16>
    %cst = arith.constant dense<0.000000e+00> : vector<8x512xf32>
    %2 = tpu.matmul %0, %1, %cst {dimension_numbers = #tpu.dot_dimension_numbers<[1], [0], [0], [1], [0, 0, 1, 1], [], []>} : vector<8x896xbf16>, vector<896x512xbf16>, vector<8x512xf32> -> vector<8x512xf32>
    %c0_3 = arith.constant 0 : index
    %c0_4 = arith.constant 0 : index
    %3 = vector.load %arg4[%c0_3, %c0_4] : memref<1x512xf32, #tpu.memory_space<vmem>>, vector<1x512xf32>
    %4 = vector.broadcast %3 : vector<1x512xf32> to vector<8x512xf32>
    %5 = arith.addf %2, %4 : vector<8x512xf32>
    %cst_5 = arith.constant 0.000000e+00 : f32
    %6 = vector.broadcast %cst_5 : f32 to vector<8x512xf32>
    %7 = arith.maximumf %5, %6 : vector<8x512xf32>
    %8 = arith.truncf %7 : vector<8x512xf32> to vector<8x512xbf16>
    %c0_6 = arith.constant 0 : index
    %c0_7 = arith.constant 0 : index
    %9 = vector.load %arg5[%c0_6, %c0_7] : memref<512x256xbf16, #tpu.memory_space<vmem>>, vector<512x256xbf16>
    %cst_8 = arith.constant dense<0.000000e+00> : vector<8x256xf32>
    %10 = tpu.matmul %8, %9, %cst_8 {dimension_numbers = #tpu.dot_dimension_numbers<[1], [0], [0], [1], [0, 0, 1, 1], [], []>} : vector<8x512xbf16>, vector<512x256xbf16>, vector<8x256xf32> -> vector<8x256xf32>
    %c0_9 = arith.constant 0 : index
    %c0_10 = arith.constant 0 : index
    %11 = vector.load %arg6[%c0_9, %c0_10] : memref<1x256xf32, #tpu.memory_space<vmem>>, vector<1x256xf32>
    %12 = vector.broadcast %11 : vector<1x256xf32> to vector<8x256xf32>
    %13 = arith.addf %10, %12 : vector<8x256xf32>
    %14 = vector.extract_strided_slice %13 {offsets = [0, 0], sizes = [8, 128], strides = [1, 1]} : vector<8x256xf32> to vector<8x128xf32>
    %15 = vector.extract_strided_slice %13 {offsets = [0, 128], sizes = [8, 128], strides = [1, 1]} : vector<8x256xf32> to vector<8x128xf32>
    %cst_11 = arith.constant 5.000000e-01 : f32
    %16 = vector.broadcast %cst_11 : f32 to vector<8x128xf32>
    %17 = arith.mulf %16, %15 : vector<8x128xf32>
    %18 = math.exp %17 : vector<8x128xf32>
    %c0_12 = arith.constant 0 : index
    %c0_13 = arith.constant 0 : index
    %19 = vector.load %arg2[%c0_12, %c0_13] : memref<8x128xf32, #tpu.memory_space<vmem>>, vector<8x128xf32>
    %20 = arith.mulf %19, %18 : vector<8x128xf32>
    %21 = arith.addf %14, %20 : vector<8x128xf32>
    %c0_14 = arith.constant 0 : index
    %c0_15 = arith.constant 0 : index
    %22 = vector.load %arg12[%c0_14, %c0_15] : memref<8x128xf32, #tpu.memory_space<vmem>>, vector<8x128xf32>
    tpu.vector_store %arg12[%c0_14, %c0_15], %14 {strides = array<i32>} : memref<8x128xf32, #tpu.memory_space<vmem>>, vector<8x128xf32>,
    %c0_16 = arith.constant 0 : index
    %c0_17 = arith.constant 0 : index
    %23 = vector.load %arg13[%c0_16, %c0_17] : memref<8x128xf32, #tpu.memory_space<vmem>>, vector<8x128xf32>
    tpu.vector_store %arg13[%c0_16, %c0_17], %15 {strides = array<i32>} : memref<8x128xf32, #tpu.memory_space<vmem>>, vector<8x128xf32>,
    %c0_18 = arith.constant 0 : index
    %c0_19 = arith.constant 0 : index
    %24 = vector.load %arg14[%c0_18, %c0_19] : memref<8x128xf32, #tpu.memory_space<vmem>>, vector<8x128xf32>
    tpu.vector_store %arg14[%c0_18, %c0_19], %21 {strides = array<i32>} : memref<8x128xf32, #tpu.memory_space<vmem>>, vector<8x128xf32>,
    %25 = arith.truncf %21 : vector<8x128xf32> to vector<8x128xbf16>
    %c0_20 = arith.constant 0 : index
    %c0_21 = arith.constant 0 : index
    %26 = vector.load %arg7[%c0_20, %c0_21] : memref<128x512xbf16, #tpu.memory_space<vmem>>, vector<128x512xbf16>
    %cst_22 = arith.constant dense<0.000000e+00> : vector<8x512xf32>
    %27 = tpu.matmul %25, %26, %cst_22 {dimension_numbers = #tpu.dot_dimension_numbers<[1], [0], [0], [1], [0, 0, 1, 1], [], []>} : vector<8x128xbf16>, vector<128x512xbf16>, vector<8x512xf32> -> vector<8x512xf32>
    %c0_23 = arith.constant 0 : index
    %c0_24 = arith.constant 0 : index
    %28 = vector.load %arg8[%c0_23, %c0_24] : memref<1x512xf32, #tpu.memory_space<vmem>>, vector<1x512xf32>
    %29 = vector.broadcast %28 : vector<1x512xf32> to vector<8x512xf32>
    %30 = arith.addf %27, %29 : vector<8x512xf32>
    %cst_25 = arith.constant 0.000000e+00 : f32
    %31 = vector.broadcast %cst_25 : f32 to vector<8x512xf32>
    %32 = arith.maximumf %30, %31 : vector<8x512xf32>
    %33 = arith.truncf %32 : vector<8x512xf32> to vector<8x512xbf16>
    %c0_26 = arith.constant 0 : index
    %c0_27 = arith.constant 0 : index
    %34 = vector.load %arg9[%c0_26, %c0_27] : memref<512x896xbf16, #tpu.memory_space<vmem>>, vector<512x896xbf16>
    %cst_28 = arith.constant dense<0.000000e+00> : vector<8x896xf32>
    %35 = tpu.matmul %33, %34, %cst_28 {dimension_numbers = #tpu.dot_dimension_numbers<[1], [0], [0], [1], [0, 0, 1, 1], [], []>} : vector<8x512xbf16>, vector<512x896xbf16>, vector<8x896xf32> -> vector<8x896xf32>
    %c0_29 = arith.constant 0 : index
    %c0_30 = arith.constant 0 : index
    %36 = vector.load %arg10[%c0_29, %c0_30] : memref<1x896xf32, #tpu.memory_space<vmem>>, vector<1x896xf32>
    %37 = vector.broadcast %36 : vector<1x896xf32> to vector<8x896xf32>
    %38 = arith.addf %35, %37 : vector<8x896xf32>
    %39 = arith.negf %38 : vector<8x896xf32>
    %40 = math.exp %39 : vector<8x896xf32>
    %cst_31 = arith.constant 1.000000e+00 : f32
    %41 = vector.broadcast %cst_31 : f32 to vector<8x896xf32>
    %42 = arith.addf %41, %40 : vector<8x896xf32>
    %43 = arith.divf %41, %42 : vector<8x896xf32>
    %c0_32 = arith.constant 0 : index
    %c0_33 = arith.constant 0 : index
    %44 = vector.load %arg11[%c0_32, %c0_33] : memref<8x896xf32, #tpu.memory_space<vmem>>, vector<8x896xf32>
    tpu.vector_store %arg11[%c0_32, %c0_33], %43 {strides = array<i32>} : memref<8x896xf32, #tpu.memory_space<vmem>>, vector<8x896xf32>,
    return
  }
  func.func @transform_0(%arg0: i32) -> (i32, i32) {
    %c0_i32 = arith.constant 0 : i32
    %c0_i32_0 = arith.constant 0 : i32
    return %arg0, %c0_i32 : i32, i32
  }
  func.func @transform_1(%arg0: i32) -> (i32, i32) {
    %c0_i32 = arith.constant 0 : i32
    %c0_i32_0 = arith.constant 0 : i32
    return %arg0, %c0_i32 : i32, i32
  }
  func.func @transform_2(%arg0: i32) -> (i32, i32) {
    %c0_i32 = arith.constant 0 : i32
    %c0_i32_0 = arith.constant 0 : i32
    %c0_i32_1 = arith.constant 0 : i32
    return %c0_i32, %c0_i32_0 : i32, i32
  }
  func.func @transform_3(%arg0: i32) -> (i32, i32) {
    %c0_i32 = arith.constant 0 : i32
    %c0_i32_0 = arith.constant 0 : i32
    %c0_i32_1 = arith.constant 0 : i32
    return %c0_i32, %c0_i32_0 : i32, i32
  }
  func.func @transform_4(%arg0: i32) -> (i32, i32) {
    %c0_i32 = arith.constant 0 : i32
    %c0_i32_0 = arith.constant 0 : i32
    %c0_i32_1 = arith.constant 0 : i32
    return %c0_i32, %c0_i32_0 : i32, i32
  }
  func.func @transform_5(%arg0: i32) -> (i32, i32) {
    %c0_i32 = arith.constant 0 : i32
    %c0_i32_0 = arith.constant 0 : i32
    %c0_i32_1 = arith.constant 0 : i32
    return %c0_i32, %c0_i32_0 : i32, i32
  }
  func.func @transform_6(%arg0: i32) -> (i32, i32) {
    %c0_i32 = arith.constant 0 : i32
    %c0_i32_0 = arith.constant 0 : i32
    %c0_i32_1 = arith.constant 0 : i32
    return %c0_i32, %c0_i32_0 : i32, i32
  }
  func.func @transform_7(%arg0: i32) -> (i32, i32) {
    %c0_i32 = arith.constant 0 : i32
    %c0_i32_0 = arith.constant 0 : i32
    %c0_i32_1 = arith.constant 0 : i32
    return %c0_i32, %c0_i32_0 : i32, i32
  }
  func.func @transform_8(%arg0: i32) -> (i32, i32) {
    %c0_i32 = arith.constant 0 : i32
    %c0_i32_0 = arith.constant 0 : i32
    %c0_i32_1 = arith.constant 0 : i32
    return %c0_i32, %c0_i32_0 : i32, i32
  }
  func.func @transform_9(%arg0: i32) -> (i32, i32) {
    %c0_i32 = arith.constant 0 : i32
    %c0_i32_0 = arith.constant 0 : i32
    %c0_i32_1 = arith.constant 0 : i32
    return %c0_i32, %c0_i32_0 : i32, i32
  }
  func.func @transform_10(%arg0: i32) -> (i32, i32) {
    %c0_i32 = arith.constant 0 : i32
    %c0_i32_0 = arith.constant 0 : i32
    return %arg0, %c0_i32 : i32, i32
  }
  func.func @transform_11(%arg0: i32) -> (i32, i32) {
    %c0_i32 = arith.constant 0 : i32
    %c0_i32_0 = arith.constant 0 : i32
    return %arg0, %c0_i32 : i32, i32
  }
  func.func @transform_12(%arg0: i32) -> (i32, i32) {
    %c0_i32 = arith.constant 0 : i32
    %c0_i32_0 = arith.constant 0 : i32
    return %arg0, %c0_i32 : i32, i32
  }
  func.func @transform_13(%arg0: i32) -> (i32, i32) {
    %c0_i32 = arith.constant 0 : i32
    %c0_i32_0 = arith.constant 0 : i32
    return %arg0, %c0_i32 : i32, i32
  }
}

</mosaic_0001>

<llo_original>
// kernel: tpu_custom_call.1
$region0: #{tpu_custom_call.1}
  #allocation0 [shape = 'u32[]', space=smem, size = 0x4, offset = 0x4, fixed_abs, tag = 'smem constant byte address 0x4 - core index']
  #allocation1 [shape = 'u32[144,128]{1,0:T(1,128)}', space=vmem, size = 0x12000, scoped, tag = 'internal scratch']
  %s0 = inlined_call_operand.hbm [shape: bf16[8,896], index: 0, kind: input, shape index: {}]
  %s1 = inlined_call_operand.hbm [shape: f32[8,128], index: 1, kind: input, shape index: {}]
  %s2 = inlined_call_operand.hbm [shape: bf16[896,512], index: 2, kind: input, shape index: {}]
  %s3 = inlined_call_operand.vmem [shape: f32[1,512], index: 3, kind: input, shape index: {}]
  %s4 = inlined_call_operand.hbm [shape: bf16[512,256], index: 4, kind: input, shape index: {}]
  %s5 = inlined_call_operand.vmem [shape: f32[1,256], index: 5, kind: input, shape index: {}]
  %s6 = inlined_call_operand.hbm [shape: bf16[128,512], index: 6, kind: input, shape index: {}]
  %s7 = inlined_call_operand.vmem [shape: f32[1,512], index: 7, kind: input, shape index: {}]
  %s8 = inlined_call_operand.hbm [shape: bf16[512,896], index: 8, kind: input, shape index: {}]
  %s9 = inlined_call_operand.vmem [shape: f32[1,896], index: 9, kind: input, shape index: {}]
  %s10 = inlined_call_operand.hbm [shape: f32[8,896], index: 10, kind: output, shape index: {0}]
  %s11 = inlined_call_operand.hbm [shape: f32[8,128], index: 11, kind: output, shape index: {1}]
  %s12 = inlined_call_operand.hbm [shape: f32[8,128], index: 12, kind: output, shape index: {2}]
  %s13 = inlined_call_operand.hbm [shape: f32[8,128], index: 13, kind: output, shape index: {3}]
  %14 = xla_tuple %s10, %s11, %s12, %s13
  %s15 = sld [smem:[#allocation0]]
  $region98: #{tpu_custom_call.1} parent=0
    _
  %s17 = ssub.s32 1, %s15
  %s18 = scalar_select 0, %s17, %s15
  $region1: #{tpu_custom_call.1} parent=0
    #allocation2 [shape = 'u8[14336]{0}', space=vmem, size = 0x3800, scoped, tag = 'input window, operand 0, single buffered']
    #allocation3 [shape = 's32[1]{0}', space=sflag, size = 0x4, scoped, tag = 'scoped memory for tpu_custom_call.1']
    #allocation4 [shape = 's32[1]{0}', space=sflag, size = 0x4, scoped, tag = 'scoped memory for tpu_custom_call.1']
    #allocation5 [shape = 'u8[4096]{0}', space=vmem, size = 0x1000, scoped, tag = 'input window, operand 1, single buffered']
    #allocation6 [shape = 's32[1]{0}', space=sflag, size = 0x4, scoped, tag = 'scoped memory for tpu_custom_call.1']
    #allocation7 [shape = 'u8[917504]{0}', space=vmem, size = 0xe0000, scoped, tag = 'input window, operand 2, single buffered']
    #allocation8 [shape = 'u8[262144]{0}', space=vmem, size = 0x40000, scoped, tag = 'input window, operand 4, single buffered']
    #allocation9 [shape = 's32[1]{0}', space=sflag, size = 0x4, scoped, tag = 'scoped memory for tpu_custom_call.1']
    #allocation10 [shape = 'u8[131072]{0}', space=vmem, size = 0x20000, scoped, tag = 'input window, operand 6, single buffered']
    #allocation11 [shape = 'u8[917504]{0}', space=vmem, size = 0xe0000, scoped, tag = 'input window, operand 8, single buffered']
    #allocation12 [shape = 's32[1]{0}', space=sflag, size = 0x4, scoped, tag = 'scoped memory for tpu_custom_call.1']
    #allocation13 [shape = 'u8[28672]{0}', space=vmem, size = 0x7000, scoped, tag = 'output window, operand 0, single buffered']
    #allocation14 [shape = 'u8[4096]{0}', space=vmem, size = 0x1000, scoped, tag = 'output window, operand 1, single buffered']
    #allocation15 [shape = 's32[1]{0}', space=sflag, size = 0x4, scoped, tag = 'scoped memory for tpu_custom_call.1']
    #allocation16 [shape = 'u8[4096]{0}', space=vmem, size = 0x1000, scoped, tag = 'output window, operand 2, single buffered']
    #allocation17 [shape = 'u8[4096]{0}', space=vmem, size = 0x1000, scoped, tag = 'output window, operand 3, single buffered']
    #allocation18 [shape = 's32[1]{0}', space=sflag, size = 0x4, scoped, tag = 'scoped memory for tpu_custom_call.1']
    %19 = vsyncpa [#allocation3], 0
    %20 = vsyncpa [#allocation6], 0
    %21 = vsyncpa [#allocation9], 0
    %22 = vsyncpa [#allocation12], 0
    %23 = vsyncpa [#allocation4], 0
    %24 = vsyncpa [#allocation15], 0
    %25 = vsyncpa [#allocation18], 0
    // Predicated region
    $region2: #{tpu_custom_call.1} parent=1 // pred_check
      _
    $region3: #{tpu_custom_call.1} parent=1 // pred_check_branch
      %27 = sbr.rel (0) target = $region5
    $region4: #{tpu_custom_call.1} parent=1 // pred_region
      %s29 = ssub.s32 448, 448
      %30 = vsyncadd [#allocation3], %s29
      %s32 = sshll.u32 [#allocation2], 4
      %s33 = int_to_ptr.vmem [resolvable:$true] %s32
      %35 = dma.hbm_to_vmem [thread:$0]  %s0, 448, %s33, [#allocation3]
    $region5: #{tpu_custom_call.1} parent=1 // pred_fallthru
      _
    // Predicated region
    $region6: #{tpu_custom_call.1} parent=1 // pred_check
      _
    $region7: #{tpu_custom_call.1} parent=1 // pred_check_branch
      %37 = sbr.rel (0) target = $region9
    $region8: #{tpu_custom_call.1} parent=1 // pred_region
      %s39 = ssub.s32 128, 128
      %40 = vsyncadd [#allocation6], %s39
      %s42 = sshll.u32 [#allocation5], 4
      %s43 = int_to_ptr.vmem [resolvable:$true] %s42
      %45 = dma.hbm_to_vmem [thread:$0]  %s1, 128, %s43, [#allocation6]
    $region9: #{tpu_custom_call.1} parent=1 // pred_fallthru
      _
    // Predicated region
    $region10: #{tpu_custom_call.1} parent=1 // pred_check
      _
    $region11: #{tpu_custom_call.1} parent=1 // pred_check_branch
      %47 = sbr.rel (0) target = $region13
    $region12: #{tpu_custom_call.1} parent=1 // pred_region
      %s49 = ssub.s32 28672, 28672
      %50 = vsyncadd [#allocation6], %s49
      %s51 = sshll.u32 [#allocation7], 4
      %s52 = int_to_ptr.vmem [resolvable:$true] %s51
      %57 = dma.hbm_to_vmem [thread:$0]  %s2, 28672, %s52, [#allocation6], 256, 256, 16
    $region13: #{tpu_custom_call.1} parent=1 // pred_fallthru
      _
    // Predicated region
    $region14: #{tpu_custom_call.1} parent=1 // pred_check
      _
    $region15: #{tpu_custom_call.1} parent=1 // pred_check_branch
      %59 = sbr.rel (0) target = $region17
    $region16: #{tpu_custom_call.1} parent=1 // pred_region
      _
    $region17: #{tpu_custom_call.1} parent=1 // pred_fallthru
      _
    // Predicated region
    $region18: #{tpu_custom_call.1} parent=1 // pred_check
      _
    $region19: #{tpu_custom_call.1} parent=1 // pred_check_branch
      %61 = sbr.rel (0) target = $region21
    $region20: #{tpu_custom_call.1} parent=1 // pred_region
      %s63 = ssub.s32 8192, 8192
      %64 = vsyncadd [#allocation9], %s63
      %s65 = sshll.u32 [#allocation8], 4
      %s66 = int_to_ptr.vmem [resolvable:$true] %s65
      %71 = dma.hbm_to_vmem [thread:$0]  %s4, 8192, %s66, [#allocation9], 128, 128, 8
    $region21: #{tpu_custom_call.1} parent=1 // pred_fallthru
      _
    // Predicated region
    $region22: #{tpu_custom_call.1} parent=1 // pred_check
      _
    $region23: #{tpu_custom_call.1} parent=1 // pred_check_branch
      %73 = sbr.rel (0) target = $region25
    $region24: #{tpu_custom_call.1} parent=1 // pred_region
      _
    $region25: #{tpu_custom_call.1} parent=1 // pred_fallthru
      _
    // Predicated region
    $region26: #{tpu_custom_call.1} parent=1 // pred_check
      _
    $region27: #{tpu_custom_call.1} parent=1 // pred_check_branch
      %75 = sbr.rel (0) target = $region29
    $region28: #{tpu_custom_call.1} parent=1 // pred_region
      %s77 = ssub.s32 4096, 4096
      %78 = vsyncadd [#allocation9], %s77
      %s79 = sshll.u32 [#allocation10], 4
      %s80 = int_to_ptr.vmem [resolvable:$true] %s79
      %85 = dma.hbm_to_vmem [thread:$0]  %s6, 4096, %s80, [#allocation9], 256, 256, 16
    $region29: #{tpu_custom_call.1} parent=1 // pred_fallthru
      _
    // Predicated region
    $region30: #{tpu_custom_call.1} parent=1 // pred_check
      _
    $region31: #{tpu_custom_call.1} parent=1 // pred_check_branch
      %87 = sbr.rel (0) target = $region33
    $region32: #{tpu_custom_call.1} parent=1 // pred_region
      _
    $region33: #{tpu_custom_call.1} parent=1 // pred_fallthru
      _
    // Predicated region
    $region34: #{tpu_custom_call.1} parent=1 // pred_check
      _
    $region35: #{tpu_custom_call.1} parent=1 // pred_check_branch
      %89 = sbr.rel (0) target = $region37
    $region36: #{tpu_custom_call.1} parent=1 // pred_region
      %s91 = ssub.s32 28672, 28672
      %92 = vsyncadd [#allocation12], %s91
      %s93 = sshll.u32 [#allocation11], 4
      %s94 = int_to_ptr.vmem [resolvable:$true] %s93
      %99 = dma.hbm_to_vmem [thread:$0]  %s8, 28672, %s94, [#allocation12], 448, 448, 28
    $region37: #{tpu_custom_call.1} parent=1 // pred_fallthru
      _
    // Predicated region
    $region38: #{tpu_custom_call.1} parent=1 // pred_check
      _
    $region39: #{tpu_custom_call.1} parent=1 // pred_check_branch
      %101 = sbr.rel (0) target = $region41
    $region40: #{tpu_custom_call.1} parent=1 // pred_region
      _
    $region41: #{tpu_custom_call.1} parent=1 // pred_fallthru
      _
    // Predicated region
    $region42: #{tpu_custom_call.1} parent=1 // pred_check
      _
    $region43: #{tpu_custom_call.1} parent=1 // pred_check_branch
      %103 = sbr.rel (0) target = $region45
    $region44: #{tpu_custom_call.1} parent=1 // pred_region
      %104 = dma.done [#allocation3], 448
    $region45: #{tpu_custom_call.1} parent=1 // pred_fallthru
      _
    // Predicated region
    $region46: #{tpu_custom_call.1} parent=1 // pred_check
      _
    $region47: #{tpu_custom_call.1} parent=1 // pred_check_branch
      %106 = sbr.rel (0) target = $region49
    $region48: #{tpu_custom_call.1} parent=1 // pred_region
      %107 = dma.done [#allocation6], 128
    $region49: #{tpu_custom_call.1} parent=1 // pred_fallthru
      _
    // Predicated region
    $region50: #{tpu_custom_call.1} parent=1 // pred_check
      _
    $region51: #{tpu_custom_call.1} parent=1 // pred_check_branch
      %109 = sbr.rel (0) target = $region53
    $region52: #{tpu_custom_call.1} parent=1 // pred_region
      %110 = dma.done [#allocation6], 28672
    $region53: #{tpu_custom_call.1} parent=1 // pred_fallthru
      _
    // Predicated region
    $region54: #{tpu_custom_call.1} parent=1 // pred_check
      _
    $region55: #{tpu_custom_call.1} parent=1 // pred_check_branch
      %112 = sbr.rel (0) target = $region57
    $region56: #{tpu_custom_call.1} parent=1 // pred_region
      %113 = dma.done [#allocation9], 8192
    $region57: #{tpu_custom_call.1} parent=1 // pred_fallthru
      _
    // Predicated region
    $region58: #{tpu_custom_call.1} parent=1 // pred_check
      _
    $region59: #{tpu_custom_call.1} parent=1 // pred_check_branch
      %115 = sbr.rel (0) target = $region61
    $region60: #{tpu_custom_call.1} parent=1 // pred_region
      %116 = dma.done [#allocation9], 4096
    $region61: #{tpu_custom_call.1} parent=1 // pred_fallthru
      _
    // Predicated region
    $region62: #{tpu_custom_call.1} parent=1 // pred_check
      _
    $region63: #{tpu_custom_call.1} parent=1 // pred_check_branch
      %118 = sbr.rel (0) target = $region65
    $region64: #{tpu_custom_call.1} parent=1 // pred_region
      %119 = dma.done [#allocation12], 28672
    $region65: #{tpu_custom_call.1} parent=1 // pred_fallthru
      _
    %v121 = vld [vmem:[#allocation2] sm:$0xff]
    %v122 = vld [vmem:[#allocation2 + $0x8] sm:$0xff]
    %v123 = vld [vmem:[#allocation2 + $0x10] sm:$0xff]
    %v124 = vld [vmem:[#allocation2 + $0x18] sm:$0xf]
    %v125 = vld [vmem:[#allocation7] sm:$0xff]
    %v126 = vld [vmem:[#allocation7 + $0x8] sm:$0xff]
    %v127 = vld [vmem:[#allocation7 + $0x10] sm:$0xff]
    %v128 = vld [vmem:[#allocation7 + $0x18] sm:$0xff]
    %v129 = vld [vmem:[#allocation7 + $0x20] sm:$0xff]
    %v130 = vld [vmem:[#allocation7 + $0x28] sm:$0xff]
    %v131 = vld [vmem:[#allocation7 + $0x30] sm:$0xff]
    %v132 = vld [vmem:[#allocation7 + $0x38] sm:$0xff]
    %v133 = vld [vmem:[#allocation7 + $0x40] sm:$0xff]
    %v134 = vld [vmem:[#allocation7 + $0x48] sm:$0xff]
    %v135 = vld [vmem:[#allocation7 + $0x50] sm:$0xff]
    %v136 = vld [vmem:[#allocation7 + $0x58] sm:$0xff]
    %v137 = vld [vmem:[#allocation7 + $0x60] sm:$0xff]
    %v138 = vld [vmem:[#allocation7 + $0x68] sm:$0xff]
    %v139 = vld [vmem:[#allocation7 + $0x70] sm:$0xff]
    %v140 = vld [vmem:[#allocation7 + $0x78] sm:$0xff]
    %v141 = vld [vmem:[#allocation7 + $0x80] sm:$0xff]
    %v142 = vld [vmem:[#allocation7 + $0x88] sm:$0xff]
    %v143 = vld [vmem:[#allocation7 + $0x90] sm:$0xff]
    %v144 = vld [vmem:[#allocation7 + $0x98] sm:$0xff]
    %v145 = vld [vmem:[#allocation7 + $0xa0] sm:$0xff]
    %v146 = vld [vmem:[#allocation7 + $0xa8] sm:$0xff]
    %v147 = vld [vmem:[#allocation7 + $0xb0] sm:$0xff]
    %v148 = vld [vmem:[#allocation7 + $0xb8] sm:$0xff]
    %v149 = vld [vmem:[#allocation7 + $0xc0] sm:$0xff]
    %v150 = vld [vmem:[#allocation7 + $0xc8] sm:$0xff]
    %v151 = vld [vmem:[#allocation7 + $0xd0] sm:$0xff]
    %v152 = vld [vmem:[#allocation7 + $0xd8] sm:$0xff]
    %v153 = vld [vmem:[#allocation7 + $0xe0] sm:$0xff]
    %v154 = vld [vmem:[#allocation7 + $0xe8] sm:$0xff]
    %v155 = vld [vmem:[#allocation7 + $0xf0] sm:$0xff]
    %v156 = vld [vmem:[#allocation7 + $0xf8] sm:$0xff]
    %v157 = vld [vmem:[#allocation7 + $0x100] sm:$0xff]
    %v158 = vld [vmem:[#allocation7 + $0x108] sm:$0xff]
    %v159 = vld [vmem:[#allocation7 + $0x110] sm:$0xff]
    %v160 = vld [vmem:[#allocation7 + $0x118] sm:$0xff]
    %v161 = vld [vmem:[#allocation7 + $0x120] sm:$0xff]
    %v162 = vld [vmem:[#allocation7 + $0x128] sm:$0xff]
    %v163 = vld [vmem:[#allocation7 + $0x130] sm:$0xff]
    %v164 = vld [vmem:[#allocation7 + $0x138] sm:$0xff]
    %v165 = vld [vmem:[#allocation7 + $0x140] sm:$0xff]
    %v166 = vld [vmem:[#allocation7 + $0x148] sm:$0xff]
    %v167 = vld [vmem:[#allocation7 + $0x150] sm:$0xff]
    %v168 = vld [vmem:[#allocation7 + $0x158] sm:$0xff]
    %v169 = vld [vmem:[#allocation7 + $0x160] sm:$0xff]
    %v170 = vld [vmem:[#allocation7 + $0x168] sm:$0xff]
    %v171 = vld [vmem:[#allocation7 + $0x170] sm:$0xff]
    %v172 = vld [vmem:[#allocation7 + $0x178] sm:$0xff]
    %v173 = vld [vmem:[#allocation7 + $0x180] sm:$0xff]
    %v174 = vld [vmem:[#allocation7 + $0x188] sm:$0xff]
    %v175 = vld [vmem:[#allocation7 + $0x190] sm:$0xff]
    %v176 = vld [vmem:[#allocation7 + $0x198] sm:$0xff]
    %v177 = vld [vmem:[#allocation7 + $0x1a0] sm:$0xff]
    %v178 = vld [vmem:[#allocation7 + $0x1a8] sm:$0xff]
    %v179 = vld [vmem:[#allocation7 + $0x1b0] sm:$0xff]
    %v180 = vld [vmem:[#allocation7 + $0x1b8] sm:$0xff]
    %v181 = vld [vmem:[#allocation7 + $0x1c0] sm:$0xff]
    %v182 = vld [vmem:[#allocation7 + $0x1c8] sm:$0xff]
    %v183 = vld [vmem:[#allocation7 + $0x1d0] sm:$0xff]
    %v184 = vld [vmem:[#allocation7 + $0x1d8] sm:$0xff]
    %v185 = vld [vmem:[#allocation7 + $0x1e0] sm:$0xff]
    %v186 = vld [vmem:[#allocation7 + $0x1e8] sm:$0xff]
    %v187 = vld [vmem:[#allocation7 + $0x1f0] sm:$0xff]
    %v188 = vld [vmem:[#allocation7 + $0x1f8] sm:$0xff]
    %v189 = vld [vmem:[#allocation7 + $0x200] sm:$0xff]
    %v190 = vld [vmem:[#allocation7 + $0x208] sm:$0xff]
    %v191 = vld [vmem:[#allocation7 + $0x210] sm:$0xff]
    %v192 = vld [vmem:[#allocation7 + $0x218] sm:$0xff]
    %v193 = vld [vmem:[#allocation7 + $0x220] sm:$0xff]
    %v194 = vld [vmem:[#allocation7 + $0x228] sm:$0xff]
    %v195 = vld [vmem:[#allocation7 + $0x230] sm:$0xff]
    %v196 = vld [vmem:[#allocation7 + $0x238] sm:$0xff]
    %v197 = vld [vmem:[#allocation7 + $0x240] sm:$0xff]
    %v198 = vld [vmem:[#allocation7 + $0x248] sm:$0xff]
    %v199 = vld [vmem:[#allocation7 + $0x250] sm:$0xff]
    %v200 = vld [vmem:[#allocation7 + $0x258] sm:$0xff]
    %v201 = vld [vmem:[#allocation7 + $0x260] sm:$0xff]
    %v202 = vld [vmem:[#allocation7 + $0x268] sm:$0xff]
    %v203 = vld [vmem:[#allocation7 + $0x270] sm:$0xff]
    %v204 = vld [vmem:[#allocation7 + $0x278] sm:$0xff]
    %v205 = vld [vmem:[#allocation7 + $0x280] sm:$0xff]
    %v206 = vld [vmem:[#allocation7 + $0x288] sm:$0xff]
    %v207 = vld [vmem:[#allocation7 + $0x290] sm:$0xff]
    %v208 = vld [vmem:[#allocation7 + $0x298] sm:$0xff]
    %v209 = vld [vmem:[#allocation7 + $0x2a0] sm:$0xff]
    %v210 = vld [vmem:[#allocation7 + $0x2a8] sm:$0xff]
    %v211 = vld [vmem:[#allocation7 + $0x2b0] sm:$0xff]
    %v212 = vld [vmem:[#allocation7 + $0x2b8] sm:$0xff]
    %v213 = vld [vmem:[#allocation7 + $0x2c0] sm:$0xff]
    %v214 = vld [vmem:[#allocation7 + $0x2c8] sm:$0xff]
    %v215 = vld [vmem:[#allocation7 + $0x2d0] sm:$0xff]
    %v216 = vld [vmem:[#allocation7 + $0x2d8] sm:$0xff]
    %v217 = vld [vmem:[#allocation7 + $0x2e0] sm:$0xff]
    %v218 = vld [vmem:[#allocation7 + $0x2e8] sm:$0xff]
    %v219 = vld [vmem:[#allocation7 + $0x2f0] sm:$0xff]
    %v220 = vld [vmem:[#allocation7 + $0x2f8] sm:$0xff]
    %v221 = vld [vmem:[#allocation7 + $0x300] sm:$0xff]
    %v222 = vld [vmem:[#allocation7 + $0x308] sm:$0xff]
    %v223 = vld [vmem:[#allocation7 + $0x310] sm:$0xff]
    %v224 = vld [vmem:[#allocation7 + $0x318] sm:$0xff]
    %v225 = vld [vmem:[#allocation7 + $0x320] sm:$0xff]
    %v226 = vld [vmem:[#allocation7 + $0x328] sm:$0xff]
    %v227 = vld [vmem:[#allocation7 + $0x330] sm:$0xff]
    %v228 = vld [vmem:[#allocation7 + $0x338] sm:$0xff]
    %v229 = vld [vmem:[#allocation7 + $0x340] sm:$0xff]
    %v230 = vld [vmem:[#allocation7 + $0x348] sm:$0xff]
    %v231 = vld [vmem:[#allocation7 + $0x350] sm:$0xff]
    %v232 = vld [vmem:[#allocation7 + $0x358] sm:$0xff]
    %v233 = vld [vmem:[#allocation7 + $0x360] sm:$0xff]
    %v234 = vld [vmem:[#allocation7 + $0x368] sm:$0xff]
    %v235 = vld [vmem:[#allocation7 + $0x370] sm:$0xff]
    %v236 = vld [vmem:[#allocation7 + $0x378] sm:$0xff]
    %v237 = vld [vmem:[#allocation7 + $0x380] sm:$0xff]
    %v238 = vld [vmem:[#allocation7 + $0x388] sm:$0xff]
    %v239 = vld [vmem:[#allocation7 + $0x390] sm:$0xff]
    %v240 = vld [vmem:[#allocation7 + $0x398] sm:$0xff]
    %v241 = vld [vmem:[#allocation7 + $0x3a0] sm:$0xff]
    %v242 = vld [vmem:[#allocation7 + $0x3a8] sm:$0xff]
    %v243 = vld [vmem:[#allocation7 + $0x3b0] sm:$0xff]
    %v244 = vld [vmem:[#allocation7 + $0x3b8] sm:$0xff]
    %v245 = vld [vmem:[#allocation7 + $0x3c0] sm:$0xff]
    %v246 = vld [vmem:[#allocation7 + $0x3c8] sm:$0xff]
    %v247 = vld [vmem:[#allocation7 + $0x3d0] sm:$0xff]
    %v248 = vld [vmem:[#allocation7 + $0x3d8] sm:$0xff]
    %v249 = vld [vmem:[#allocation7 + $0x3e0] sm:$0xff]
    %v250 = vld [vmem:[#allocation7 + $0x3e8] sm:$0xff]
    %v251 = vld [vmem:[#allocation7 + $0x3f0] sm:$0xff]
    %v252 = vld [vmem:[#allocation7 + $0x3f8] sm:$0xff]
    %v253 = vld [vmem:[#allocation7 + $0x400] sm:$0xff]
    %v254 = vld [vmem:[#allocation7 + $0x408] sm:$0xff]
    %v255 = vld [vmem:[#allocation7 + $0x410] sm:$0xff]
    %v256 = vld [vmem:[#allocation7 + $0x418] sm:$0xff]
    %v257 = vld [vmem:[#allocation7 + $0x420] sm:$0xff]
    %v258 = vld [vmem:[#allocation7 + $0x428] sm:$0xff]
    %v259 = vld [vmem:[#allocation7 + $0x430] sm:$0xff]
    %v260 = vld [vmem:[#allocation7 + $0x438] sm:$0xff]
    %v261 = vld [vmem:[#allocation7 + $0x440] sm:$0xff]
    %v262 = vld [vmem:[#allocation7 + $0x448] sm:$0xff]
    %v263 = vld [vmem:[#allocation7 + $0x450] sm:$0xff]
    %v264 = vld [vmem:[#allocation7 + $0x458] sm:$0xff]
    %v265 = vld [vmem:[#allocation7 + $0x460] sm:$0xff]
    %v266 = vld [vmem:[#allocation7 + $0x468] sm:$0xff]
    %v267 = vld [vmem:[#allocation7 + $0x470] sm:$0xff]
    %v268 = vld [vmem:[#allocation7 + $0x478] sm:$0xff]
    %v269 = vld [vmem:[#allocation7 + $0x480] sm:$0xff]
    %v270 = vld [vmem:[#allocation7 + $0x488] sm:$0xff]
    %v271 = vld [vmem:[#allocation7 + $0x490] sm:$0xff]
    %v272 = vld [vmem:[#allocation7 + $0x498] sm:$0xff]
    %v273 = vld [vmem:[#allocation7 + $0x4a0] sm:$0xff]
    %v274 = vld [vmem:[#allocation7 + $0x4a8] sm:$0xff]
    %v275 = vld [vmem:[#allocation7 + $0x4b0] sm:$0xff]
    %v276 = vld [vmem:[#allocation7 + $0x4b8] sm:$0xff]
    %v277 = vld [vmem:[#allocation7 + $0x4c0] sm:$0xff]
    %v278 = vld [vmem:[#allocation7 + $0x4c8] sm:$0xff]
    %v279 = vld [vmem:[#allocation7 + $0x4d0] sm:$0xff]
    %v280 = vld [vmem:[#allocation7 + $0x4d8] sm:$0xff]
    %v281 = vld [vmem:[#allocation7 + $0x4e0] sm:$0xff]
    %v282 = vld [vmem:[#allocation7 + $0x4e8] sm:$0xff]
    %v283 = vld [vmem:[#allocation7 + $0x4f0] sm:$0xff]
    %v284 = vld [vmem:[#allocation7 + $0x4f8] sm:$0xff]
    %v285 = vld [vmem:[#allocation7 + $0x500] sm:$0xff]
    %v286 = vld [vmem:[#allocation7 + $0x508] sm:$0xff]
    %v287 = vld [vmem:[#allocation7 + $0x510] sm:$0xff]
    %v288 = vld [vmem:[#allocation7 + $0x518] sm:$0xff]
    %v289 = vld [vmem:[#allocation7 + $0x520] sm:$0xff]
    %v290 = vld [vmem:[#allocation7 + $0x528] sm:$0xff]
    %v291 = vld [vmem:[#allocation7 + $0x530] sm:$0xff]
    %v292 = vld [vmem:[#allocation7 + $0x538] sm:$0xff]
    %v293 = vld [vmem:[#allocation7 + $0x540] sm:$0xff]
    %v294 = vld [vmem:[#allocation7 + $0x548] sm:$0xff]
    %v295 = vld [vmem:[#allocation7 + $0x550] sm:$0xff]
    %v296 = vld [vmem:[#allocation7 + $0x558] sm:$0xff]
    %v297 = vld [vmem:[#allocation7 + $0x560] sm:$0xff]
    %v298 = vld [vmem:[#allocation7 + $0x568] sm:$0xff]
    %v299 = vld [vmem:[#allocation7 + $0x570] sm:$0xff]
    %v300 = vld [vmem:[#allocation7 + $0x578] sm:$0xff]
    %v301 = vld [vmem:[#allocation7 + $0x580] sm:$0xff]
    %v302 = vld [vmem:[#allocation7 + $0x588] sm:$0xff]
    %v303 = vld [vmem:[#allocation7 + $0x590] sm:$0xff]
    %v304 = vld [vmem:[#allocation7 + $0x598] sm:$0xff]
    %v305 = vld [vmem:[#allocation7 + $0x5a0] sm:$0xff]
    %v306 = vld [vmem:[#allocation7 + $0x5a8] sm:$0xff]
    %v307 = vld [vmem:[#allocation7 + $0x5b0] sm:$0xff]
    %v308 = vld [vmem:[#allocation7 + $0x5b8] sm:$0xff]
    %v309 = vld [vmem:[#allocation7 + $0x5c0] sm:$0xff]
    %v310 = vld [vmem:[#allocation7 + $0x5c8] sm:$0xff]
    %v311 = vld [vmem:[#allocation7 + $0x5d0] sm:$0xff]
    %v312 = vld [vmem:[#allocation7 + $0x5d8] sm:$0xff]
    %v313 = vld [vmem:[#allocation7 + $0x5e0] sm:$0xff]
    %v314 = vld [vmem:[#allocation7 + $0x5e8] sm:$0xff]
    %v315 = vld [vmem:[#allocation7 + $0x5f0] sm:$0xff]
    %v316 = vld [vmem:[#allocation7 + $0x5f8] sm:$0xff]
    %v317 = vld [vmem:[#allocation7 + $0x600] sm:$0xff]
    %v318 = vld [vmem:[#allocation7 + $0x608] sm:$0xff]
    %v319 = vld [vmem:[#allocation7 + $0x610] sm:$0xff]
    %v320 = vld [vmem:[#allocation7 + $0x618] sm:$0xff]
    %v321 = vld [vmem:[#allocation7 + $0x620] sm:$0xff]
    %v322 = vld [vmem:[#allocation7 + $0x628] sm:$0xff]
    %v323 = vld [vmem:[#allocation7 + $0x630] sm:$0xff]
    %v324 = vld [vmem:[#allocation7 + $0x638] sm:$0xff]
    %v325 = vld [vmem:[#allocation7 + $0x640] sm:$0xff]
    %v326 = vld [vmem:[#allocation7 + $0x648] sm:$0xff]
    %v327 = vld [vmem:[#allocation7 + $0x650] sm:$0xff]
    %v328 = vld [vmem:[#allocation7 + $0x658] sm:$0xff]
    %v329 = vld [vmem:[#allocation7 + $0x660] sm:$0xff]
    %v330 = vld [vmem:[#allocation7 + $0x668] sm:$0xff]
    %v331 = vld [vmem:[#allocation7 + $0x670] sm:$0xff]
    %v332 = vld [vmem:[#allocation7 + $0x678] sm:$0xff]
    %v333 = vld [vmem:[#allocation7 + $0x680] sm:$0xff]
    %v334 = vld [vmem:[#allocation7 + $0x688] sm:$0xff]
    %v335 = vld [vmem:[#allocation7 + $0x690] sm:$0xff]
    %v336 = vld [vmem:[#allocation7 + $0x698] sm:$0xff]
    %v337 = vld [vmem:[#allocation7 + $0x6a0] sm:$0xff]
    %v338 = vld [vmem:[#allocation7 + $0x6a8] sm:$0xff]
    %v339 = vld [vmem:[#allocation7 + $0x6b0] sm:$0xff]
    %v340 = vld [vmem:[#allocation7 + $0x6b8] sm:$0xff]
    %v341 = vld [vmem:[#allocation7 + $0x6c0] sm:$0xff]
    %v342 = vld [vmem:[#allocation7 + $0x6c8] sm:$0xff]
    %v343 = vld [vmem:[#allocation7 + $0x6d0] sm:$0xff]
    %v344 = vld [vmem:[#allocation7 + $0x6d8] sm:$0xff]
    %v345 = vld [vmem:[#allocation7 + $0x6e0] sm:$0xff]
    %v346 = vld [vmem:[#allocation7 + $0x6e8] sm:$0xff]
    %v347 = vld [vmem:[#allocation7 + $0x6f0] sm:$0xff]
    %v348 = vld [vmem:[#allocation7 + $0x6f8] sm:$0xff]
    %v349 = vld [vmem:[%s3] sm:$0xf]
    %v351 = vlaneseq
    %v352 = vshrl.u32 %v351, 7
    %v353 = vsub.s32 0, %v352
    %v354 = vrot.slane %v349, %v353
    %v355 = vlaneseq
    %v356 = vshrl.u32 %v355, 7
    %v357 = vsub.s32 1, %v356
    %v358 = vrot.slane %v349, %v357
    %v359 = vlaneseq
    %v360 = vshrl.u32 %v359, 7
    %v361 = vsub.s32 2, %v360
    %v362 = vrot.slane %v349, %v361
    %v363 = vlaneseq
    %v364 = vshrl.u32 %v363, 7
    %v365 = vsub.s32 3, %v364
    %v366 = vrot.slane %v349, %v365
    %v375 = vunpack.c.l.b16 %v121
    %v376 = vunpack.c.h.b16 %v121
    %v377 = vunpack.c.l.b16 %v122
    %v378 = vunpack.c.h.b16 %v122
    %v379 = vunpack.c.l.b16 %v123
    %v380 = vunpack.c.h.b16 %v123
    %v381 = vunpack.c.l.b16 %v124
    %v382 = vpack.c.b16 %v375, %v375
    %v383 = vpack.c.b16 %v376, %v376
    %v384 = vpack.c.b16 %v377, %v377
    %v385 = vpack.c.b16 %v378, %v378
    %v386 = vpack.c.b16 %v379, %v379
    %v387 = vpack.c.b16 %v380, %v380
    %v388 = vpack.c.b16 %v381, %v381
    %v620 = vunpack.c.l.b16 %v125
    %v621 = vunpack.c.h.b16 %v125
    %v622 = vunpack.c.l.b16 %v126
    %v623 = vunpack.c.h.b16 %v126
    %v624 = vunpack.c.l.b16 %v127
    %v625 = vunpack.c.h.b16 %v127
    %v626 = vunpack.c.l.b16 %v128
    %v627 = vunpack.c.h.b16 %v128
    %v628 = vunpack.c.l.b16 %v129
    %v629 = vunpack.c.h.b16 %v129
    %v630 = vunpack.c.l.b16 %v130
    %v631 = vunpack.c.h.b16 %v130
    %v632 = vunpack.c.l.b16 %v131
    %v633 = vunpack.c.h.b16 %v131
    %v634 = vunpack.c.l.b16 %v132
    %v635 = vunpack.c.h.b16 %v132
    %v636 = vunpack.c.l.b16 %v133
    %v637 = vunpack.c.h.b16 %v133
    %v638 = vunpack.c.l.b16 %v134
    %v639 = vunpack.c.h.b16 %v134
    %v640 = vunpack.c.l.b16 %v135
    %v641 = vunpack.c.h.b16 %v135
    %v642 = vunpack.c.l.b16 %v136
    %v643 = vunpack.c.h.b16 %v136
    %v644 = vunpack.c.l.b16 %v137
    %v645 = vunpack.c.h.b16 %v137
    %v646 = vunpack.c.l.b16 %v138
    %v647 = vunpack.c.h.b16 %v138
    %v648 = vunpack.c.l.b16 %v139
    %v649 = vunpack.c.h.b16 %v139
    %v650 = vunpack.c.l.b16 %v140
    %v651 = vunpack.c.h.b16 %v140
    %v652 = vunpack.c.l.b16 %v141
    %v653 = vunpack.c.h.b16 %v141
    %v654 = vunpack.c.l.b16 %v142
    %v655 = vunpack.c.h.b16 %v142
    %v656 = vunpack.c.l.b16 %v143
    %v657 = vunpack.c.h.b16 %v143
    %v658 = vunpack.c.l.b16 %v144
    %v659 = vunpack.c.h.b16 %v144
    %v660 = vunpack.c.l.b16 %v145
    %v661 = vunpack.c.h.b16 %v145
    %v662 = vunpack.c.l.b16 %v146
    %v663 = vunpack.c.h.b16 %v146
    %v664 = vunpack.c.l.b16 %v147
    %v665 = vunpack.c.h.b16 %v147
    %v666 = vunpack.c.l.b16 %v148
    %v667 = vunpack.c.h.b16 %v148
    %v668 = vunpack.c.l.b16 %v149
    %v669 = vunpack.c.h.b16 %v149
    %v670 = vunpack.c.l.b16 %v150
    %v671 = vunpack.c.h.b16 %v150
    %v672 = vunpack.c.l.b16 %v151
    %v673 = vunpack.c.h.b16 %v151
    %v674 = vunpack.c.l.b16 %v152
    %v675 = vunpack.c.h.b16 %v152
    %v676 = vunpack.c.l.b16 %v153
    %v677 = vunpack.c.h.b16 %v153
    %v678 = vunpack.c.l.b16 %v154
    %v679 = vunpack.c.h.b16 %v154
    %v680 = vunpack.c.l.b16 %v155
    %v681 = vunpack.c.h.b16 %v155
    %v682 = vunpack.c.l.b16 %v156
    %v683 = vunpack.c.h.b16 %v156
    %v684 = vunpack.c.l.b16 %v157
    %v685 = vunpack.c.h.b16 %v157
    %v686 = vunpack.c.l.b16 %v158
    %v687 = vunpack.c.h.b16 %v158
    %v688 = vunpack.c.l.b16 %v159
    %v689 = vunpack.c.h.b16 %v159
    %v690 = vunpack.c.l.b16 %v160
    %v691 = vunpack.c.h.b16 %v160
    %v692 = vunpack.c.l.b16 %v161
    %v693 = vunpack.c.h.b16 %v161
    %v694 = vunpack.c.l.b16 %v162
    %v695 = vunpack.c.h.b16 %v162
    %v696 = vunpack.c.l.b16 %v163
    %v697 = vunpack.c.h.b16 %v163
    %v698 = vunpack.c.l.b16 %v164
    %v699 = vunpack.c.h.b16 %v164
    %v700 = vunpack.c.l.b16 %v165
    %v701 = vunpack.c.h.b16 %v165
    %v702 = vunpack.c.l.b16 %v166
    %v703 = vunpack.c.h.b16 %v166
    %v704 = vunpack.c.l.b16 %v167
    %v705 = vunpack.c.h.b16 %v167
    %v706 = vunpack.c.l.b16 %v168
    %v707 = vunpack.c.h.b16 %v168
    %v708 = vunpack.c.l.b16 %v169
    %v709 = vunpack.c.h.b16 %v169
    %v710 = vunpack.c.l.b16 %v170
    %v711 = vunpack.c.h.b16 %v170
    %v712 = vunpack.c.l.b16 %v171
    %v713 = vunpack.c.h.b16 %v171
    %v714 = vunpack.c.l.b16 %v172
    %v715 = vunpack.c.h.b16 %v172
    %v716 = vunpack.c.l.b16 %v173
    %v717 = vunpack.c.h.b16 %v173
    %v718 = vunpack.c.l.b16 %v174
    %v719 = vunpack.c.h.b16 %v174
    %v720 = vunpack.c.l.b16 %v175
    %v721 = vunpack.c.h.b16 %v175
    %v722 = vunpack.c.l.b16 %v176
    %v723 = vunpack.c.h.b16 %v176
    %v724 = vunpack.c.l.b16 %v177
    %v725 = vunpack.c.h.b16 %v177
    %v726 = vunpack.c.l.b16 %v178
    %v727 = vunpack.c.h.b16 %v178
    %v728 = vunpack.c.l.b16 %v179
    %v729 = vunpack.c.h.b16 %v179
    %v730 = vunpack.c.l.b16 %v180
    %v731 = vunpack.c.h.b16 %v180
    %v732 = vunpack.c.l.b16 %v181
    %v733 = vunpack.c.h.b16 %v181
    %v734 = vunpack.c.l.b16 %v182
    %v735 = vunpack.c.h.b16 %v182
    %v736 = vunpack.c.l.b16 %v183
    %v737 = vunpack.c.h.b16 %v183
    %v738 = vunpack.c.l.b16 %v184
    %v739 = vunpack.c.h.b16 %v184
    %v740 = vunpack.c.l.b16 %v185
    %v741 = vunpack.c.h.b16 %v185
    %v742 = vunpack.c.l.b16 %v186
    %v743 = vunpack.c.h.b16 %v186
    %v744 = vunpack.c.l.b16 %v187
    %v745 = vunpack.c.h.b16 %v187
    %v746 = vunpack.c.l.b16 %v188
    %v747 = vunpack.c.h.b16 %v188
    %v748 = vunpack.c.l.b16 %v189
    %v749 = vunpack.c.h.b16 %v189
    %v750 = vunpack.c.l.b16 %v190
    %v751 = vunpack.c.h.b16 %v190
    %v752 = vunpack.c.l.b16 %v191
    %v753 = vunpack.c.h.b16 %v191
    %v754 = vunpack.c.l.b16 %v192
    %v755 = vunpack.c.h.b16 %v192
    %v756 = vunpack.c.l.b16 %v193
    %v757 = vunpack.c.h.b16 %v193
    %v758 = vunpack.c.l.b16 %v194
    %v759 = vunpack.c.h.b16 %v194
    %v760 = vunpack.c.l.b16 %v195
    %v761 = vunpack.c.h.b16 %v195
    %v762 = vunpack.c.l.b16 %v196
    %v763 = vunpack.c.h.b16 %v196
    %v764 = vunpack.c.l.b16 %v197
    %v765 = vunpack.c.h.b16 %v197
    %v766 = vunpack.c.l.b16 %v198
    %v767 = vunpack.c.h.b16 %v198
    %v768 = vunpack.c.l.b16 %v199
    %v769 = vunpack.c.h.b16 %v199
    %v770 = vunpack.c.l.b16 %v200
    %v771 = vunpack.c.h.b16 %v200
    %v772 = vunpack.c.l.b16 %v201
    %v773 = vunpack.c.h.b16 %v201
    %v774 = vunpack.c.l.b16 %v202
    %v775 = vunpack.c.h.b16 %v202
    %v776 = vunpack.c.l.b16 %v203
    %v777 = vunpack.c.h.b16 %v203
    %v778 = vunpack.c.l.b16 %v204
    %v779 = vunpack.c.h.b16 %v204
    %v780 = vunpack.c.l.b16 %v205
    %v781 = vunpack.c.h.b16 %v205
    %v782 = vunpack.c.l.b16 %v206
    %v783 = vunpack.c.h.b16 %v206
    %v784 = vunpack.c.l.b16 %v207
    %v785 = vunpack.c.h.b16 %v207
    %v786 = vunpack.c.l.b16 %v208
    %v787 = vunpack.c.h.b16 %v208
    %v788 = vunpack.c.l.b16 %v209
    %v789 = vunpack.c.h.b16 %v209
    %v790 = vunpack.c.l.b16 %v210
    %v791 = vunpack.c.h.b16 %v210
    %v792 = vunpack.c.l.b16 %v211
    %v793 = vunpack.c.h.b16 %v211
    %v794 = vunpack.c.l.b16 %v212
    %v795 = vunpack.c.h.b16 %v212
    %v796 = vunpack.c.l.b16 %v213
    %v797 = vunpack.c.h.b16 %v213
    %v798 = vunpack.c.l.b16 %v214
    %v799 = vunpack.c.h.b16 %v214
    %v800 = vunpack.c.l.b16 %v215
    %v801 = vunpack.c.h.b16 %v215
    %v802 = vunpack.c.l.b16 %v216
    %v803 = vunpack.c.h.b16 %v216
    %v804 = vunpack.c.l.b16 %v217
    %v805 = vunpack.c.h.b16 %v217
    %v806 = vunpack.c.l.b16 %v218
    %v807 = vunpack.c.h.b16 %v218
    %v808 = vunpack.c.l.b16 %v219
    %v809 = vunpack.c.h.b16 %v219
    %v810 = vunpack.c.l.b16 %v220
    %v811 = vunpack.c.h.b16 %v220
    %v812 = vunpack.c.l.b16 %v221
    %v813 = vunpack.c.h.b16 %v221
    %v814 = vunpack.c.l.b16 %v222
    %v815 = vunpack.c.h.b16 %v222
    %v816 = vunpack.c.l.b16 %v223
    %v817 = vunpack.c.h.b16 %v223
    %v818 = vunpack.c.l.b16 %v224
    %v819 = vunpack.c.h.b16 %v224
    %v820 = vunpack.c.l.b16 %v225
    %v821 = vunpack.c.h.b16 %v225
    %v822 = vunpack.c.l.b16 %v226
    %v823 = vunpack.c.h.b16 %v226
    %v824 = vunpack.c.l.b16 %v227
    %v825 = vunpack.c.h.b16 %v227
    %v826 = vunpack.c.l.b16 %v228
    %v827 = vunpack.c.h.b16 %v228
    %v828 = vunpack.c.l.b16 %v229
    %v829 = vunpack.c.h.b16 %v229
    %v830 = vunpack.c.l.b16 %v230
    %v831 = vunpack.c.h.b16 %v230
    %v832 = vunpack.c.l.b16 %v231
    %v833 = vunpack.c.h.b16 %v231
    %v834 = vunpack.c.l.b16 %v232
    %v835 = vunpack.c.h.b16 %v232
    %v836 = vunpack.c.l.b16 %v233
    %v837 = vunpack.c.h.b16 %v233
    %v838 = vunpack.c.l.b16 %v234
    %v839 = vunpack.c.h.b16 %v234
    %v840 = vunpack.c.l.b16 %v235
    %v841 = vunpack.c.h.b16 %v235
    %v842 = vunpack.c.l.b16 %v236
    %v843 = vunpack.c.h.b16 %v236
    %v844 = vunpack.c.l.b16 %v237
    %v845 = vunpack.c.h.b16 %v237
    %v846 = vunpack.c.l.b16 %v238
    %v847 = vunpack.c.h.b16 %v238
    %v848 = vunpack.c.l.b16 %v239
    %v849 = vunpack.c.h.b16 %v239
    %v850 = vunpack.c.l.b16 %v240
    %v851 = vunpack.c.h.b16 %v240
    %v852 = vunpack.c.l.b16 %v241
    %v853 = vunpack.c.h.b16 %v241
    %v854 = vunpack.c.l.b16 %v242
    %v855 = vunpack.c.h.b16 %v242
    %v856 = vunpack.c.l.b16 %v243
    %v857 = vunpack.c.h.b16 %v243
    %v858 = vunpack.c.l.b16 %v244
    %v859 = vunpack.c.h.b16 %v244
    %v860 = vunpack.c.l.b16 %v245
    %v861 = vunpack.c.h.b16 %v245
    %v862 = vunpack.c.l.b16 %v246
    %v863 = vunpack.c.h.b16 %v246
    %v864 = vunpack.c.l.b16 %v247
    %v865 = vunpack.c.h.b16 %v247
    %v866 = vunpack.c.l.b16 %v248
    %v867 = vunpack.c.h.b16 %v248
    %v868 = vunpack.c.l.b16 %v249
    %v869 = vunpack.c.h.b16 %v249
    %v870 = vunpack.c.l.b16 %v250
    %v871 = vunpack.c.h.b16 %v250
    %v872 = vunpack.c.l.b16 %v251
    %v873 = vunpack.c.h.b16 %v251
    %v874 = vunpack.c.l.b16 %v252
    %v875 = vunpack.c.h.b16 %v252
    %v876 = vunpack.c.l.b16 %v253
    %v877 = vunpack.c.h.b16 %v253
    %v878 = vunpack.c.l.b16 %v254
    %v879 = vunpack.c.h.b16 %v254
    %v880 = vunpack.c.l.b16 %v255
    %v881 = vunpack.c.h.b16 %v255
    %v882 = vunpack.c.l.b16 %v256
    %v883 = vunpack.c.h.b16 %v256
    %v884 = vunpack.c.l.b16 %v257
    %v885 = vunpack.c.h.b16 %v257
    %v886 = vunpack.c.l.b16 %v258
    %v887 = vunpack.c.h.b16 %v258
    %v888 = vunpack.c.l.b16 %v259
    %v889 = vunpack.c.h.b16 %v259
    %v890 = vunpack.c.l.b16 %v260
    %v891 = vunpack.c.h.b16 %v260
    %v892 = vunpack.c.l.b16 %v261
    %v893 = vunpack.c.h.b16 %v261
    %v894 = vunpack.c.l.b16 %v262
    %v895 = vunpack.c.h.b16 %v262
    %v896 = vunpack.c.l.b16 %v263
    %v897 = vunpack.c.h.b16 %v263
    %v898 = vunpack.c.l.b16 %v264
    %v899 = vunpack.c.h.b16 %v264
    %v900 = vunpack.c.l.b16 %v265
    %v901 = vunpack.c.h.b16 %v265
    %v902 = vunpack.c.l.b16 %v266
    %v903 = vunpack.c.h.b16 %v266
    %v904 = vunpack.c.l.b16 %v267
    %v905 = vunpack.c.h.b16 %v267
    %v906 = vunpack.c.l.b16 %v268
    %v907 = vunpack.c.h.b16 %v268
    %v908 = vunpack.c.l.b16 %v269
    %v909 = vunpack.c.h.b16 %v269
    %v910 = vunpack.c.l.b16 %v270
    %v911 = vunpack.c.h.b16 %v270
    %v912 = vunpack.c.l.b16 %v271
    %v913 = vunpack.c.h.b16 %v271
    %v914 = vunpack.c.l.b16 %v272
    %v915 = vunpack.c.h.b16 %v272
    %v916 = vunpack.c.l.b16 %v273
    %v917 = vunpack.c.h.b16 %v273
    %v918 = vunpack.c.l.b16 %v274
    %v919 = vunpack.c.h.b16 %v274
    %v920 = vunpack.c.l.b16 %v275
    %v921 = vunpack.c.h.b16 %v275
    %v922 = vunpack.c.l.b16 %v276
    %v923 = vunpack.c.h.b16 %v276
    %v924 = vunpack.c.l.b16 %v277
    %v925 = vunpack.c.h.b16 %v277
    %v926 = vunpack.c.l.b16 %v278
    %v927 = vunpack.c.h.b16 %v278
    %v928 = vunpack.c.l.b16 %v279
    %v929 = vunpack.c.h.b16 %v279
    %v930 = vunpack.c.l.b16 %v280
    %v931 = vunpack.c.h.b16 %v280
    %v932 = vunpack.c.l.b16 %v281
    %v933 = vunpack.c.h.b16 %v281
    %v934 = vunpack.c.l.b16 %v282
    %v935 = vunpack.c.h.b16 %v282
    %v936 = vunpack.c.l.b16 %v283
    %v937 = vunpack.c.h.b16 %v283
    %v938 = vunpack.c.l.b16 %v284
    %v939 = vunpack.c.h.b16 %v284
    %v940 = vunpack.c.l.b16 %v285
    %v941 = vunpack.c.h.b16 %v285
    %v942 = vunpack.c.l.b16 %v286
    %v943 = vunpack.c.h.b16 %v286
    %v944 = vunpack.c.l.b16 %v287
    %v945 = vunpack.c.h.b16 %v287
    %v946 = vunpack.c.l.b16 %v288
    %v947 = vunpack.c.h.b16 %v288
    %v948 = vunpack.c.l.b16 %v289
    %v949 = vunpack.c.h.b16 %v289
    %v950 = vunpack.c.l.b16 %v290
    %v951 = vunpack.c.h.b16 %v290
    %v952 = vunpack.c.l.b16 %v291
    %v953 = vunpack.c.h.b16 %v291
    %v954 = vunpack.c.l.b16 %v292
    %v955 = vunpack.c.h.b16 %v292
    %v956 = vunpack.c.l.b16 %v293
    %v957 = vunpack.c.h.b16 %v293
    %v958 = vunpack.c.l.b16 %v294
    %v959 = vunpack.c.h.b16 %v294
    %v960 = vunpack.c.l.b16 %v295
    %v961 = vunpack.c.h.b16 %v295
    %v962 = vunpack.c.l.b16 %v296
    %v963 = vunpack.c.h.b16 %v296
    %v964 = vunpack.c.l.b16 %v297
    %v965 = vunpack.c.h.b16 %v297
    %v966 = vunpack.c.l.b16 %v298
    %v967 = vunpack.c.h.b16 %v298
    %v968 = vunpack.c.l.b16 %v299
    %v969 = vunpack.c.h.b16 %v299
    %v970 = vunpack.c.l.b16 %v300
    %v971 = vunpack.c.h.b16 %v300
    %v972 = vunpack.c.l.b16 %v301
    %v973 = vunpack.c.h.b16 %v301
    %v974 = vunpack.c.l.b16 %v302
    %v975 = vunpack.c.h.b16 %v302
    %v976 = vunpack.c.l.b16 %v303
    %v977 = vunpack.c.h.b16 %v303
    %v978 = vunpack.c.l.b16 %v304
    %v979 = vunpack.c.h.b16 %v304
    %v980 = vunpack.c.l.b16 %v305
    %v981 = vunpack.c.h.b16 %v305
    %v982 = vunpack.c.l.b16 %v306
    %v983 = vunpack.c.h.b16 %v306
    %v984 = vunpack.c.l.b16 %v307
    %v985 = vunpack.c.h.b16 %v307
    %v986 = vunpack.c.l.b16 %v308
    %v987 = vunpack.c.h.b16 %v308
    %v988 = vunpack.c.l.b16 %v309
    %v989 = vunpack.c.h.b16 %v309
    %v990 = vunpack.c.l.b16 %v310
    %v991 = vunpack.c.h.b16 %v310
    %v992 = vunpack.c.l.b16 %v311
    %v993 = vunpack.c.h.b16 %v311
    %v994 = vunpack.c.l.b16 %v312
    %v995 = vunpack.c.h.b16 %v312
    %v996 = vunpack.c.l.b16 %v313
    %v997 = vunpack.c.h.b16 %v313
    %v998 = vunpack.c.l.b16 %v314
    %v999 = vunpack.c.h.b16 %v314
    %v1000 = vunpack.c.l.b16 %v315
    %v1001 = vunpack.c.h.b16 %v315
    %v1002 = vunpack.c.l.b16 %v316
    %v1003 = vunpack.c.h.b16 %v316
    %v1004 = vunpack.c.l.b16 %v317
    %v1005 = vunpack.c.h.b16 %v317
    %v1006 = vunpack.c.l.b16 %v318
    %v1007 = vunpack.c.h.b16 %v318
    %v1008 = vunpack.c.l.b16 %v319
    %v1009 = vunpack.c.h.b16 %v319
    %v1010 = vunpack.c.l.b16 %v320
    %v1011 = vunpack.c.h.b16 %v320
    %v1012 = vunpack.c.l.b16 %v321
    %v1013 = vunpack.c.h.b16 %v321
    %v1014 = vunpack.c.l.b16 %v322
    %v1015 = vunpack.c.h.b16 %v322
    %v1016 = vunpack.c.l.b16 %v323
    %v1017 = vunpack.c.h.b16 %v323
    %v1018 = vunpack.c.l.b16 %v324
    %v1019 = vunpack.c.h.b16 %v324
    %v1020 = vunpack.c.l.b16 %v325
    %v1021 = vunpack.c.h.b16 %v325
    %v1022 = vunpack.c.l.b16 %v326
    %v1023 = vunpack.c.h.b16 %v326
    %v1024 = vunpack.c.l.b16 %v327
    %v1025 = vunpack.c.h.b16 %v327
    %v1026 = vunpack.c.l.b16 %v328
    %v1027 = vunpack.c.h.b16 %v328
    %v1028 = vunpack.c.l.b16 %v329
    %v1029 = vunpack.c.h.b16 %v329
    %v1030 = vunpack.c.l.b16 %v330
    %v1031 = vunpack.c.h.b16 %v330
    %v1032 = vunpack.c.l.b16 %v331
    %v1033 = vunpack.c.h.b16 %v331
    %v1034 = vunpack.c.l.b16 %v332
    %v1035 = vunpack.c.h.b16 %v332
    %v1036 = vunpack.c.l.b16 %v333
    %v1037 = vunpack.c.h.b16 %v333
    %v1038 = vunpack.c.l.b16 %v334
    %v1039 = vunpack.c.h.b16 %v334
    %v1040 = vunpack.c.l.b16 %v335
    %v1041 = vunpack.c.h.b16 %v335
    %v1042 = vunpack.c.l.b16 %v336
    %v1043 = vunpack.c.h.b16 %v336
    %v1044 = vunpack.c.l.b16 %v337
    %v1045 = vunpack.c.h.b16 %v337
    %v1046 = vunpack.c.l.b16 %v338
    %v1047 = vunpack.c.h.b16 %v338
    %v1048 = vunpack.c.l.b16 %v339
    %v1049 = vunpack.c.h.b16 %v339
    %v1050 = vunpack.c.l.b16 %v340
    %v1051 = vunpack.c.h.b16 %v340
    %v1052 = vunpack.c.l.b16 %v341
    %v1053 = vunpack.c.h.b16 %v341
    %v1054 = vunpack.c.l.b16 %v342
    %v1055 = vunpack.c.h.b16 %v342
    %v1056 = vunpack.c.l.b16 %v343
    %v1057 = vunpack.c.h.b16 %v343
    %v1058 = vunpack.c.l.b16 %v344
    %v1059 = vunpack.c.h.b16 %v344
    %v1060 = vunpack.c.l.b16 %v345
    %v1061 = vunpack.c.h.b16 %v345
    %v1062 = vunpack.c.l.b16 %v346
    %v1063 = vunpack.c.h.b16 %v346
    %v1064 = vunpack.c.l.b16 %v347
    %v1065 = vunpack.c.h.b16 %v347
    %v1066 = vunpack.c.l.b16 %v348
    %v1067 = vunpack.c.h.b16 %v348
    %v1068 = vpack.c.b16 %v624, %v620
    %v1069 = vpack.c.b16 %v625, %v621
    %v1070 = vpack.c.b16 %v626, %v622
    %v1071 = vpack.c.b16 %v627, %v623
    %v1072 = vpack.c.b16 %v632, %v628
    %v1073 = vpack.c.b16 %v633, %v629
    %v1074 = vpack.c.b16 %v634, %v630
    %v1075 = vpack.c.b16 %v635, %v631
    %v1076 = vpack.c.b16 %v640, %v636
    %v1077 = vpack.c.b16 %v641, %v637
    %v1078 = vpack.c.b16 %v642, %v638
    %v1079 = vpack.c.b16 %v643, %v639
    %v1080 = vpack.c.b16 %v648, %v644
    %v1081 = vpack.c.b16 %v649, %v645
    %v1082 = vpack.c.b16 %v650, %v646
    %v1083 = vpack.c.b16 %v651, %v647
    %v1084 = vpack.c.b16 %v656, %v652
    %v1085 = vpack.c.b16 %v657, %v653
    %v1086 = vpack.c.b16 %v658, %v654
    %v1087 = vpack.c.b16 %v659, %v655
    %v1088 = vpack.c.b16 %v664, %v660
    %v1089 = vpack.c.b16 %v665, %v661
    %v1090 = vpack.c.b16 %v666, %v662
    %v1091 = vpack.c.b16 %v667, %v663
    %v1092 = vpack.c.b16 %v672, %v668
    %v1093 = vpack.c.b16 %v673, %v669
    %v1094 = vpack.c.b16 %v674, %v670
    %v1095 = vpack.c.b16 %v675, %v671
    %v1096 = vpack.c.b16 %v680, %v676
    %v1097 = vpack.c.b16 %v681, %v677
    %v1098 = vpack.c.b16 %v682, %v678
    %v1099 = vpack.c.b16 %v683, %v679
    %v1100 = vpack.c.b16 %v688, %v684
    %v1101 = vpack.c.b16 %v689, %v685
    %v1102 = vpack.c.b16 %v690, %v686
    %v1103 = vpack.c.b16 %v691, %v687
    %v1104 = vpack.c.b16 %v696, %v692
    %v1105 = vpack.c.b16 %v697, %v693
    %v1106 = vpack.c.b16 %v698, %v694
    %v1107 = vpack.c.b16 %v699, %v695
    %v1108 = vpack.c.b16 %v704, %v700
    %v1109 = vpack.c.b16 %v705, %v701
    %v1110 = vpack.c.b16 %v706, %v702
    %v1111 = vpack.c.b16 %v707, %v703
    %v1112 = vpack.c.b16 %v712, %v708
    %v1113 = vpack.c.b16 %v713, %v709
    %v1114 = vpack.c.b16 %v714, %v710
    %v1115 = vpack.c.b16 %v715, %v711
    %v1116 = vpack.c.b16 %v720, %v716
    %v1117 = vpack.c.b16 %v721, %v717
    %v1118 = vpack.c.b16 %v722, %v718
    %v1119 = vpack.c.b16 %v723, %v719
    %v1120 = vpack.c.b16 %v728, %v724
    %v1121 = vpack.c.b16 %v729, %v725
    %v1122 = vpack.c.b16 %v730, %v726
    %v1123 = vpack.c.b16 %v731, %v727
    %v1124 = vpack.c.b16 %v736, %v732
    %v1125 = vpack.c.b16 %v737, %v733
    %v1126 = vpack.c.b16 %v738, %v734
    %v1127 = vpack.c.b16 %v739, %v735
    %v1128 = vpack.c.b16 %v744, %v740
    %v1129 = vpack.c.b16 %v745, %v741
    %v1130 = vpack.c.b16 %v746, %v742
    %v1131 = vpack.c.b16 %v747, %v743
    %v1132 = vpack.c.b16 %v752, %v748
    %v1133 = vpack.c.b16 %v753, %v749
    %v1134 = vpack.c.b16 %v754, %v750
    %v1135 = vpack.c.b16 %v755, %v751
    %v1136 = vpack.c.b16 %v760, %v756
    %v1137 = vpack.c.b16 %v761, %v757
    %v1138 = vpack.c.b16 %v762, %v758
    %v1139 = vpack.c.b16 %v763, %v759
    %v1140 = vpack.c.b16 %v768, %v764
    %v1141 = vpack.c.b16 %v769, %v765
    %v1142 = vpack.c.b16 %v770, %v766
    %v1143 = vpack.c.b16 %v771, %v767
    %v1144 = vpack.c.b16 %v776, %v772
    %v1145 = vpack.c.b16 %v777, %v773
    %v1146 = vpack.c.b16 %v778, %v774
    %v1147 = vpack.c.b16 %v779, %v775
    %v1148 = vpack.c.b16 %v784, %v780
    %v1149 = vpack.c.b16 %v785, %v781
    %v1150 = vpack.c.b16 %v786, %v782
    %v1151 = vpack.c.b16 %v787, %v783
    %v1152 = vpack.c.b16 %v792, %v788
    %v1153 = vpack.c.b16 %v793, %v789
    %v1154 = vpack.c.b16 %v794, %v790
    %v1155 = vpack.c.b16 %v795, %v791
    %v1156 = vpack.c.b16 %v800, %v796
    %v1157 = vpack.c.b16 %v801, %v797
    %v1158 = vpack.c.b16 %v802, %v798
    %v1159 = vpack.c.b16 %v803, %v799
    %v1160 = vpack.c.b16 %v808, %v804
    %v1161 = vpack.c.b16 %v809, %v805
    %v1162 = vpack.c.b16 %v810, %v806
    %v1163 = vpack.c.b16 %v811, %v807
    %v1164 = vpack.c.b16 %v816, %v812
    %v1165 = vpack.c.b16 %v817, %v813
    %v1166 = vpack.c.b16 %v818, %v814
    %v1167 = vpack.c.b16 %v819, %v815
    %v1168 = vpack.c.b16 %v824, %v820
    %v1169 = vpack.c.b16 %v825, %v821
    %v1170 = vpack.c.b16 %v826, %v822
    %v1171 = vpack.c.b16 %v827, %v823
    %v1172 = vpack.c.b16 %v832, %v828
    %v1173 = vpack.c.b16 %v833, %v829
    %v1174 = vpack.c.b16 %v834, %v830
    %v1175 = vpack.c.b16 %v835, %v831
    %v1176 = vpack.c.b16 %v840, %v836
    %v1177 = vpack.c.b16 %v841, %v837
    %v1178 = vpack.c.b16 %v842, %v838
    %v1179 = vpack.c.b16 %v843, %v839
    %v1180 = vpack.c.b16 %v848, %v844
    %v1181 = vpack.c.b16 %v849, %v845
    %v1182 = vpack.c.b16 %v850, %v846
    %v1183 = vpack.c.b16 %v851, %v847
    %v1184 = vpack.c.b16 %v856, %v852
    %v1185 = vpack.c.b16 %v857, %v853
    %v1186 = vpack.c.b16 %v858, %v854
    %v1187 = vpack.c.b16 %v859, %v855
    %v1188 = vpack.c.b16 %v864, %v860
    %v1189 = vpack.c.b16 %v865, %v861
    %v1190 = vpack.c.b16 %v866, %v862
    %v1191 = vpack.c.b16 %v867, %v863
    %v1192 = vpack.c.b16 %v872, %v868
    %v1193 = vpack.c.b16 %v873, %v869
    %v1194 = vpack.c.b16 %v874, %v870
    %v1195 = vpack.c.b16 %v875, %v871
    %v1196 = vpack.c.b16 %v880, %v876
    %v1197 = vpack.c.b16 %v881, %v877
    %v1198 = vpack.c.b16 %v882, %v878
    %v1199 = vpack.c.b16 %v883, %v879
    %v1200 = vpack.c.b16 %v888, %v884
    %v1201 = vpack.c.b16 %v889, %v885
    %v1202 = vpack.c.b16 %v890, %v886
    %v1203 = vpack.c.b16 %v891, %v887
    %v1204 = vpack.c.b16 %v896, %v892
    %v1205 = vpack.c.b16 %v897, %v893
    %v1206 = vpack.c.b16 %v898, %v894
    %v1207 = vpack.c.b16 %v899, %v895
    %v1208 = vpack.c.b16 %v904, %v900
    %v1209 = vpack.c.b16 %v905, %v901
    %v1210 = vpack.c.b16 %v906, %v902
    %v1211 = vpack.c.b16 %v907, %v903
    %v1212 = vpack.c.b16 %v912, %v908
    %v1213 = vpack.c.b16 %v913, %v909
    %v1214 = vpack.c.b16 %v914, %v910
    %v1215 = vpack.c.b16 %v915, %v911
    %v1216 = vpack.c.b16 %v920, %v916
    %v1217 = vpack.c.b16 %v921, %v917
    %v1218 = vpack.c.b16 %v922, %v918
    %v1219 = vpack.c.b16 %v923, %v919
    %v1220 = vpack.c.b16 %v928, %v924
    %v1221 = vpack.c.b16 %v929, %v925
    %v1222 = vpack.c.b16 %v930, %v926
    %v1223 = vpack.c.b16 %v931, %v927
    %v1224 = vpack.c.b16 %v936, %v932
    %v1225 = vpack.c.b16 %v937, %v933
    %v1226 = vpack.c.b16 %v938, %v934
    %v1227 = vpack.c.b16 %v939, %v935
    %v1228 = vpack.c.b16 %v944, %v940
    %v1229 = vpack.c.b16 %v945, %v941
    %v1230 = vpack.c.b16 %v946, %v942
    %v1231 = vpack.c.b16 %v947, %v943
    %v1232 = vpack.c.b16 %v952, %v948
    %v1233 = vpack.c.b16 %v953, %v949
    %v1234 = vpack.c.b16 %v954, %v950
    %v1235 = vpack.c.b16 %v955, %v951
    %v1236 = vpack.c.b16 %v960, %v956
    %v1237 = vpack.c.b16 %v961, %v957
    %v1238 = vpack.c.b16 %v962, %v958
    %v1239 = vpack.c.b16 %v963, %v959
    %v1240 = vpack.c.b16 %v968, %v964
    %v1241 = vpack.c.b16 %v969, %v965
    %v1242 = vpack.c.b16 %v970, %v966
    %v1243 = vpack.c.b16 %v971, %v967
    %v1244 = vpack.c.b16 %v976, %v972
    %v1245 = vpack.c.b16 %v977, %v973
    %v1246 = vpack.c.b16 %v978, %v974
    %v1247 = vpack.c.b16 %v979, %v975
    %v1248 = vpack.c.b16 %v984, %v980
    %v1249 = vpack.c.b16 %v985, %v981
    %v1250 = vpack.c.b16 %v986, %v982
    %v1251 = vpack.c.b16 %v987, %v983
    %v1252 = vpack.c.b16 %v992, %v988
    %v1253 = vpack.c.b16 %v993, %v989
    %v1254 = vpack.c.b16 %v994, %v990
    %v1255 = vpack.c.b16 %v995, %v991
    %v1256 = vpack.c.b16 %v1000, %v996
    %v1257 = vpack.c.b16 %v1001, %v997
    %v1258 = vpack.c.b16 %v1002, %v998
    %v1259 = vpack.c.b16 %v1003, %v999
    %v1260 = vpack.c.b16 %v1008, %v1004
    %v1261 = vpack.c.b16 %v1009, %v1005
    %v1262 = vpack.c.b16 %v1010, %v1006
    %v1263 = vpack.c.b16 %v1011, %v1007
    %v1264 = vpack.c.b16 %v1016, %v1012
    %v1265 = vpack.c.b16 %v1017, %v1013
    %v1266 = vpack.c.b16 %v1018, %v1014
    %v1267 = vpack.c.b16 %v1019, %v1015
    %v1268 = vpack.c.b16 %v1024, %v1020
    %v1269 = vpack.c.b16 %v1025, %v1021
    %v1270 = vpack.c.b16 %v1026, %v1022
    %v1271 = vpack.c.b16 %v1027, %v1023
    %v1272 = vpack.c.b16 %v1032, %v1028
    %v1273 = vpack.c.b16 %v1033, %v1029
    %v1274 = vpack.c.b16 %v1034, %v1030
    %v1275 = vpack.c.b16 %v1035, %v1031
    %v1276 = vpack.c.b16 %v1040, %v1036
    %v1277 = vpack.c.b16 %v1041, %v1037
    %v1278 = vpack.c.b16 %v1042, %v1038
    %v1279 = vpack.c.b16 %v1043, %v1039
    %v1280 = vpack.c.b16 %v1048, %v1044
    %v1281 = vpack.c.b16 %v1049, %v1045
    %v1282 = vpack.c.b16 %v1050, %v1046
    %v1283 = vpack.c.b16 %v1051, %v1047
    %v1284 = vpack.c.b16 %v1056, %v1052
    %v1285 = vpack.c.b16 %v1057, %v1053
    %v1286 = vpack.c.b16 %v1058, %v1054
    %v1287 = vpack.c.b16 %v1059, %v1055
    %v1288 = vpack.c.b16 %v1064, %v1060
    %v1289 = vpack.c.b16 %v1065, %v1061
    %v1290 = vpack.c.b16 %v1066, %v1062
    %v1291 = vpack.c.b16 %v1067, %v1063
    %1516 = vmatprep.subr.bf16.mxu0 %v1069
    %1517 = vmatpush1.bf16.msra.mxu0 %v1068
    %1518 = vmatprep.subr.bf16.mxu0 %v1073
    %1519 = vmatpush1.bf16.msra.mxu0 %v1072
    %1520 = vmatprep.subr.bf16.mxu0 %v1077
    %1521 = vmatpush1.bf16.msra.mxu0 %v1076
    %1522 = vmatprep.subr.bf16.mxu0 %v1081
    %1523 = vmatpush1.bf16.msra.mxu0 %v1080
    %1524 = vmatprep.subr.bf16.mxu0 %v1085
    %1525 = vmatpush1.bf16.msra.mxu0 %v1084
    %1526 = vmatprep.subr.bf16.mxu0 %v1089
    %1527 = vmatpush1.bf16.msra.mxu0 %v1088
    %1528 = vmatprep.subr.bf16.mxu0 %v1093
    %1529 = vmatpush1.bf16.msra.mxu0 %v1092
    %1530 = vmatprep.subr.bf16.mxu0 %v1097
    %1531 = vmatpush1.bf16.msra.mxu0 %v1096
    %1532 = vmatprep.subr.bf16.mxu0 %v1101
    %1533 = vmatpush1.bf16.msra.mxu0 %v1100
    %1534 = vmatprep.subr.bf16.mxu0 %v1105
    %1535 = vmatpush1.bf16.msra.mxu0 %v1104
    %1536 = vmatprep.subr.bf16.mxu0 %v1109
    %1537 = vmatpush1.bf16.msra.mxu0 %v1108
    %1538 = vmatprep.subr.bf16.mxu0 %v1113
    %1539 = vmatpush1.bf16.msra.mxu0 %v1112
    %1540 = vmatprep.subr.bf16.mxu0 %v1117
    %1541 = vmatpush1.bf16.msra.mxu0 %v1116
    %1542 = vmatprep.subr.bf16.mxu0 %v1121
    %1543 = vmatpush1.bf16.msra.mxu0 %v1120
    %1544 = vmatprep.subr.bf16.mxu0 %v1125
    %1545 = vmatpush1.bf16.msra.mxu0 %v1124
    %1546 = vmatprep.subr.bf16.mxu0 %v1129
    %1547 = vmatpush1.bf16.msra.mxu0 %v1128
    %1548 = vmatprep.mubr.bf16.mxu0 %v383
    %1549 = vmatmul.mubr.bf16.gmra.mrb[0].mxu0 %v382
    %v1550 = vpop.f32.mrb[0].mxu0
    %v1551 = vadd.f32 %v354, %v1550
    %v1552 = vpop.f32.mrb[0].mxu0
    %v1553 = vadd.f32 %v358, %v1552
    %v1554 = vpop.f32.mrb[0].mxu0
    %v1555 = vpop.f32.mrb[0].mxu0
    %1556 = vdwg.mxu0
    %1557 = vmatprep.subr.bf16.mxu0 %v1133
    %1558 = vmatpush1.bf16.msra.mxu0 %v1132
    %1559 = vmatprep.subr.bf16.mxu0 %v1137
    %1560 = vmatpush1.bf16.msra.mxu0 %v1136
    %1561 = vmatprep.subr.bf16.mxu0 %v1141
    %1562 = vmatpush1.bf16.msra.mxu0 %v1140
    %1563 = vmatprep.subr.bf16.mxu0 %v1145
    %1564 = vmatpush1.bf16.msra.mxu0 %v1144
    %1565 = vmatprep.subr.bf16.mxu0 %v1149
    %1566 = vmatpush1.bf16.msra.mxu0 %v1148
    %1567 = vmatprep.subr.bf16.mxu0 %v1153
    %1568 = vmatpush1.bf16.msra.mxu0 %v1152
    %1569 = vmatprep.subr.bf16.mxu0 %v1157
    %1570 = vmatpush1.bf16.msra.mxu0 %v1156
    %1571 = vmatprep.subr.bf16.mxu0 %v1161
    %1572 = vmatpush1.bf16.msra.mxu0 %v1160
    %1573 = vmatprep.subr.bf16.mxu0 %v1165
    %1574 = vmatpush1.bf16.msra.mxu0 %v1164
    %1575 = vmatprep.subr.bf16.mxu0 %v1169
    %1576 = vmatpush1.bf16.msra.mxu0 %v1168
    %1577 = vmatprep.subr.bf16.mxu0 %v1173
    %1578 = vmatpush1.bf16.msra.mxu0 %v1172
    %1579 = vmatprep.subr.bf16.mxu0 %v1177
    %1580 = vmatpush1.bf16.msra.mxu0 %v1176
    %1581 = vmatprep.subr.bf16.mxu0 %v1181
    %1582 = vmatpush1.bf16.msra.mxu0 %v1180
    %1583 = vmatprep.subr.bf16.mxu0 %v1185
    %1584 = vmatpush1.bf16.msra.mxu0 %v1184
    %1585 = vmatprep.subr.bf16.mxu0 %v1189
    %1586 = vmatpush1.bf16.msra.mxu0 %v1188
    %1587 = vmatprep.subr.bf16.mxu0 %v1193
    %1588 = vmatpush1.bf16.msra.mxu0 %v1192
    %1589 = vmatprep.mubr.bf16.mxu0 %v385
    %1590 = vmatmul.mubr.bf16.gmra.mrb[0].mxu0 %v384
    %v1591 = vpop.f32.mrb[0].mxu0
    %v1592 = vadd.f32 %v1551, %v1591
    %v1593 = vpop.f32.mrb[0].mxu0
    %v1594 = vadd.f32 %v1553, %v1593
    %v1595 = vpop.f32.mrb[0].mxu0
    %v1596 = vpop.f32.mrb[0].mxu0
    %1597 = vdwg.mxu0
    %1598 = vmatprep.subr.bf16.mxu0 %v1197
    %1599 = vmatpush1.bf16.msra.mxu0 %v1196
    %1600 = vmatprep.subr.bf16.mxu0 %v1201
    %1601 = vmatpush1.bf16.msra.mxu0 %v1200
    %1602 = vmatprep.subr.bf16.mxu0 %v1205
    %1603 = vmatpush1.bf16.msra.mxu0 %v1204
    %1604 = vmatprep.subr.bf16.mxu0 %v1209
    %1605 = vmatpush1.bf16.msra.mxu0 %v1208
    %1606 = vmatprep.subr.bf16.mxu0 %v1213
    %1607 = vmatpush1.bf16.msra.mxu0 %v1212
    %1608 = vmatprep.subr.bf16.mxu0 %v1217
    %1609 = vmatpush1.bf16.msra.mxu0 %v1216
    %1610 = vmatprep.subr.bf16.mxu0 %v1221
    %1611 = vmatpush1.bf16.msra.mxu0 %v1220
    %1612 = vmatprep.subr.bf16.mxu0 %v1225
    %1613 = vmatpush1.bf16.msra.mxu0 %v1224
    %1614 = vmatprep.subr.bf16.mxu0 %v1229
    %1615 = vmatpush1.bf16.msra.mxu0 %v1228
    %1616 = vmatprep.subr.bf16.mxu0 %v1233
    %1617 = vmatpush1.bf16.msra.mxu0 %v1232
    %1618 = vmatprep.subr.bf16.mxu0 %v1237
    %1619 = vmatpush1.bf16.msra.mxu0 %v1236
    %1620 = vmatprep.subr.bf16.mxu0 %v1241
    %1621 = vmatpush1.bf16.msra.mxu0 %v1240
    %1622 = vmatprep.subr.bf16.mxu0 %v1245
    %1623 = vmatpush1.bf16.msra.mxu0 %v1244
    %1624 = vmatprep.subr.bf16.mxu0 %v1249
    %1625 = vmatpush1.bf16.msra.mxu0 %v1248
    %1626 = vmatprep.subr.bf16.mxu0 %v1253
    %1627 = vmatpush1.bf16.msra.mxu0 %v1252
    %1628 = vmatprep.subr.bf16.mxu0 %v1257
    %1629 = vmatpush1.bf16.msra.mxu0 %v1256
    %1630 = vmatprep.mubr.bf16.mxu0 %v387
    %1631 = vmatmul.mubr.bf16.gmra.mrb[0].mxu0 %v386
    %v1632 = vpop.f32.mrb[0].mxu0
    %v1633 = vadd.f32 %v1592, %v1632
    %v1634 = vpop.f32.mrb[0].mxu0
    %v1635 = vadd.f32 %v1594, %v1634
    %v1636 = vpop.f32.mrb[0].mxu0
    %v1637 = vpop.f32.mrb[0].mxu0
    %1638 = vdwg.mxu0
    %1639 = vmatprep.subr.bf16.mxu0 %v1261
    %1640 = vmatpush1.bf16.msra.mxu0 %v1260
    %1641 = vmatprep.subr.bf16.mxu0 %v1265
    %1642 = vmatpush1.bf16.msra.mxu0 %v1264
    %1643 = vmatprep.subr.bf16.mxu0 %v1269
    %1644 = vmatpush1.bf16.msra.mxu0 %v1268
    %1645 = vmatprep.subr.bf16.mxu0 %v1273
    %1646 = vmatpush1.bf16.msra.mxu0 %v1272
    %1647 = vmatprep.subr.bf16.mxu0 %v1277
    %1648 = vmatpush1.bf16.msra.mxu0 %v1276
    %1649 = vmatprep.subr.bf16.mxu0 %v1281
    %1650 = vmatpush1.bf16.msra.mxu0 %v1280
    %1651 = vmatprep.subr.bf16.mxu0 %v1285
    %1652 = vmatpush1.bf16.msra.mxu0 %v1284
    %1653 = vmatprep.subr.bf16.mxu0 %v1289
    %1654 = vmatpush1.bf16.msra.mxu0 %v1288
    %1655 = vmatprep.subr.bf16.mxu0 0
    %1656 = vmatpush1.bf16.msra.mxu0 0
    %1657 = vmatprep.subr.bf16.mxu0 0
    %1658 = vmatpush1.bf16.msra.mxu0 0
    %1659 = vmatprep.subr.bf16.mxu0 0
    %1660 = vmatpush1.bf16.msra.mxu0 0
    %1661 = vmatprep.subr.bf16.mxu0 0
    %1662 = vmatpush1.bf16.msra.mxu0 0
    %1663 = vmatprep.subr.bf16.mxu0 0
    %1664 = vmatpush1.bf16.msra.mxu0 0
    %1665 = vmatprep.subr.bf16.mxu0 0
    %1666 = vmatpush1.bf16.msra.mxu0 0
    %1667 = vmatprep.subr.bf16.mxu0 0
    %1668 = vmatpush1.bf16.msra.mxu0 0
    %1669 = vmatprep.subr.bf16.mxu0 0
    %1670 = vmatpush1.bf16.msra.mxu0 0
    %1671 = vmatprep.mubr.bf16.mxu0 0
    %1672 = vmatmul.mubr.bf16.gmra.mrb[0].mxu0 %v388
    %v1673 = vpop.f32.mrb[0].mxu0
    %v1674 = vadd.f32 %v1633, %v1673
    %v1675 = vpop.f32.mrb[0].mxu0
    %v1676 = vadd.f32 %v1635, %v1675
    %v1677 = vpop.f32.mrb[0].mxu0
    %v1678 = vpop.f32.mrb[0].mxu0
    %1679 = vdwg.mxu0
    %1680 = vmatprep.subr.bf16.mxu0 %v1071
    %1681 = vmatpush1.bf16.msra.mxu0 %v1070
    %1682 = vmatprep.subr.bf16.mxu0 %v1075
    %1683 = vmatpush1.bf16.msra.mxu0 %v1074
    %1684 = vmatprep.subr.bf16.mxu0 %v1079
    %1685 = vmatpush1.bf16.msra.mxu0 %v1078
    %1686 = vmatprep.subr.bf16.mxu0 %v1083
    %1687 = vmatpush1.bf16.msra.mxu0 %v1082
    %1688 = vmatprep.subr.bf16.mxu0 %v1087
    %1689 = vmatpush1.bf16.msra.mxu0 %v1086
    %1690 = vmatprep.subr.bf16.mxu0 %v1091
    %1691 = vmatpush1.bf16.msra.mxu0 %v1090
    %1692 = vmatprep.subr.bf16.mxu0 %v1095
    %1693 = vmatpush1.bf16.msra.mxu0 %v1094
    %1694 = vmatprep.subr.bf16.mxu0 %v1099
    %1695 = vmatpush1.bf16.msra.mxu0 %v1098
    %1696 = vmatprep.subr.bf16.mxu0 %v1103
    %1697 = vmatpush1.bf16.msra.mxu0 %v1102
    %1698 = vmatprep.subr.bf16.mxu0 %v1107
    %1699 = vmatpush1.bf16.msra.mxu0 %v1106
    %1700 = vmatprep.subr.bf16.mxu0 %v1111
    %1701 = vmatpush1.bf16.msra.mxu0 %v1110
    %1702 = vmatprep.subr.bf16.mxu0 %v1115
    %1703 = vmatpush1.bf16.msra.mxu0 %v1114
    %1704 = vmatprep.subr.bf16.mxu0 %v1119
    %1705 = vmatpush1.bf16.msra.mxu0 %v1118
    %1706 = vmatprep.subr.bf16.mxu0 %v1123
    %1707 = vmatpush1.bf16.msra.mxu0 %v1122
    %1708 = vmatprep.subr.bf16.mxu0 %v1127
    %1709 = vmatpush1.bf16.msra.mxu0 %v1126
    %1710 = vmatprep.subr.bf16.mxu0 %v1131
    %1711 = vmatpush1.bf16.msra.mxu0 %v1130
    %1712 = vmatprep.mubr.bf16.mxu0 %v383
    %1713 = vmatmul.mubr.bf16.gmra.mrb[0].mxu0 %v382
    %v1714 = vpop.f32.mrb[0].mxu0
    %v1715 = vadd.f32 %v362, %v1714
    %v1716 = vpop.f32.mrb[0].mxu0
    %v1717 = vadd.f32 %v366, %v1716
    %v1718 = vpop.f32.mrb[0].mxu0
    %v1719 = vpop.f32.mrb[0].mxu0
    %1720 = vdwg.mxu0
    %1721 = vmatprep.subr.bf16.mxu0 %v1135
    %1722 = vmatpush1.bf16.msra.mxu0 %v1134
    %1723 = vmatprep.subr.bf16.mxu0 %v1139
    %1724 = vmatpush1.bf16.msra.mxu0 %v1138
    %1725 = vmatprep.subr.bf16.mxu0 %v1143
    %1726 = vmatpush1.bf16.msra.mxu0 %v1142
    %1727 = vmatprep.subr.bf16.mxu0 %v1147
    %1728 = vmatpush1.bf16.msra.mxu0 %v1146
    %1729 = vmatprep.subr.bf16.mxu0 %v1151
    %1730 = vmatpush1.bf16.msra.mxu0 %v1150
    %1731 = vmatprep.subr.bf16.mxu0 %v1155
    %1732 = vmatpush1.bf16.msra.mxu0 %v1154
    %1733 = vmatprep.subr.bf16.mxu0 %v1159
    %1734 = vmatpush1.bf16.msra.mxu0 %v1158
    %1735 = vmatprep.subr.bf16.mxu0 %v1163
    %1736 = vmatpush1.bf16.msra.mxu0 %v1162
    %1737 = vmatprep.subr.bf16.mxu0 %v1167
    %1738 = vmatpush1.bf16.msra.mxu0 %v1166
    %1739 = vmatprep.subr.bf16.mxu0 %v1171
    %1740 = vmatpush1.bf16.msra.mxu0 %v1170
    %1741 = vmatprep.subr.bf16.mxu0 %v1175
    %1742 = vmatpush1.bf16.msra.mxu0 %v1174
    %1743 = vmatprep.subr.bf16.mxu0 %v1179
    %1744 = vmatpush1.bf16.msra.mxu0 %v1178
    %1745 = vmatprep.subr.bf16.mxu0 %v1183
    %1746 = vmatpush1.bf16.msra.mxu0 %v1182
    %1747 = vmatprep.subr.bf16.mxu0 %v1187
    %1748 = vmatpush1.bf16.msra.mxu0 %v1186
    %1749 = vmatprep.subr.bf16.mxu0 %v1191
    %1750 = vmatpush1.bf16.msra.mxu0 %v1190
    %1751 = vmatprep.subr.bf16.mxu0 %v1195
    %1752 = vmatpush1.bf16.msra.mxu0 %v1194
    %1753 = vmatprep.mubr.bf16.mxu0 %v385
    %1754 = vmatmul.mubr.bf16.gmra.mrb[0].mxu0 %v384
    %v1755 = vpop.f32.mrb[0].mxu0
    %v1756 = vadd.f32 %v1715, %v1755
    %v1757 = vpop.f32.mrb[0].mxu0
    %v1758 = vadd.f32 %v1717, %v1757
    %v1759 = vpop.f32.mrb[0].mxu0
    %v1760 = vpop.f32.mrb[0].mxu0
    %1761 = vdwg.mxu0
    %1762 = vmatprep.subr.bf16.mxu0 %v1199
    %1763 = vmatpush1.bf16.msra.mxu0 %v1198
    %1764 = vmatprep.subr.bf16.mxu0 %v1203
    %1765 = vmatpush1.bf16.msra.mxu0 %v1202
    %1766 = vmatprep.subr.bf16.mxu0 %v1207
    %1767 = vmatpush1.bf16.msra.mxu0 %v1206
    %1768 = vmatprep.subr.bf16.mxu0 %v1211
    %1769 = vmatpush1.bf16.msra.mxu0 %v1210
    %1770 = vmatprep.subr.bf16.mxu0 %v1215
    %1771 = vmatpush1.bf16.msra.mxu0 %v1214
    %1772 = vmatprep.subr.bf16.mxu0 %v1219
    %1773 = vmatpush1.bf16.msra.mxu0 %v1218
    %1774 = vmatprep.subr.bf16.mxu0 %v1223
    %1775 = vmatpush1.bf16.msra.mxu0 %v1222
    %1776 = vmatprep.subr.bf16.mxu0 %v1227
    %1777 = vmatpush1.bf16.msra.mxu0 %v1226
    %1778 = vmatprep.subr.bf16.mxu0 %v1231
    %1779 = vmatpush1.bf16.msra.mxu0 %v1230
    %1780 = vmatprep.subr.bf16.mxu0 %v1235
    %1781 = vmatpush1.bf16.msra.mxu0 %v1234
    %1782 = vmatprep.subr.bf16.mxu0 %v1239
    %1783 = vmatpush1.bf16.msra.mxu0 %v1238
    %1784 = vmatprep.subr.bf16.mxu0 %v1243
    %1785 = vmatpush1.bf16.msra.mxu0 %v1242
    %1786 = vmatprep.subr.bf16.mxu0 %v1247
    %1787 = vmatpush1.bf16.msra.mxu0 %v1246
    %1788 = vmatprep.subr.bf16.mxu0 %v1251
    %1789 = vmatpush1.bf16.msra.mxu0 %v1250
    %1790 = vmatprep.subr.bf16.mxu0 %v1255
    %1791 = vmatpush1.bf16.msra.mxu0 %v1254
    %1792 = vmatprep.subr.bf16.mxu0 %v1259
    %1793 = vmatpush1.bf16.msra.mxu0 %v1258
    %1794 = vmatprep.mubr.bf16.mxu0 %v387
    %1795 = vmatmul.mubr.bf16.gmra.mrb[0].mxu0 %v386
    %v1796 = vpop.f32.mrb[0].mxu0
    %v1797 = vadd.f32 %v1756, %v1796
    %v1798 = vpop.f32.mrb[0].mxu0
    %v1799 = vadd.f32 %v1758, %v1798
    %v1800 = vpop.f32.mrb[0].mxu0
    %v1801 = vpop.f32.mrb[0].mxu0
    %1802 = vdwg.mxu0
    %1803 = vmatprep.subr.bf16.mxu0 %v1263
    %1804 = vmatpush1.bf16.msra.mxu0 %v1262
    %1805 = vmatprep.subr.bf16.mxu0 %v1267
    %1806 = vmatpush1.bf16.msra.mxu0 %v1266
    %1807 = vmatprep.subr.bf16.mxu0 %v1271
    %1808 = vmatpush1.bf16.msra.mxu0 %v1270
    %1809 = vmatprep.subr.bf16.mxu0 %v1275
    %1810 = vmatpush1.bf16.msra.mxu0 %v1274
    %1811 = vmatprep.subr.bf16.mxu0 %v1279
    %1812 = vmatpush1.bf16.msra.mxu0 %v1278
    %1813 = vmatprep.subr.bf16.mxu0 %v1283
    %1814 = vmatpush1.bf16.msra.mxu0 %v1282
    %1815 = vmatprep.subr.bf16.mxu0 %v1287
    %1816 = vmatpush1.bf16.msra.mxu0 %v1286
    %1817 = vmatprep.subr.bf16.mxu0 %v1291
    %1818 = vmatpush1.bf16.msra.mxu0 %v1290
    %1819 = vmatprep.subr.bf16.mxu0 0
    %1820 = vmatpush1.bf16.msra.mxu0 0
    %1821 = vmatprep.subr.bf16.mxu0 0
    %1822 = vmatpush1.bf16.msra.mxu0 0
    %1823 = vmatprep.subr.bf16.mxu0 0
    %1824 = vmatpush1.bf16.msra.mxu0 0
    %1825 = vmatprep.subr.bf16.mxu0 0
    %1826 = vmatpush1.bf16.msra.mxu0 0
    %1827 = vmatprep.subr.bf16.mxu0 0
    %1828 = vmatpush1.bf16.msra.mxu0 0
    %1829 = vmatprep.subr.bf16.mxu0 0
    %1830 = vmatpush1.bf16.msra.mxu0 0
    %1831 = vmatprep.subr.bf16.mxu0 0
    %1832 = vmatpush1.bf16.msra.mxu0 0
    %1833 = vmatprep.subr.bf16.mxu0 0
    %1834 = vmatpush1.bf16.msra.mxu0 0
    %1835 = vmatprep.mubr.bf16.mxu0 0
    %1836 = vmatmul.mubr.bf16.gmra.mrb[0].mxu0 %v388
    %v1837 = vpop.f32.mrb[0].mxu0
    %v1838 = vadd.f32 %v1797, %v1837
    %v1839 = vpop.f32.mrb[0].mxu0
    %v1840 = vadd.f32 %v1799, %v1839
    %v1841 = vpop.f32.mrb[0].mxu0
    %v1842 = vpop.f32.mrb[0].mxu0
    %1843 = vdwg.mxu0
    %v1844 = vmax.f32 %v1674, 0.0
    %v1845 = vmax.f32 %v1676, 0.0
    %v1846 = vmax.f32 %v1838, 0.0
    %v1847 = vmax.f32 %v1840, 0.0
    %v1848 = vpack.c.bf16 %v1844, %v1844
    %v1849 = vpack.c.bf16 %v1845, %v1845
    %v1850 = vpack.c.bf16 %v1846, %v1846
    %v1851 = vpack.c.bf16 %v1847, %v1847
    %v1852 = vld [vmem:[#allocation8] sm:$0xff]
    %v1853 = vld [vmem:[#allocation8 + $0x8] sm:$0xff]
    %v1854 = vld [vmem:[#allocation8 + $0x10] sm:$0xff]
    %v1855 = vld [vmem:[#allocation8 + $0x18] sm:$0xff]
    %v1856 = vld [vmem:[#allocation8 + $0x20] sm:$0xff]
    %v1857 = vld [vmem:[#allocation8 + $0x28] sm:$0xff]
    %v1858 = vld [vmem:[#allocation8 + $0x30] sm:$0xff]
    %v1859 = vld [vmem:[#allocation8 + $0x38] sm:$0xff]
    %v1860 = vld [vmem:[#allocation8 + $0x40] sm:$0xff]
    %v1861 = vld [vmem:[#allocation8 + $0x48] sm:$0xff]
    %v1862 = vld [vmem:[#allocation8 + $0x50] sm:$0xff]
    %v1863 = vld [vmem:[#allocation8 + $0x58] sm:$0xff]
    %v1864 = vld [vmem:[#allocation8 + $0x60] sm:$0xff]
    %v1865 = vld [vmem:[#allocation8 + $0x68] sm:$0xff]
    %v1866 = vld [vmem:[#allocation8 + $0x70] sm:$0xff]
    %v1867 = vld [vmem:[#allocation8 + $0x78] sm:$0xff]
    %v1868 = vld [vmem:[#allocation8 + $0x80] sm:$0xff]
    %v1869 = vld [vmem:[#allocation8 + $0x88] sm:$0xff]
    %v1870 = vld [vmem:[#allocation8 + $0x90] sm:$0xff]
    %v1871 = vld [vmem:[#allocation8 + $0x98] sm:$0xff]
    %v1872 = vld [vmem:[#allocation8 + $0xa0] sm:$0xff]
    %v1873 = vld [vmem:[#allocation8 + $0xa8] sm:$0xff]
    %v1874 = vld [vmem:[#allocation8 + $0xb0] sm:$0xff]
    %v1875 = vld [vmem:[#allocation8 + $0xb8] sm:$0xff]
    %v1876 = vld [vmem:[#allocation8 + $0xc0] sm:$0xff]
    %v1877 = vld [vmem:[#allocation8 + $0xc8] sm:$0xff]
    %v1878 = vld [vmem:[#allocation8 + $0xd0] sm:$0xff]
    %v1879 = vld [vmem:[#allocation8 + $0xd8] sm:$0xff]
    %v1880 = vld [vmem:[#allocation8 + $0xe0] sm:$0xff]
    %v1881 = vld [vmem:[#allocation8 + $0xe8] sm:$0xff]
    %v1882 = vld [vmem:[#allocation8 + $0xf0] sm:$0xff]
    %v1883 = vld [vmem:[#allocation8 + $0xf8] sm:$0xff]
    %v1884 = vld [vmem:[#allocation8 + $0x100] sm:$0xff]
    %v1885 = vld [vmem:[#allocation8 + $0x108] sm:$0xff]
    %v1886 = vld [vmem:[#allocation8 + $0x110] sm:$0xff]
    %v1887 = vld [vmem:[#allocation8 + $0x118] sm:$0xff]
    %v1888 = vld [vmem:[#allocation8 + $0x120] sm:$0xff]
    %v1889 = vld [vmem:[#allocation8 + $0x128] sm:$0xff]
    %v1890 = vld [vmem:[#allocation8 + $0x130] sm:$0xff]
    %v1891 = vld [vmem:[#allocation8 + $0x138] sm:$0xff]
    %v1892 = vld [vmem:[#allocation8 + $0x140] sm:$0xff]
    %v1893 = vld [vmem:[#allocation8 + $0x148] sm:$0xff]
    %v1894 = vld [vmem:[#allocation8 + $0x150] sm:$0xff]
    %v1895 = vld [vmem:[#allocation8 + $0x158] sm:$0xff]
    %v1896 = vld [vmem:[#allocation8 + $0x160] sm:$0xff]
    %v1897 = vld [vmem:[#allocation8 + $0x168] sm:$0xff]
    %v1898 = vld [vmem:[#allocation8 + $0x170] sm:$0xff]
    %v1899 = vld [vmem:[#allocation8 + $0x178] sm:$0xff]
    %v1900 = vld [vmem:[#allocation8 + $0x180] sm:$0xff]
    %v1901 = vld [vmem:[#allocation8 + $0x188] sm:$0xff]
    %v1902 = vld [vmem:[#allocation8 + $0x190] sm:$0xff]
    %v1903 = vld [vmem:[#allocation8 + $0x198] sm:$0xff]
    %v1904 = vld [vmem:[#allocation8 + $0x1a0] sm:$0xff]
    %v1905 = vld [vmem:[#allocation8 + $0x1a8] sm:$0xff]
    %v1906 = vld [vmem:[#allocation8 + $0x1b0] sm:$0xff]
    %v1907 = vld [vmem:[#allocation8 + $0x1b8] sm:$0xff]
    %v1908 = vld [vmem:[#allocation8 + $0x1c0] sm:$0xff]
    %v1909 = vld [vmem:[#allocation8 + $0x1c8] sm:$0xff]
    %v1910 = vld [vmem:[#allocation8 + $0x1d0] sm:$0xff]
    %v1911 = vld [vmem:[#allocation8 + $0x1d8] sm:$0xff]
    %v1912 = vld [vmem:[#allocation8 + $0x1e0] sm:$0xff]
    %v1913 = vld [vmem:[#allocation8 + $0x1e8] sm:$0xff]
    %v1914 = vld [vmem:[#allocation8 + $0x1f0] sm:$0xff]
    %v1915 = vld [vmem:[#allocation8 + $0x1f8] sm:$0xff]
    %v1916 = vld [vmem:[%s5] sm:$0x3]
    %v1918 = vlaneseq
    %v1919 = vshrl.u32 %v1918, 7
    %v1920 = vsub.s32 0, %v1919
    %v1921 = vrot.slane %v1916, %v1920
    %v1922 = vlaneseq
    %v1923 = vshrl.u32 %v1922, 7
    %v1924 = vsub.s32 1, %v1923
    %v1925 = vrot.slane %v1916, %v1924
    %v1992 = vunpack.c.l.b16 %v1852
    %v1993 = vunpack.c.h.b16 %v1852
    %v1994 = vunpack.c.l.b16 %v1853
    %v1995 = vunpack.c.h.b16 %v1853
    %v1996 = vunpack.c.l.b16 %v1854
    %v1997 = vunpack.c.h.b16 %v1854
    %v1998 = vunpack.c.l.b16 %v1855
    %v1999 = vunpack.c.h.b16 %v1855
    %v2000 = vunpack.c.l.b16 %v1856
    %v2001 = vunpack.c.h.b16 %v1856
    %v2002 = vunpack.c.l.b16 %v1857
    %v2003 = vunpack.c.h.b16 %v1857
    %v2004 = vunpack.c.l.b16 %v1858
    %v2005 = vunpack.c.h.b16 %v1858
    %v2006 = vunpack.c.l.b16 %v1859
    %v2007 = vunpack.c.h.b16 %v1859
    %v2008 = vunpack.c.l.b16 %v1860
    %v2009 = vunpack.c.h.b16 %v1860
    %v2010 = vunpack.c.l.b16 %v1861
    %v2011 = vunpack.c.h.b16 %v1861
    %v2012 = vunpack.c.l.b16 %v1862
    %v2013 = vunpack.c.h.b16 %v1862
    %v2014 = vunpack.c.l.b16 %v1863
    %v2015 = vunpack.c.h.b16 %v1863
    %v2016 = vunpack.c.l.b16 %v1864
    %v2017 = vunpack.c.h.b16 %v1864
    %v2018 = vunpack.c.l.b16 %v1865
    %v2019 = vunpack.c.h.b16 %v1865
    %v2020 = vunpack.c.l.b16 %v1866
    %v2021 = vunpack.c.h.b16 %v1866
    %v2022 = vunpack.c.l.b16 %v1867
    %v2023 = vunpack.c.h.b16 %v1867
    %v2024 = vunpack.c.l.b16 %v1868
    %v2025 = vunpack.c.h.b16 %v1868
    %v2026 = vunpack.c.l.b16 %v1869
    %v2027 = vunpack.c.h.b16 %v1869
    %v2028 = vunpack.c.l.b16 %v1870
    %v2029 = vunpack.c.h.b16 %v1870
    %v2030 = vunpack.c.l.b16 %v1871
    %v2031 = vunpack.c.h.b16 %v1871
    %v2032 = vunpack.c.l.b16 %v1872
    %v2033 = vunpack.c.h.b16 %v1872
    %v2034 = vunpack.c.l.b16 %v1873
    %v2035 = vunpack.c.h.b16 %v1873
    %v2036 = vunpack.c.l.b16 %v1874
    %v2037 = vunpack.c.h.b16 %v1874
    %v2038 = vunpack.c.l.b16 %v1875
    %v2039 = vunpack.c.h.b16 %v1875
    %v2040 = vunpack.c.l.b16 %v1876
    %v2041 = vunpack.c.h.b16 %v1876
    %v2042 = vunpack.c.l.b16 %v1877
    %v2043 = vunpack.c.h.b16 %v1877
    %v2044 = vunpack.c.l.b16 %v1878
    %v2045 = vunpack.c.h.b16 %v1878
    %v2046 = vunpack.c.l.b16 %v1879
    %v2047 = vunpack.c.h.b16 %v1879
    %v2048 = vunpack.c.l.b16 %v1880
    %v2049 = vunpack.c.h.b16 %v1880
    %v2050 = vunpack.c.l.b16 %v1881
    %v2051 = vunpack.c.h.b16 %v1881
    %v2052 = vunpack.c.l.b16 %v1882
    %v2053 = vunpack.c.h.b16 %v1882
    %v2054 = vunpack.c.l.b16 %v1883
    %v2055 = vunpack.c.h.b16 %v1883
    %v2056 = vunpack.c.l.b16 %v1884
    %v2057 = vunpack.c.h.b16 %v1884
    %v2058 = vunpack.c.l.b16 %v1885
    %v2059 = vunpack.c.h.b16 %v1885
    %v2060 = vunpack.c.l.b16 %v1886
    %v2061 = vunpack.c.h.b16 %v1886
    %v2062 = vunpack.c.l.b16 %v1887
    %v2063 = vunpack.c.h.b16 %v1887
    %v2064 = vunpack.c.l.b16 %v1888
    %v2065 = vunpack.c.h.b16 %v1888
    %v2066 = vunpack.c.l.b16 %v1889
    %v2067 = vunpack.c.h.b16 %v1889
    %v2068 = vunpack.c.l.b16 %v1890
    %v2069 = vunpack.c.h.b16 %v1890
    %v2070 = vunpack.c.l.b16 %v1891
    %v2071 = vunpack.c.h.b16 %v1891
    %v2072 = vunpack.c.l.b16 %v1892
    %v2073 = vunpack.c.h.b16 %v1892
    %v2074 = vunpack.c.l.b16 %v1893
    %v2075 = vunpack.c.h.b16 %v1893
    %v2076 = vunpack.c.l.b16 %v1894
    %v2077 = vunpack.c.h.b16 %v1894
    %v2078 = vunpack.c.l.b16 %v1895
    %v2079 = vunpack.c.h.b16 %v1895
    %v2080 = vunpack.c.l.b16 %v1896
    %v2081 = vunpack.c.h.b16 %v1896
    %v2082 = vunpack.c.l.b16 %v1897
    %v2083 = vunpack.c.h.b16 %v1897
    %v2084 = vunpack.c.l.b16 %v1898
    %v2085 = vunpack.c.h.b16 %v1898
    %v2086 = vunpack.c.l.b16 %v1899
    %v2087 = vunpack.c.h.b16 %v1899
    %v2088 = vunpack.c.l.b16 %v1900
    %v2089 = vunpack.c.h.b16 %v1900
    %v2090 = vunpack.c.l.b16 %v1901
    %v2091 = vunpack.c.h.b16 %v1901
    %v2092 = vunpack.c.l.b16 %v1902
    %v2093 = vunpack.c.h.b16 %v1902
    %v2094 = vunpack.c.l.b16 %v1903
    %v2095 = vunpack.c.h.b16 %v1903
    %v2096 = vunpack.c.l.b16 %v1904
    %v2097 = vunpack.c.h.b16 %v1904
    %v2098 = vunpack.c.l.b16 %v1905
    %v2099 = vunpack.c.h.b16 %v1905
    %v2100 = vunpack.c.l.b16 %v1906
    %v2101 = vunpack.c.h.b16 %v1906
    %v2102 = vunpack.c.l.b16 %v1907
    %v2103 = vunpack.c.h.b16 %v1907
    %v2104 = vunpack.c.l.b16 %v1908
    %v2105 = vunpack.c.h.b16 %v1908
    %v2106 = vunpack.c.l.b16 %v1909
    %v2107 = vunpack.c.h.b16 %v1909
    %v2108 = vunpack.c.l.b16 %v1910
    %v2109 = vunpack.c.h.b16 %v1910
    %v2110 = vunpack.c.l.b16 %v1911
    %v2111 = vunpack.c.h.b16 %v1911
    %v2112 = vunpack.c.l.b16 %v1912
    %v2113 = vunpack.c.h.b16 %v1912
    %v2114 = vunpack.c.l.b16 %v1913
    %v2115 = vunpack.c.h.b16 %v1913
    %v2116 = vunpack.c.l.b16 %v1914
    %v2117 = vunpack.c.h.b16 %v1914
    %v2118 = vunpack.c.l.b16 %v1915
    %v2119 = vunpack.c.h.b16 %v1915
    %v2120 = vpack.c.b16 %v1994, %v1992
    %v2121 = vpack.c.b16 %v1995, %v1993
    %v2122 = vpack.c.b16 %v1998, %v1996
    %v2123 = vpack.c.b16 %v1999, %v1997
    %v2124 = vpack.c.b16 %v2002, %v2000
    %v2125 = vpack.c.b16 %v2003, %v2001
    %v2126 = vpack.c.b16 %v2006, %v2004
    %v2127 = vpack.c.b16 %v2007, %v2005
    %v2128 = vpack.c.b16 %v2010, %v2008
    %v2129 = vpack.c.b16 %v2011, %v2009
    %v2130 = vpack.c.b16 %v2014, %v2012
    %v2131 = vpack.c.b16 %v2015, %v2013
    %v2132 = vpack.c.b16 %v2018, %v2016
    %v2133 = vpack.c.b16 %v2019, %v2017
    %v2134 = vpack.c.b16 %v2022, %v2020
    %v2135 = vpack.c.b16 %v2023, %v2021
    %v2136 = vpack.c.b16 %v2026, %v2024
    %v2137 = vpack.c.b16 %v2027, %v2025
    %v2138 = vpack.c.b16 %v2030, %v2028
    %v2139 = vpack.c.b16 %v2031, %v2029
    %v2140 = vpack.c.b16 %v2034, %v2032
    %v2141 = vpack.c.b16 %v2035, %v2033
    %v2142 = vpack.c.b16 %v2038, %v2036
    %v2143 = vpack.c.b16 %v2039, %v2037
    %v2144 = vpack.c.b16 %v2042, %v2040
    %v2145 = vpack.c.b16 %v2043, %v2041
    %v2146 = vpack.c.b16 %v2046, %v2044
    %v2147 = vpack.c.b16 %v2047, %v2045
    %v2148 = vpack.c.b16 %v2050, %v2048
    %v2149 = vpack.c.b16 %v2051, %v2049
    %v2150 = vpack.c.b16 %v2054, %v2052
    %v2151 = vpack.c.b16 %v2055, %v2053
    %v2152 = vpack.c.b16 %v2058, %v2056
    %v2153 = vpack.c.b16 %v2059, %v2057
    %v2154 = vpack.c.b16 %v2062, %v2060
    %v2155 = vpack.c.b16 %v2063, %v2061
    %v2156 = vpack.c.b16 %v2066, %v2064
    %v2157 = vpack.c.b16 %v2067, %v2065
    %v2158 = vpack.c.b16 %v2070, %v2068
    %v2159 = vpack.c.b16 %v2071, %v2069
    %v2160 = vpack.c.b16 %v2074, %v2072
    %v2161 = vpack.c.b16 %v2075, %v2073
    %v2162 = vpack.c.b16 %v2078, %v2076
    %v2163 = vpack.c.b16 %v2079, %v2077
    %v2164 = vpack.c.b16 %v2082, %v2080
    %v2165 = vpack.c.b16 %v2083, %v2081
    %v2166 = vpack.c.b16 %v2086, %v2084
    %v2167 = vpack.c.b16 %v2087, %v2085
    %v2168 = vpack.c.b16 %v2090, %v2088
    %v2169 = vpack.c.b16 %v2091, %v2089
    %v2170 = vpack.c.b16 %v2094, %v2092
    %v2171 = vpack.c.b16 %v2095, %v2093
    %v2172 = vpack.c.b16 %v2098, %v2096
    %v2173 = vpack.c.b16 %v2099, %v2097
    %v2174 = vpack.c.b16 %v2102, %v2100
    %v2175 = vpack.c.b16 %v2103, %v2101
    %v2176 = vpack.c.b16 %v2106, %v2104
    %v2177 = vpack.c.b16 %v2107, %v2105
    %v2178 = vpack.c.b16 %v2110, %v2108
    %v2179 = vpack.c.b16 %v2111, %v2109
    %v2180 = vpack.c.b16 %v2114, %v2112
    %v2181 = vpack.c.b16 %v2115, %v2113
    %v2182 = vpack.c.b16 %v2118, %v2116
    %v2183 = vpack.c.b16 %v2119, %v2117
    %2248 = vmatprep.subr.bf16.mxu0 %v2121
    %2249 = vmatpush1.bf16.msra.mxu0 %v2120
    %2250 = vmatprep.subr.bf16.mxu0 %v2123
    %2251 = vmatpush1.bf16.msra.mxu0 %v2122
    %2252 = vmatprep.subr.bf16.mxu0 %v2125
    %2253 = vmatpush1.bf16.msra.mxu0 %v2124
    %2254 = vmatprep.subr.bf16.mxu0 %v2127
    %2255 = vmatpush1.bf16.msra.mxu0 %v2126
    %2256 = vmatprep.subr.bf16.mxu0 %v2129
    %2257 = vmatpush1.bf16.msra.mxu0 %v2128
    %2258 = vmatprep.subr.bf16.mxu0 %v2131
    %2259 = vmatpush1.bf16.msra.mxu0 %v2130
    %2260 = vmatprep.subr.bf16.mxu0 %v2133
    %2261 = vmatpush1.bf16.msra.mxu0 %v2132
    %2262 = vmatprep.subr.bf16.mxu0 %v2135
    %2263 = vmatpush1.bf16.msra.mxu0 %v2134
    %2264 = vmatprep.subr.bf16.mxu0 %v2137
    %2265 = vmatpush1.bf16.msra.mxu0 %v2136
    %2266 = vmatprep.subr.bf16.mxu0 %v2139
    %2267 = vmatpush1.bf16.msra.mxu0 %v2138
    %2268 = vmatprep.subr.bf16.mxu0 %v2141
    %2269 = vmatpush1.bf16.msra.mxu0 %v2140
    %2270 = vmatprep.subr.bf16.mxu0 %v2143
    %2271 = vmatpush1.bf16.msra.mxu0 %v2142
    %2272 = vmatprep.subr.bf16.mxu0 %v2145
    %2273 = vmatpush1.bf16.msra.mxu0 %v2144
    %2274 = vmatprep.subr.bf16.mxu0 %v2147
    %2275 = vmatpush1.bf16.msra.mxu0 %v2146
    %2276 = vmatprep.subr.bf16.mxu0 %v2149
    %2277 = vmatpush1.bf16.msra.mxu0 %v2148
    %2278 = vmatprep.subr.bf16.mxu0 %v2151
    %2279 = vmatpush1.bf16.msra.mxu0 %v2150
    %2280 = vmatprep.mubr.bf16.mxu0 %v1849
    %2281 = vmatmul.mubr.bf16.gmra.mrb[0].mxu0 %v1848
    %v2282 = vpop.f32.mrb[0].mxu0
    %v2283 = vadd.f32 %v1921, %v2282
    %v2284 = vpop.f32.mrb[0].mxu0
    %v2285 = vadd.f32 %v1925, %v2284
    %v2286 = vpop.f32.mrb[0].mxu0
    %v2287 = vpop.f32.mrb[0].mxu0
    %2288 = vdwg.mxu0
    %2289 = vmatprep.subr.bf16.mxu0 %v2153
    %2290 = vmatpush1.bf16.msra.mxu0 %v2152
    %2291 = vmatprep.subr.bf16.mxu0 %v2155
    %2292 = vmatpush1.bf16.msra.mxu0 %v2154
    %2293 = vmatprep.subr.bf16.mxu0 %v2157
    %2294 = vmatpush1.bf16.msra.mxu0 %v2156
    %2295 = vmatprep.subr.bf16.mxu0 %v2159
    %2296 = vmatpush1.bf16.msra.mxu0 %v2158
    %2297 = vmatprep.subr.bf16.mxu0 %v2161
    %2298 = vmatpush1.bf16.msra.mxu0 %v2160
    %2299 = vmatprep.subr.bf16.mxu0 %v2163
    %2300 = vmatpush1.bf16.msra.mxu0 %v2162
    %2301 = vmatprep.subr.bf16.mxu0 %v2165
    %2302 = vmatpush1.bf16.msra.mxu0 %v2164
    %2303 = vmatprep.subr.bf16.mxu0 %v2167
    %2304 = vmatpush1.bf16.msra.mxu0 %v2166
    %2305 = vmatprep.subr.bf16.mxu0 %v2169
    %2306 = vmatpush1.bf16.msra.mxu0 %v2168
    %2307 = vmatprep.subr.bf16.mxu0 %v2171
    %2308 = vmatpush1.bf16.msra.mxu0 %v2170
    %2309 = vmatprep.subr.bf16.mxu0 %v2173
    %2310 = vmatpush1.bf16.msra.mxu0 %v2172
    %2311 = vmatprep.subr.bf16.mxu0 %v2175
    %2312 = vmatpush1.bf16.msra.mxu0 %v2174
    %2313 = vmatprep.subr.bf16.mxu0 %v2177
    %2314 = vmatpush1.bf16.msra.mxu0 %v2176
    %2315 = vmatprep.subr.bf16.mxu0 %v2179
    %2316 = vmatpush1.bf16.msra.mxu0 %v2178
    %2317 = vmatprep.subr.bf16.mxu0 %v2181
    %2318 = vmatpush1.bf16.msra.mxu0 %v2180
    %2319 = vmatprep.subr.bf16.mxu0 %v2183
    %2320 = vmatpush1.bf16.msra.mxu0 %v2182
    %2321 = vmatprep.mubr.bf16.mxu0 %v1851
    %2322 = vmatmul.mubr.bf16.gmra.mrb[0].mxu0 %v1850
    %v2323 = vpop.f32.mrb[0].mxu0
    %v2324 = vadd.f32 %v2283, %v2323
    %v2325 = vpop.f32.mrb[0].mxu0
    %v2326 = vadd.f32 %v2285, %v2325
    %v2327 = vpop.f32.mrb[0].mxu0
    %v2328 = vpop.f32.mrb[0].mxu0
    %2329 = vdwg.mxu0
    %v2330 = vmul.f32 %v2326, 0.5
    %v2331 = vmul.f32 %v2330, 1.442695
    %v2332 = vpow.pop %v2331
    %v2333 = vld [vmem:[#allocation5] sm:$0xff]
    %v2334 = vmul.f32 %v2333, %v2332
    %v2335 = vadd.f32 %v2324, %v2334
    %2336 = vst [vmem:[#allocation14] sm:$0xff] %v2324
    %2337 = vst [vmem:[#allocation16] sm:$0xff] %v2326
    %2338 = vst [vmem:[#allocation17] sm:$0xff] %v2335
    %v2339 = vpack.c.bf16 %v2335, %v2335
    %v2340 = vld [vmem:[#allocation10] sm:$0xff]
    %v2341 = vld [vmem:[#allocation10 + $0x8] sm:$0xff]
    %v2342 = vld [vmem:[#allocation10 + $0x10] sm:$0xff]
    %v2343 = vld [vmem:[#allocation10 + $0x18] sm:$0xff]
    %v2344 = vld [vmem:[#allocation10 + $0x20] sm:$0xff]
    %v2345 = vld [vmem:[#allocation10 + $0x28] sm:$0xff]
    %v2346 = vld [vmem:[#allocation10 + $0x30] sm:$0xff]
    %v2347 = vld [vmem:[#allocation10 + $0x38] sm:$0xff]
    %v2348 = vld [vmem:[#allocation10 + $0x40] sm:$0xff]
    %v2349 = vld [vmem:[#allocation10 + $0x48] sm:$0xff]
    %v2350 = vld [vmem:[#allocation10 + $0x50] sm:$0xff]
    %v2351 = vld [vmem:[#allocation10 + $0x58] sm:$0xff]
    %v2352 = vld [vmem:[#allocation10 + $0x60] sm:$0xff]
    %v2353 = vld [vmem:[#allocation10 + $0x68] sm:$0xff]
    %v2354 = vld [vmem:[#allocation10 + $0x70] sm:$0xff]
    %v2355 = vld [vmem:[#allocation10 + $0x78] sm:$0xff]
    %v2356 = vld [vmem:[#allocation10 + $0x80] sm:$0xff]
    %v2357 = vld [vmem:[#allocation10 + $0x88] sm:$0xff]
    %v2358 = vld [vmem:[#allocation10 + $0x90] sm:$0xff]
    %v2359 = vld [vmem:[#allocation10 + $0x98] sm:$0xff]
    %v2360 = vld [vmem:[#allocation10 + $0xa0] sm:$0xff]
    %v2361 = vld [vmem:[#allocation10 + $0xa8] sm:$0xff]
    %v2362 = vld [vmem:[#allocation10 + $0xb0] sm:$0xff]
    %v2363 = vld [vmem:[#allocation10 + $0xb8] sm:$0xff]
    %v2364 = vld [vmem:[#allocation10 + $0xc0] sm:$0xff]
    %v2365 = vld [vmem:[#allocation10 + $0xc8] sm:$0xff]
    %v2366 = vld [vmem:[#allocation10 + $0xd0] sm:$0xff]
    %v2367 = vld [vmem:[#allocation10 + $0xd8] sm:$0xff]
    %v2368 = vld [vmem:[#allocation10 + $0xe0] sm:$0xff]
    %v2369 = vld [vmem:[#allocation10 + $0xe8] sm:$0xff]
    %v2370 = vld [vmem:[#allocation10 + $0xf0] sm:$0xff]
    %v2371 = vld [vmem:[#allocation10 + $0xf8] sm:$0xff]
    %v2372 = vld [vmem:[%s7] sm:$0xf]
    %v2374 = vlaneseq
    %v2375 = vshrl.u32 %v2374, 7
    %v2376 = vsub.s32 0, %v2375
    %v2377 = vrot.slane %v2372, %v2376
    %v2378 = vlaneseq
    %v2379 = vshrl.u32 %v2378, 7
    %v2380 = vsub.s32 1, %v2379
    %v2381 = vrot.slane %v2372, %v2380
    %v2382 = vlaneseq
    %v2383 = vshrl.u32 %v2382, 7
    %v2384 = vsub.s32 2, %v2383
    %v2385 = vrot.slane %v2372, %v2384
    %v2386 = vlaneseq
    %v2387 = vshrl.u32 %v2386, 7
    %v2388 = vsub.s32 3, %v2387
    %v2389 = vrot.slane %v2372, %v2388
    %v2426 = vunpack.c.l.b16 %v2340
    %v2427 = vunpack.c.h.b16 %v2340
    %v2428 = vunpack.c.l.b16 %v2341
    %v2429 = vunpack.c.h.b16 %v2341
    %v2430 = vunpack.c.l.b16 %v2342
    %v2431 = vunpack.c.h.b16 %v2342
    %v2432 = vunpack.c.l.b16 %v2343
    %v2433 = vunpack.c.h.b16 %v2343
    %v2434 = vunpack.c.l.b16 %v2344
    %v2435 = vunpack.c.h.b16 %v2344
    %v2436 = vunpack.c.l.b16 %v2345
    %v2437 = vunpack.c.h.b16 %v2345
    %v2438 = vunpack.c.l.b16 %v2346
    %v2439 = vunpack.c.h.b16 %v2346
    %v2440 = vunpack.c.l.b16 %v2347
    %v2441 = vunpack.c.h.b16 %v2347
    %v2442 = vunpack.c.l.b16 %v2348
    %v2443 = vunpack.c.h.b16 %v2348
    %v2444 = vunpack.c.l.b16 %v2349
    %v2445 = vunpack.c.h.b16 %v2349
    %v2446 = vunpack.c.l.b16 %v2350
    %v2447 = vunpack.c.h.b16 %v2350
    %v2448 = vunpack.c.l.b16 %v2351
    %v2449 = vunpack.c.h.b16 %v2351
    %v2450 = vunpack.c.l.b16 %v2352
    %v2451 = vunpack.c.h.b16 %v2352
    %v2452 = vunpack.c.l.b16 %v2353
    %v2453 = vunpack.c.h.b16 %v2353
    %v2454 = vunpack.c.l.b16 %v2354
    %v2455 = vunpack.c.h.b16 %v2354
    %v2456 = vunpack.c.l.b16 %v2355
    %v2457 = vunpack.c.h.b16 %v2355
    %v2458 = vunpack.c.l.b16 %v2356
    %v2459 = vunpack.c.h.b16 %v2356
    %v2460 = vunpack.c.l.b16 %v2357
    %v2461 = vunpack.c.h.b16 %v2357
    %v2462 = vunpack.c.l.b16 %v2358
    %v2463 = vunpack.c.h.b16 %v2358
    %v2464 = vunpack.c.l.b16 %v2359
    %v2465 = vunpack.c.h.b16 %v2359
    %v2466 = vunpack.c.l.b16 %v2360
    %v2467 = vunpack.c.h.b16 %v2360
    %v2468 = vunpack.c.l.b16 %v2361
    %v2469 = vunpack.c.h.b16 %v2361
    %v2470 = vunpack.c.l.b16 %v2362
    %v2471 = vunpack.c.h.b16 %v2362
    %v2472 = vunpack.c.l.b16 %v2363
    %v2473 = vunpack.c.h.b16 %v2363
    %v2474 = vunpack.c.l.b16 %v2364
    %v2475 = vunpack.c.h.b16 %v2364
    %v2476 = vunpack.c.l.b16 %v2365
    %v2477 = vunpack.c.h.b16 %v2365
    %v2478 = vunpack.c.l.b16 %v2366
    %v2479 = vunpack.c.h.b16 %v2366
    %v2480 = vunpack.c.l.b16 %v2367
    %v2481 = vunpack.c.h.b16 %v2367
    %v2482 = vunpack.c.l.b16 %v2368
    %v2483 = vunpack.c.h.b16 %v2368
    %v2484 = vunpack.c.l.b16 %v2369
    %v2485 = vunpack.c.h.b16 %v2369
    %v2486 = vunpack.c.l.b16 %v2370
    %v2487 = vunpack.c.h.b16 %v2370
    %v2488 = vunpack.c.l.b16 %v2371
    %v2489 = vunpack.c.h.b16 %v2371
    %v2490 = vpack.c.b16 %v2430, %v2426
    %v2491 = vpack.c.b16 %v2431, %v2427
    %v2492 = vpack.c.b16 %v2432, %v2428
    %v2493 = vpack.c.b16 %v2433, %v2429
    %v2494 = vpack.c.b16 %v2438, %v2434
    %v2495 = vpack.c.b16 %v2439, %v2435
    %v2496 = vpack.c.b16 %v2440, %v2436
    %v2497 = vpack.c.b16 %v2441, %v2437
    %v2498 = vpack.c.b16 %v2446, %v2442
    %v2499 = vpack.c.b16 %v2447, %v2443
    %v2500 = vpack.c.b16 %v2448, %v2444
    %v2501 = vpack.c.b16 %v2449, %v2445
    %v2502 = vpack.c.b16 %v2454, %v2450
    %v2503 = vpack.c.b16 %v2455, %v2451
    %v2504 = vpack.c.b16 %v2456, %v2452
    %v2505 = vpack.c.b16 %v2457, %v2453
    %v2506 = vpack.c.b16 %v2462, %v2458
    %v2507 = vpack.c.b16 %v2463, %v2459
    %v2508 = vpack.c.b16 %v2464, %v2460
    %v2509 = vpack.c.b16 %v2465, %v2461
    %v2510 = vpack.c.b16 %v2470, %v2466
    %v2511 = vpack.c.b16 %v2471, %v2467
    %v2512 = vpack.c.b16 %v2472, %v2468
    %v2513 = vpack.c.b16 %v2473, %v2469
    %v2514 = vpack.c.b16 %v2478, %v2474
    %v2515 = vpack.c.b16 %v2479, %v2475
    %v2516 = vpack.c.b16 %v2480, %v2476
    %v2517 = vpack.c.b16 %v2481, %v2477
    %v2518 = vpack.c.b16 %v2486, %v2482
    %v2519 = vpack.c.b16 %v2487, %v2483
    %v2520 = vpack.c.b16 %v2488, %v2484
    %v2521 = vpack.c.b16 %v2489, %v2485
    %2554 = vmatprep.subr.bf16.mxu0 %v2491
    %2555 = vmatpush1.bf16.msra.mxu0 %v2490
    %2556 = vmatprep.subr.bf16.mxu0 %v2495
    %2557 = vmatpush1.bf16.msra.mxu0 %v2494
    %2558 = vmatprep.subr.bf16.mxu0 %v2499
    %2559 = vmatpush1.bf16.msra.mxu0 %v2498
    %2560 = vmatprep.subr.bf16.mxu0 %v2503
    %2561 = vmatpush1.bf16.msra.mxu0 %v2502
    %2562 = vmatprep.subr.bf16.mxu0 %v2507
    %2563 = vmatpush1.bf16.msra.mxu0 %v2506
    %2564 = vmatprep.subr.bf16.mxu0 %v2511
    %2565 = vmatpush1.bf16.msra.mxu0 %v2510
    %2566 = vmatprep.subr.bf16.mxu0 %v2515
    %2567 = vmatpush1.bf16.msra.mxu0 %v2514
    %2568 = vmatprep.subr.bf16.mxu0 %v2519
    %2569 = vmatpush1.bf16.msra.mxu0 %v2518
    %2570 = vmatprep.subr.bf16.mxu0 0
    %2571 = vmatpush1.bf16.msra.mxu0 0
    %2572 = vmatprep.subr.bf16.mxu0 0
    %2573 = vmatpush1.bf16.msra.mxu0 0
    %2574 = vmatprep.subr.bf16.mxu0 0
    %2575 = vmatpush1.bf16.msra.mxu0 0
    %2576 = vmatprep.subr.bf16.mxu0 0
    %2577 = vmatpush1.bf16.msra.mxu0 0
    %2578 = vmatprep.subr.bf16.mxu0 0
    %2579 = vmatpush1.bf16.msra.mxu0 0
    %2580 = vmatprep.subr.bf16.mxu0 0
    %2581 = vmatpush1.bf16.msra.mxu0 0
    %2582 = vmatprep.subr.bf16.mxu0 0
    %2583 = vmatpush1.bf16.msra.mxu0 0
    %2584 = vmatprep.subr.bf16.mxu0 0
    %2585 = vmatpush1.bf16.msra.mxu0 0
    %2586 = vmatprep.mubr.bf16.mxu0 0
    %2587 = vmatmul.mubr.bf16.gmra.mrb[0].mxu0 %v2339
    %v2588 = vpop.f32.mrb[0].mxu0
    %v2589 = vadd.f32 %v2377, %v2588
    %v2590 = vpop.f32.mrb[0].mxu0
    %v2591 = vadd.f32 %v2381, %v2590
    %v2592 = vpop.f32.mrb[0].mxu0
    %v2593 = vpop.f32.mrb[0].mxu0
    %2594 = vdwg.mxu0
    %2595 = vmatprep.subr.bf16.mxu0 %v2493
    %2596 = vmatpush1.bf16.msra.mxu0 %v2492
    %2597 = vmatprep.subr.bf16.mxu0 %v2497
    %2598 = vmatpush1.bf16.msra.mxu0 %v2496
    %2599 = vmatprep.subr.bf16.mxu0 %v2501
    %2600 = vmatpush1.bf16.msra.mxu0 %v2500
    %2601 = vmatprep.subr.bf16.mxu0 %v2505
    %2602 = vmatpush1.bf16.msra.mxu0 %v2504
    %2603 = vmatprep.subr.bf16.mxu0 %v2509
    %2604 = vmatpush1.bf16.msra.mxu0 %v2508
    %2605 = vmatprep.subr.bf16.mxu0 %v2513
    %2606 = vmatpush1.bf16.msra.mxu0 %v2512
    %2607 = vmatprep.subr.bf16.mxu0 %v2517
    %2608 = vmatpush1.bf16.msra.mxu0 %v2516
    %2609 = vmatprep.subr.bf16.mxu0 %v2521
    %2610 = vmatpush1.bf16.msra.mxu0 %v2520
    %2611 = vmatprep.subr.bf16.mxu0 0
    %2612 = vmatpush1.bf16.msra.mxu0 0
    %2613 = vmatprep.subr.bf16.mxu0 0
    %2614 = vmatpush1.bf16.msra.mxu0 0
    %2615 = vmatprep.subr.bf16.mxu0 0
    %2616 = vmatpush1.bf16.msra.mxu0 0
    %2617 = vmatprep.subr.bf16.mxu0 0
    %2618 = vmatpush1.bf16.msra.mxu0 0
    %2619 = vmatprep.subr.bf16.mxu0 0
    %2620 = vmatpush1.bf16.msra.mxu0 0
    %2621 = vmatprep.subr.bf16.mxu0 0
    %2622 = vmatpush1.bf16.msra.mxu0 0
    %2623 = vmatprep.subr.bf16.mxu0 0
    %2624 = vmatpush1.bf16.msra.mxu0 0
    %2625 = vmatprep.subr.bf16.mxu0 0
    %2626 = vmatpush1.bf16.msra.mxu0 0
    %2627 = vmatprep.mubr.bf16.mxu0 0
    %2628 = vmatmul.mubr.bf16.gmra.mrb[0].mxu0 %v2339
    %v2629 = vpop.f32.mrb[0].mxu0
    %v2630 = vadd.f32 %v2385, %v2629
    %v2631 = vpop.f32.mrb[0].mxu0
    %v2632 = vadd.f32 %v2389, %v2631
    %v2633 = vpop.f32.mrb[0].mxu0
    %v2634 = vpop.f32.mrb[0].mxu0
    %2635 = vdwg.mxu0
    %v2636 = vmax.f32 %v2589, 0.0
    %v2637 = vmax.f32 %v2591, 0.0
    %v2638 = vmax.f32 %v2630, 0.0
    %v2639 = vmax.f32 %v2632, 0.0
    %v2640 = vpack.c.bf16 %v2636, %v2636
    %v2641 = vpack.c.bf16 %v2637, %v2637
    %v2642 = vpack.c.bf16 %v2638, %v2638
    %v2643 = vpack.c.bf16 %v2639, %v2639
    %v2644 = vld [vmem:[#allocation11] sm:$0xff]
    %v2645 = vld [vmem:[#allocation11 + $0x8] sm:$0xff]
    %v2646 = vld [vmem:[#allocation11 + $0x10] sm:$0xff]
    %v2647 = vld [vmem:[#allocation11 + $0x18] sm:$0xf]
    %v2648 = vld [vmem:[#allocation11 + $0x1c] sm:$0xff]
    %v2649 = vld [vmem:[#allocation11 + $0x24] sm:$0xff]
    %v2650 = vld [vmem:[#allocation11 + $0x2c] sm:$0xff]
    %v2651 = vld [vmem:[#allocation11 + $0x34] sm:$0xf]
    %v2652 = vld [vmem:[#allocation11 + $0x38] sm:$0xff]
    %v2653 = vld [vmem:[#allocation11 + $0x40] sm:$0xff]
    %v2654 = vld [vmem:[#allocation11 + $0x48] sm:$0xff]
    %v2655 = vld [vmem:[#allocation11 + $0x50] sm:$0xf]
    %v2656 = vld [vmem:[#allocation11 + $0x54] sm:$0xff]
    %v2657 = vld [vmem:[#allocation11 + $0x5c] sm:$0xff]
    %v2658 = vld [vmem:[#allocation11 + $0x64] sm:$0xff]
    %v2659 = vld [vmem:[#allocation11 + $0x6c] sm:$0xf]
    %v2660 = vld [vmem:[#allocation11 + $0x70] sm:$0xff]
    %v2661 = vld [vmem:[#allocation11 + $0x78] sm:$0xff]
    %v2662 = vld [vmem:[#allocation11 + $0x80] sm:$0xff]
    %v2663 = vld [vmem:[#allocation11 + $0x88] sm:$0xf]
    %v2664 = vld [vmem:[#allocation11 + $0x8c] sm:$0xff]
    %v2665 = vld [vmem:[#allocation11 + $0x94] sm:$0xff]
    %v2666 = vld [vmem:[#allocation11 + $0x9c] sm:$0xff]
    %v2667 = vld [vmem:[#allocation11 + $0xa4] sm:$0xf]
    %v2668 = vld [vmem:[#allocation11 + $0xa8] sm:$0xff]
    %v2669 = vld [vmem:[#allocation11 + $0xb0] sm:$0xff]
    %v2670 = vld [vmem:[#allocation11 + $0xb8] sm:$0xff]
    %v2671 = vld [vmem:[#allocation11 + $0xc0] sm:$0xf]
    %v2672 = vld [vmem:[#allocation11 + $0xc4] sm:$0xff]
    %v2673 = vld [vmem:[#allocation11 + $0xcc] sm:$0xff]
    %v2674 = vld [vmem:[#allocation11 + $0xd4] sm:$0xff]
    %v2675 = vld [vmem:[#allocation11 + $0xdc] sm:$0xf]
    %v2676 = vld [vmem:[#allocation11 + $0xe0] sm:$0xff]
    %v2677 = vld [vmem:[#allocation11 + $0xe8] sm:$0xff]
    %v2678 = vld [vmem:[#allocation11 + $0xf0] sm:$0xff]
    %v2679 = vld [vmem:[#allocation11 + $0xf8] sm:$0xf]
    %v2680 = vld [vmem:[#allocation11 + $0xfc] sm:$0xff]
    %v2681 = vld [vmem:[#allocation11 + $0x104] sm:$0xff]
    %v2682 = vld [vmem:[#allocation11 + $0x10c] sm:$0xff]
    %v2683 = vld [vmem:[#allocation11 + $0x114] sm:$0xf]
    %v2684 = vld [vmem:[#allocation11 + $0x118] sm:$0xff]
    %v2685 = vld [vmem:[#allocation11 + $0x120] sm:$0xff]
    %v2686 = vld [vmem:[#allocation11 + $0x128] sm:$0xff]
    %v2687 = vld [vmem:[#allocation11 + $0x130] sm:$0xf]
    %v2688 = vld [vmem:[#allocation11 + $0x134] sm:$0xff]
    %v2689 = vld [vmem:[#allocation11 + $0x13c] sm:$0xff]
    %v2690 = vld [vmem:[#allocation11 + $0x144] sm:$0xff]
    %v2691 = vld [vmem:[#allocation11 + $0x14c] sm:$0xf]
    %v2692 = vld [vmem:[#allocation11 + $0x150] sm:$0xff]
    %v2693 = vld [vmem:[#allocation11 + $0x158] sm:$0xff]
    %v2694 = vld [vmem:[#allocation11 + $0x160] sm:$0xff]
    %v2695 = vld [vmem:[#allocation11 + $0x168] sm:$0xf]
    %v2696 = vld [vmem:[#allocation11 + $0x16c] sm:$0xff]
    %v2697 = vld [vmem:[#allocation11 + $0x174] sm:$0xff]
    %v2698 = vld [vmem:[#allocation11 + $0x17c] sm:$0xff]
    %v2699 = vld [vmem:[#allocation11 + $0x184] sm:$0xf]
    %v2700 = vld [vmem:[#allocation11 + $0x188] sm:$0xff]
    %v2701 = vld [vmem:[#allocation11 + $0x190] sm:$0xff]
    %v2702 = vld [vmem:[#allocation11 + $0x198] sm:$0xff]
    %v2703 = vld [vmem:[#allocation11 + $0x1a0] sm:$0xf]
    %v2704 = vld [vmem:[#allocation11 + $0x1a4] sm:$0xff]
    %v2705 = vld [vmem:[#allocation11 + $0x1ac] sm:$0xff]
    %v2706 = vld [vmem:[#allocation11 + $0x1b4] sm:$0xff]
    %v2707 = vld [vmem:[#allocation11 + $0x1bc] sm:$0xf]
    %v2708 = vld [vmem:[#allocation11 + $0x1c0] sm:$0xff]
    %v2709 = vld [vmem:[#allocation11 + $0x1c8] sm:$0xff]
    %v2710 = vld [vmem:[#allocation11 + $0x1d0] sm:$0xff]
    %v2711 = vld [vmem:[#allocation11 + $0x1d8] sm:$0xf]
    %v2712 = vld [vmem:[#allocation11 + $0x1dc] sm:$0xff]
    %v2713 = vld [vmem:[#allocation11 + $0x1e4] sm:$0xff]
    %v2714 = vld [vmem:[#allocation11 + $0x1ec] sm:$0xff]
    %v2715 = vld [vmem:[#allocation11 + $0x1f4] sm:$0xf]
    %v2716 = vld [vmem:[#allocation11 + $0x1f8] sm:$0xff]
    %v2717 = vld [vmem:[#allocation11 + $0x200] sm:$0xff]
    %v2718 = vld [vmem:[#allocation11 + $0x208] sm:$0xff]
    %v2719 = vld [vmem:[#allocation11 + $0x210] sm:$0xf]
    %v2720 = vld [vmem:[#allocation11 + $0x214] sm:$0xff]
    %v2721 = vld [vmem:[#allocation11 + $0x21c] sm:$0xff]
    %v2722 = vld [vmem:[#allocation11 + $0x224] sm:$0xff]
    %v2723 = vld [vmem:[#allocation11 + $0x22c] sm:$0xf]
    %v2724 = vld [vmem:[#allocation11 + $0x230] sm:$0xff]
    %v2725 = vld [vmem:[#allocation11 + $0x238] sm:$0xff]
    %v2726 = vld [vmem:[#allocation11 + $0x240] sm:$0xff]
    %v2727 = vld [vmem:[#allocation11 + $0x248] sm:$0xf]
    %v2728 = vld [vmem:[#allocation11 + $0x24c] sm:$0xff]
    %v2729 = vld [vmem:[#allocation11 + $0x254] sm:$0xff]
    %v2730 = vld [vmem:[#allocation11 + $0x25c] sm:$0xff]
    %v2731 = vld [vmem:[#allocation11 + $0x264] sm:$0xf]
    %v2732 = vld [vmem:[#allocation11 + $0x268] sm:$0xff]
    %v2733 = vld [vmem:[#allocation11 + $0x270] sm:$0xff]
    %v2734 = vld [vmem:[#allocation11 + $0x278] sm:$0xff]
    %v2735 = vld [vmem:[#allocation11 + $0x280] sm:$0xf]
    %v2736 = vld [vmem:[#allocation11 + $0x284] sm:$0xff]
    %v2737 = vld [vmem:[#allocation11 + $0x28c] sm:$0xff]
    %v2738 = vld [vmem:[#allocation11 + $0x294] sm:$0xff]
    %v2739 = vld [vmem:[#allocation11 + $0x29c] sm:$0xf]
    %v2740 = vld [vmem:[#allocation11 + $0x2a0] sm:$0xff]
    %v2741 = vld [vmem:[#allocation11 + $0x2a8] sm:$0xff]
    %v2742 = vld [vmem:[#allocation11 + $0x2b0] sm:$0xff]
    %v2743 = vld [vmem:[#allocation11 + $0x2b8] sm:$0xf]
    %v2744 = vld [vmem:[#allocation11 + $0x2bc] sm:$0xff]
    %v2745 = vld [vmem:[#allocation11 + $0x2c4] sm:$0xff]
    %v2746 = vld [vmem:[#allocation11 + $0x2cc] sm:$0xff]
    %v2747 = vld [vmem:[#allocation11 + $0x2d4] sm:$0xf]
    %v2748 = vld [vmem:[#allocation11 + $0x2d8] sm:$0xff]
    %v2749 = vld [vmem:[#allocation11 + $0x2e0] sm:$0xff]
    %v2750 = vld [vmem:[#allocation11 + $0x2e8] sm:$0xff]
    %v2751 = vld [vmem:[#allocation11 + $0x2f0] sm:$0xf]
    %v2752 = vld [vmem:[#allocation11 + $0x2f4] sm:$0xff]
    %v2753 = vld [vmem:[#allocation11 + $0x2fc] sm:$0xff]
    %v2754 = vld [vmem:[#allocation11 + $0x304] sm:$0xff]
    %v2755 = vld [vmem:[#allocation11 + $0x30c] sm:$0xf]
    %v2756 = vld [vmem:[#allocation11 + $0x310] sm:$0xff]
    %v2757 = vld [vmem:[#allocation11 + $0x318] sm:$0xff]
    %v2758 = vld [vmem:[#allocation11 + $0x320] sm:$0xff]
    %v2759 = vld [vmem:[#allocation11 + $0x328] sm:$0xf]
    %v2760 = vld [vmem:[#allocation11 + $0x32c] sm:$0xff]
    %v2761 = vld [vmem:[#allocation11 + $0x334] sm:$0xff]
    %v2762 = vld [vmem:[#allocation11 + $0x33c] sm:$0xff]
    %v2763 = vld [vmem:[#allocation11 + $0x344] sm:$0xf]
    %v2764 = vld [vmem:[#allocation11 + $0x348] sm:$0xff]
    %v2765 = vld [vmem:[#allocation11 + $0x350] sm:$0xff]
    %v2766 = vld [vmem:[#allocation11 + $0x358] sm:$0xff]
    %v2767 = vld [vmem:[#allocation11 + $0x360] sm:$0xf]
    %v2768 = vld [vmem:[#allocation11 + $0x364] sm:$0xff]
    %v2769 = vld [vmem:[#allocation11 + $0x36c] sm:$0xff]
    %v2770 = vld [vmem:[#allocation11 + $0x374] sm:$0xff]
    %v2771 = vld [vmem:[#allocation11 + $0x37c] sm:$0xf]
    %v2772 = vld [vmem:[#allocation11 + $0x380] sm:$0xff]
    %v2773 = vld [vmem:[#allocation11 + $0x388] sm:$0xff]
    %v2774 = vld [vmem:[#allocation11 + $0x390] sm:$0xff]
    %v2775 = vld [vmem:[#allocation11 + $0x398] sm:$0xf]
    %v2776 = vld [vmem:[#allocation11 + $0x39c] sm:$0xff]
    %v2777 = vld [vmem:[#allocation11 + $0x3a4] sm:$0xff]
    %v2778 = vld [vmem:[#allocation11 + $0x3ac] sm:$0xff]
    %v2779 = vld [vmem:[#allocation11 + $0x3b4] sm:$0xf]
    %v2780 = vld [vmem:[#allocation11 + $0x3b8] sm:$0xff]
    %v2781 = vld [vmem:[#allocation11 + $0x3c0] sm:$0xff]
    %v2782 = vld [vmem:[#allocation11 + $0x3c8] sm:$0xff]
    %v2783 = vld [vmem:[#allocation11 + $0x3d0] sm:$0xf]
    %v2784 = vld [vmem:[#allocation11 + $0x3d4] sm:$0xff]
    %v2785 = vld [vmem:[#allocation11 + $0x3dc] sm:$0xff]
    %v2786 = vld [vmem:[#allocation11 + $0x3e4] sm:$0xff]
    %v2787 = vld [vmem:[#allocation11 + $0x3ec] sm:$0xf]
    %v2788 = vld [vmem:[#allocation11 + $0x3f0] sm:$0xff]
    %v2789 = vld [vmem:[#allocation11 + $0x3f8] sm:$0xff]
    %v2790 = vld [vmem:[#allocation11 + $0x400] sm:$0xff]
    %v2791 = vld [vmem:[#allocation11 + $0x408] sm:$0xf]
    %v2792 = vld [vmem:[#allocation11 + $0x40c] sm:$0xff]
    %v2793 = vld [vmem:[#allocation11 + $0x414] sm:$0xff]
    %v2794 = vld [vmem:[#allocation11 + $0x41c] sm:$0xff]
    %v2795 = vld [vmem:[#allocation11 + $0x424] sm:$0xf]
    %v2796 = vld [vmem:[#allocation11 + $0x428] sm:$0xff]
    %v2797 = vld [vmem:[#allocation11 + $0x430] sm:$0xff]
    %v2798 = vld [vmem:[#allocation11 + $0x438] sm:$0xff]
    %v2799 = vld [vmem:[#allocation11 + $0x440] sm:$0xf]
    %v2800 = vld [vmem:[#allocation11 + $0x444] sm:$0xff]
    %v2801 = vld [vmem:[#allocation11 + $0x44c] sm:$0xff]
    %v2802 = vld [vmem:[#allocation11 + $0x454] sm:$0xff]
    %v2803 = vld [vmem:[#allocation11 + $0x45c] sm:$0xf]
    %v2804 = vld [vmem:[#allocation11 + $0x460] sm:$0xff]
    %v2805 = vld [vmem:[#allocation11 + $0x468] sm:$0xff]
    %v2806 = vld [vmem:[#allocation11 + $0x470] sm:$0xff]
    %v2807 = vld [vmem:[#allocation11 + $0x478] sm:$0xf]
    %v2808 = vld [vmem:[#allocation11 + $0x47c] sm:$0xff]
    %v2809 = vld [vmem:[#allocation11 + $0x484] sm:$0xff]
    %v2810 = vld [vmem:[#allocation11 + $0x48c] sm:$0xff]
    %v2811 = vld [vmem:[#allocation11 + $0x494] sm:$0xf]
    %v2812 = vld [vmem:[#allocation11 + $0x498] sm:$0xff]
    %v2813 = vld [vmem:[#allocation11 + $0x4a0] sm:$0xff]
    %v2814 = vld [vmem:[#allocation11 + $0x4a8] sm:$0xff]
    %v2815 = vld [vmem:[#allocation11 + $0x4b0] sm:$0xf]
    %v2816 = vld [vmem:[#allocation11 + $0x4b4] sm:$0xff]
    %v2817 = vld [vmem:[#allocation11 + $0x4bc] sm:$0xff]
    %v2818 = vld [vmem:[#allocation11 + $0x4c4] sm:$0xff]
    %v2819 = vld [vmem:[#allocation11 + $0x4cc] sm:$0xf]
    %v2820 = vld [vmem:[#allocation11 + $0x4d0] sm:$0xff]
    %v2821 = vld [vmem:[#allocation11 + $0x4d8] sm:$0xff]
    %v2822 = vld [vmem:[#allocation11 + $0x4e0] sm:$0xff]
    %v2823 = vld [vmem:[#allocation11 + $0x4e8] sm:$0xf]
    %v2824 = vld [vmem:[#allocation11 + $0x4ec] sm:$0xff]
    %v2825 = vld [vmem:[#allocation11 + $0x4f4] sm:$0xff]
    %v2826 = vld [vmem:[#allocation11 + $0x4fc] sm:$0xff]
    %v2827 = vld [vmem:[#allocation11 + $0x504] sm:$0xf]
    %v2828 = vld [vmem:[#allocation11 + $0x508] sm:$0xff]
    %v2829 = vld [vmem:[#allocation11 + $0x510] sm:$0xff]
    %v2830 = vld [vmem:[#allocation11 + $0x518] sm:$0xff]
    %v2831 = vld [vmem:[#allocation11 + $0x520] sm:$0xf]
    %v2832 = vld [vmem:[#allocation11 + $0x524] sm:$0xff]
    %v2833 = vld [vmem:[#allocation11 + $0x52c] sm:$0xff]
    %v2834 = vld [vmem:[#allocation11 + $0x534] sm:$0xff]
    %v2835 = vld [vmem:[#allocation11 + $0x53c] sm:$0xf]
    %v2836 = vld [vmem:[#allocation11 + $0x540] sm:$0xff]
    %v2837 = vld [vmem:[#allocation11 + $0x548] sm:$0xff]
    %v2838 = vld [vmem:[#allocation11 + $0x550] sm:$0xff]
    %v2839 = vld [vmem:[#allocation11 + $0x558] sm:$0xf]
    %v2840 = vld [vmem:[#allocation11 + $0x55c] sm:$0xff]
    %v2841 = vld [vmem:[#allocation11 + $0x564] sm:$0xff]
    %v2842 = vld [vmem:[#allocation11 + $0x56c] sm:$0xff]
    %v2843 = vld [vmem:[#allocation11 + $0x574] sm:$0xf]
    %v2844 = vld [vmem:[#allocation11 + $0x578] sm:$0xff]
    %v2845 = vld [vmem:[#allocation11 + $0x580] sm:$0xff]
    %v2846 = vld [vmem:[#allocation11 + $0x588] sm:$0xff]
    %v2847 = vld [vmem:[#allocation11 + $0x590] sm:$0xf]
    %v2848 = vld [vmem:[#allocation11 + $0x594] sm:$0xff]
    %v2849 = vld [vmem:[#allocation11 + $0x59c] sm:$0xff]
    %v2850 = vld [vmem:[#allocation11 + $0x5a4] sm:$0xff]
    %v2851 = vld [vmem:[#allocation11 + $0x5ac] sm:$0xf]
    %v2852 = vld [vmem:[#allocation11 + $0x5b0] sm:$0xff]
    %v2853 = vld [vmem:[#allocation11 + $0x5b8] sm:$0xff]
    %v2854 = vld [vmem:[#allocation11 + $0x5c0] sm:$0xff]
    %v2855 = vld [vmem:[#allocation11 + $0x5c8] sm:$0xf]
    %v2856 = vld [vmem:[#allocation11 + $0x5cc] sm:$0xff]
    %v2857 = vld [vmem:[#allocation11 + $0x5d4] sm:$0xff]
    %v2858 = vld [vmem:[#allocation11 + $0x5dc] sm:$0xff]
    %v2859 = vld [vmem:[#allocation11 + $0x5e4] sm:$0xf]
    %v2860 = vld [vmem:[#allocation11 + $0x5e8] sm:$0xff]
    %v2861 = vld [vmem:[#allocation11 + $0x5f0] sm:$0xff]
    %v2862 = vld [vmem:[#allocation11 + $0x5f8] sm:$0xff]
    %v2863 = vld [vmem:[#allocation11 + $0x600] sm:$0xf]
    %v2864 = vld [vmem:[#allocation11 + $0x604] sm:$0xff]
    %v2865 = vld [vmem:[#allocation11 + $0x60c] sm:$0xff]
    %v2866 = vld [vmem:[#allocation11 + $0x614] sm:$0xff]
    %v2867 = vld [vmem:[#allocation11 + $0x61c] sm:$0xf]
    %v2868 = vld [vmem:[#allocation11 + $0x620] sm:$0xff]
    %v2869 = vld [vmem:[#allocation11 + $0x628] sm:$0xff]
    %v2870 = vld [vmem:[#allocation11 + $0x630] sm:$0xff]
    %v2871 = vld [vmem:[#allocation11 + $0x638] sm:$0xf]
    %v2872 = vld [vmem:[#allocation11 + $0x63c] sm:$0xff]
    %v2873 = vld [vmem:[#allocation11 + $0x644] sm:$0xff]
    %v2874 = vld [vmem:[#allocation11 + $0x64c] sm:$0xff]
    %v2875 = vld [vmem:[#allocation11 + $0x654] sm:$0xf]
    %v2876 = vld [vmem:[#allocation11 + $0x658] sm:$0xff]
    %v2877 = vld [vmem:[#allocation11 + $0x660] sm:$0xff]
    %v2878 = vld [vmem:[#allocation11 + $0x668] sm:$0xff]
    %v2879 = vld [vmem:[#allocation11 + $0x670] sm:$0xf]
    %v2880 = vld [vmem:[#allocation11 + $0x674] sm:$0xff]
    %v2881 = vld [vmem:[#allocation11 + $0x67c] sm:$0xff]
    %v2882 = vld [vmem:[#allocation11 + $0x684] sm:$0xff]
    %v2883 = vld [vmem:[#allocation11 + $0x68c] sm:$0xf]
    %v2884 = vld [vmem:[#allocation11 + $0x690] sm:$0xff]
    %v2885 = vld [vmem:[#allocation11 + $0x698] sm:$0xff]
    %v2886 = vld [vmem:[#allocation11 + $0x6a0] sm:$0xff]
    %v2887 = vld [vmem:[#allocation11 + $0x6a8] sm:$0xf]
    %v2888 = vld [vmem:[#allocation11 + $0x6ac] sm:$0xff]
    %v2889 = vld [vmem:[#allocation11 + $0x6b4] sm:$0xff]
    %v2890 = vld [vmem:[#allocation11 + $0x6bc] sm:$0xff]
    %v2891 = vld [vmem:[#allocation11 + $0x6c4] sm:$0xf]
    %v2892 = vld [vmem:[#allocation11 + $0x6c8] sm:$0xff]
    %v2893 = vld [vmem:[#allocation11 + $0x6d0] sm:$0xff]
    %v2894 = vld [vmem:[#allocation11 + $0x6d8] sm:$0xff]
    %v2895 = vld [vmem:[#allocation11 + $0x6e0] sm:$0xf]
    %v2896 = vld [vmem:[#allocation11 + $0x6e4] sm:$0xff]
    %v2897 = vld [vmem:[#allocation11 + $0x6ec] sm:$0xff]
    %v2898 = vld [vmem:[#allocation11 + $0x6f4] sm:$0xff]
    %v2899 = vld [vmem:[#allocation11 + $0x6fc] sm:$0xf]
    %v2900 = vld [vmem:[%s9] sm:$0xff]
    %v2902 = vlaneseq
    %v2903 = vshrl.u32 %v2902, 7
    %v2904 = vsub.s32 0, %v2903
    %v2905 = vrot.slane %v2900, %v2904
    %v2906 = vlaneseq
    %v2907 = vshrl.u32 %v2906, 7
    %v2908 = vsub.s32 1, %v2907
    %v2909 = vrot.slane %v2900, %v2908
    %v2910 = vlaneseq
    %v2911 = vshrl.u32 %v2910, 7
    %v2912 = vsub.s32 2, %v2911
    %v2913 = vrot.slane %v2900, %v2912
    %v2914 = vlaneseq
    %v2915 = vshrl.u32 %v2914, 7
    %v2916 = vsub.s32 3, %v2915
    %v2917 = vrot.slane %v2900, %v2916
    %v2918 = vlaneseq
    %v2919 = vshrl.u32 %v2918, 7
    %v2920 = vsub.s32 4, %v2919
    %v2921 = vrot.slane %v2900, %v2920
    %v2922 = vlaneseq
    %v2923 = vshrl.u32 %v2922, 7
    %v2924 = vsub.s32 5, %v2923
    %v2925 = vrot.slane %v2900, %v2924
    %v2926 = vlaneseq
    %v2927 = vshrl.u32 %v2926, 7
    %v2928 = vsub.s32 6, %v2927
    %v2929 = vrot.slane %v2900, %v2928
    %v3193 = vunpack.c.l.b16 %v2644
    %v3194 = vunpack.c.h.b16 %v2644
    %v3195 = vunpack.c.l.b16 %v2645
    %v3196 = vunpack.c.h.b16 %v2645
    %v3197 = vunpack.c.l.b16 %v2646
    %v3198 = vunpack.c.h.b16 %v2646
    %v3199 = vunpack.c.l.b16 %v2647
    %v3200 = vunpack.c.l.b16 %v2648
    %v3201 = vunpack.c.h.b16 %v2648
    %v3202 = vunpack.c.l.b16 %v2649
    %v3203 = vunpack.c.h.b16 %v2649
    %v3204 = vunpack.c.l.b16 %v2650
    %v3205 = vunpack.c.h.b16 %v2650
    %v3206 = vunpack.c.l.b16 %v2651
    %v3207 = vunpack.c.l.b16 %v2652
    %v3208 = vunpack.c.h.b16 %v2652
    %v3209 = vunpack.c.l.b16 %v2653
    %v3210 = vunpack.c.h.b16 %v2653
    %v3211 = vunpack.c.l.b16 %v2654
    %v3212 = vunpack.c.h.b16 %v2654
    %v3213 = vunpack.c.l.b16 %v2655
    %v3214 = vunpack.c.l.b16 %v2656
    %v3215 = vunpack.c.h.b16 %v2656
    %v3216 = vunpack.c.l.b16 %v2657
    %v3217 = vunpack.c.h.b16 %v2657
    %v3218 = vunpack.c.l.b16 %v2658
    %v3219 = vunpack.c.h.b16 %v2658
    %v3220 = vunpack.c.l.b16 %v2659
    %v3221 = vunpack.c.l.b16 %v2660
    %v3222 = vunpack.c.h.b16 %v2660
    %v3223 = vunpack.c.l.b16 %v2661
    %v3224 = vunpack.c.h.b16 %v2661
    %v3225 = vunpack.c.l.b16 %v2662
    %v3226 = vunpack.c.h.b16 %v2662
    %v3227 = vunpack.c.l.b16 %v2663
    %v3228 = vunpack.c.l.b16 %v2664
    %v3229 = vunpack.c.h.b16 %v2664
    %v3230 = vunpack.c.l.b16 %v2665
    %v3231 = vunpack.c.h.b16 %v2665
    %v3232 = vunpack.c.l.b16 %v2666
    %v3233 = vunpack.c.h.b16 %v2666
    %v3234 = vunpack.c.l.b16 %v2667
    %v3235 = vunpack.c.l.b16 %v2668
    %v3236 = vunpack.c.h.b16 %v2668
    %v3237 = vunpack.c.l.b16 %v2669
    %v3238 = vunpack.c.h.b16 %v2669
    %v3239 = vunpack.c.l.b16 %v2670
    %v3240 = vunpack.c.h.b16 %v2670
    %v3241 = vunpack.c.l.b16 %v2671
    %v3242 = vunpack.c.l.b16 %v2672
    %v3243 = vunpack.c.h.b16 %v2672
    %v3244 = vunpack.c.l.b16 %v2673
    %v3245 = vunpack.c.h.b16 %v2673
    %v3246 = vunpack.c.l.b16 %v2674
    %v3247 = vunpack.c.h.b16 %v2674
    %v3248 = vunpack.c.l.b16 %v2675
    %v3249 = vunpack.c.l.b16 %v2676
    %v3250 = vunpack.c.h.b16 %v2676
    %v3251 = vunpack.c.l.b16 %v2677
    %v3252 = vunpack.c.h.b16 %v2677
    %v3253 = vunpack.c.l.b16 %v2678
    %v3254 = vunpack.c.h.b16 %v2678
    %v3255 = vunpack.c.l.b16 %v2679
    %v3256 = vunpack.c.l.b16 %v2680
    %v3257 = vunpack.c.h.b16 %v2680
    %v3258 = vunpack.c.l.b16 %v2681
    %v3259 = vunpack.c.h.b16 %v2681
    %v3260 = vunpack.c.l.b16 %v2682
    %v3261 = vunpack.c.h.b16 %v2682
    %v3262 = vunpack.c.l.b16 %v2683
    %v3263 = vunpack.c.l.b16 %v2684
    %v3264 = vunpack.c.h.b16 %v2684
    %v3265 = vunpack.c.l.b16 %v2685
    %v3266 = vunpack.c.h.b16 %v2685
    %v3267 = vunpack.c.l.b16 %v2686
    %v3268 = vunpack.c.h.b16 %v2686
    %v3269 = vunpack.c.l.b16 %v2687
    %v3270 = vunpack.c.l.b16 %v2688
    %v3271 = vunpack.c.h.b16 %v2688
    %v3272 = vunpack.c.l.b16 %v2689
    %v3273 = vunpack.c.h.b16 %v2689
    %v3274 = vunpack.c.l.b16 %v2690
    %v3275 = vunpack.c.h.b16 %v2690
    %v3276 = vunpack.c.l.b16 %v2691
    %v3277 = vunpack.c.l.b16 %v2692
    %v3278 = vunpack.c.h.b16 %v2692
    %v3279 = vunpack.c.l.b16 %v2693
    %v3280 = vunpack.c.h.b16 %v2693
    %v3281 = vunpack.c.l.b16 %v2694
    %v3282 = vunpack.c.h.b16 %v2694
    %v3283 = vunpack.c.l.b16 %v2695
    %v3284 = vunpack.c.l.b16 %v2696
    %v3285 = vunpack.c.h.b16 %v2696
    %v3286 = vunpack.c.l.b16 %v2697
    %v3287 = vunpack.c.h.b16 %v2697
    %v3288 = vunpack.c.l.b16 %v2698
    %v3289 = vunpack.c.h.b16 %v2698
    %v3290 = vunpack.c.l.b16 %v2699
    %v3291 = vunpack.c.l.b16 %v2700
    %v3292 = vunpack.c.h.b16 %v2700
    %v3293 = vunpack.c.l.b16 %v2701
    %v3294 = vunpack.c.h.b16 %v2701
    %v3295 = vunpack.c.l.b16 %v2702
    %v3296 = vunpack.c.h.b16 %v2702
    %v3297 = vunpack.c.l.b16 %v2703
    %v3298 = vunpack.c.l.b16 %v2704
    %v3299 = vunpack.c.h.b16 %v2704
    %v3300 = vunpack.c.l.b16 %v2705
    %v3301 = vunpack.c.h.b16 %v2705
    %v3302 = vunpack.c.l.b16 %v2706
    %v3303 = vunpack.c.h.b16 %v2706
    %v3304 = vunpack.c.l.b16 %v2707
    %v3305 = vunpack.c.l.b16 %v2708
    %v3306 = vunpack.c.h.b16 %v2708
    %v3307 = vunpack.c.l.b16 %v2709
    %v3308 = vunpack.c.h.b16 %v2709
    %v3309 = vunpack.c.l.b16 %v2710
    %v3310 = vunpack.c.h.b16 %v2710
    %v3311 = vunpack.c.l.b16 %v2711
    %v3312 = vunpack.c.l.b16 %v2712
    %v3313 = vunpack.c.h.b16 %v2712
    %v3314 = vunpack.c.l.b16 %v2713
    %v3315 = vunpack.c.h.b16 %v2713
    %v3316 = vunpack.c.l.b16 %v2714
    %v3317 = vunpack.c.h.b16 %v2714
    %v3318 = vunpack.c.l.b16 %v2715
    %v3319 = vunpack.c.l.b16 %v2716
    %v3320 = vunpack.c.h.b16 %v2716
    %v3321 = vunpack.c.l.b16 %v2717
    %v3322 = vunpack.c.h.b16 %v2717
    %v3323 = vunpack.c.l.b16 %v2718
    %v3324 = vunpack.c.h.b16 %v2718
    %v3325 = vunpack.c.l.b16 %v2719
    %v3326 = vunpack.c.l.b16 %v2720
    %v3327 = vunpack.c.h.b16 %v2720
    %v3328 = vunpack.c.l.b16 %v2721
    %v3329 = vunpack.c.h.b16 %v2721
    %v3330 = vunpack.c.l.b16 %v2722
    %v3331 = vunpack.c.h.b16 %v2722
    %v3332 = vunpack.c.l.b16 %v2723
    %v3333 = vunpack.c.l.b16 %v2724
    %v3334 = vunpack.c.h.b16 %v2724
    %v3335 = vunpack.c.l.b16 %v2725
    %v3336 = vunpack.c.h.b16 %v2725
    %v3337 = vunpack.c.l.b16 %v2726
    %v3338 = vunpack.c.h.b16 %v2726
    %v3339 = vunpack.c.l.b16 %v2727
    %v3340 = vunpack.c.l.b16 %v2728
    %v3341 = vunpack.c.h.b16 %v2728
    %v3342 = vunpack.c.l.b16 %v2729
    %v3343 = vunpack.c.h.b16 %v2729
    %v3344 = vunpack.c.l.b16 %v2730
    %v3345 = vunpack.c.h.b16 %v2730
    %v3346 = vunpack.c.l.b16 %v2731
    %v3347 = vunpack.c.l.b16 %v2732
    %v3348 = vunpack.c.h.b16 %v2732
    %v3349 = vunpack.c.l.b16 %v2733
    %v3350 = vunpack.c.h.b16 %v2733
    %v3351 = vunpack.c.l.b16 %v2734
    %v3352 = vunpack.c.h.b16 %v2734
    %v3353 = vunpack.c.l.b16 %v2735
    %v3354 = vunpack.c.l.b16 %v2736
    %v3355 = vunpack.c.h.b16 %v2736
    %v3356 = vunpack.c.l.b16 %v2737
    %v3357 = vunpack.c.h.b16 %v2737
    %v3358 = vunpack.c.l.b16 %v2738
    %v3359 = vunpack.c.h.b16 %v2738
    %v3360 = vunpack.c.l.b16 %v2739
    %v3361 = vunpack.c.l.b16 %v2740
    %v3362 = vunpack.c.h.b16 %v2740
    %v3363 = vunpack.c.l.b16 %v2741
    %v3364 = vunpack.c.h.b16 %v2741
    %v3365 = vunpack.c.l.b16 %v2742
    %v3366 = vunpack.c.h.b16 %v2742
    %v3367 = vunpack.c.l.b16 %v2743
    %v3368 = vunpack.c.l.b16 %v2744
    %v3369 = vunpack.c.h.b16 %v2744
    %v3370 = vunpack.c.l.b16 %v2745
    %v3371 = vunpack.c.h.b16 %v2745
    %v3372 = vunpack.c.l.b16 %v2746
    %v3373 = vunpack.c.h.b16 %v2746
    %v3374 = vunpack.c.l.b16 %v2747
    %v3375 = vunpack.c.l.b16 %v2748
    %v3376 = vunpack.c.h.b16 %v2748
    %v3377 = vunpack.c.l.b16 %v2749
    %v3378 = vunpack.c.h.b16 %v2749
    %v3379 = vunpack.c.l.b16 %v2750
    %v3380 = vunpack.c.h.b16 %v2750
    %v3381 = vunpack.c.l.b16 %v2751
    %v3382 = vunpack.c.l.b16 %v2752
    %v3383 = vunpack.c.h.b16 %v2752
    %v3384 = vunpack.c.l.b16 %v2753
    %v3385 = vunpack.c.h.b16 %v2753
    %v3386 = vunpack.c.l.b16 %v2754
    %v3387 = vunpack.c.h.b16 %v2754
    %v3388 = vunpack.c.l.b16 %v2755
    %v3389 = vunpack.c.l.b16 %v2756
    %v3390 = vunpack.c.h.b16 %v2756
    %v3391 = vunpack.c.l.b16 %v2757
    %v3392 = vunpack.c.h.b16 %v2757
    %v3393 = vunpack.c.l.b16 %v2758
    %v3394 = vunpack.c.h.b16 %v2758
    %v3395 = vunpack.c.l.b16 %v2759
    %v3396 = vunpack.c.l.b16 %v2760
    %v3397 = vunpack.c.h.b16 %v2760
    %v3398 = vunpack.c.l.b16 %v2761
    %v3399 = vunpack.c.h.b16 %v2761
    %v3400 = vunpack.c.l.b16 %v2762
    %v3401 = vunpack.c.h.b16 %v2762
    %v3402 = vunpack.c.l.b16 %v2763
    %v3403 = vunpack.c.l.b16 %v2764
    %v3404 = vunpack.c.h.b16 %v2764
    %v3405 = vunpack.c.l.b16 %v2765
    %v3406 = vunpack.c.h.b16 %v2765
    %v3407 = vunpack.c.l.b16 %v2766
    %v3408 = vunpack.c.h.b16 %v2766
    %v3409 = vunpack.c.l.b16 %v2767
    %v3410 = vunpack.c.l.b16 %v2768
    %v3411 = vunpack.c.h.b16 %v2768
    %v3412 = vunpack.c.l.b16 %v2769
    %v3413 = vunpack.c.h.b16 %v2769
    %v3414 = vunpack.c.l.b16 %v2770
    %v3415 = vunpack.c.h.b16 %v2770
    %v3416 = vunpack.c.l.b16 %v2771
    %v3417 = vunpack.c.l.b16 %v2772
    %v3418 = vunpack.c.h.b16 %v2772
    %v3419 = vunpack.c.l.b16 %v2773
    %v3420 = vunpack.c.h.b16 %v2773
    %v3421 = vunpack.c.l.b16 %v2774
    %v3422 = vunpack.c.h.b16 %v2774
    %v3423 = vunpack.c.l.b16 %v2775
    %v3424 = vunpack.c.l.b16 %v2776
    %v3425 = vunpack.c.h.b16 %v2776
    %v3426 = vunpack.c.l.b16 %v2777
    %v3427 = vunpack.c.h.b16 %v2777
    %v3428 = vunpack.c.l.b16 %v2778
    %v3429 = vunpack.c.h.b16 %v2778
    %v3430 = vunpack.c.l.b16 %v2779
    %v3431 = vunpack.c.l.b16 %v2780
    %v3432 = vunpack.c.h.b16 %v2780
    %v3433 = vunpack.c.l.b16 %v2781
    %v3434 = vunpack.c.h.b16 %v2781
    %v3435 = vunpack.c.l.b16 %v2782
    %v3436 = vunpack.c.h.b16 %v2782
    %v3437 = vunpack.c.l.b16 %v2783
    %v3438 = vunpack.c.l.b16 %v2784
    %v3439 = vunpack.c.h.b16 %v2784
    %v3440 = vunpack.c.l.b16 %v2785
    %v3441 = vunpack.c.h.b16 %v2785
    %v3442 = vunpack.c.l.b16 %v2786
    %v3443 = vunpack.c.h.b16 %v2786
    %v3444 = vunpack.c.l.b16 %v2787
    %v3445 = vunpack.c.l.b16 %v2788
    %v3446 = vunpack.c.h.b16 %v2788
    %v3447 = vunpack.c.l.b16 %v2789
    %v3448 = vunpack.c.h.b16 %v2789
    %v3449 = vunpack.c.l.b16 %v2790
    %v3450 = vunpack.c.h.b16 %v2790
    %v3451 = vunpack.c.l.b16 %v2791
    %v3452 = vunpack.c.l.b16 %v2792
    %v3453 = vunpack.c.h.b16 %v2792
    %v3454 = vunpack.c.l.b16 %v2793
    %v3455 = vunpack.c.h.b16 %v2793
    %v3456 = vunpack.c.l.b16 %v2794
    %v3457 = vunpack.c.h.b16 %v2794
    %v3458 = vunpack.c.l.b16 %v2795
    %v3459 = vunpack.c.l.b16 %v2796
    %v3460 = vunpack.c.h.b16 %v2796
    %v3461 = vunpack.c.l.b16 %v2797
    %v3462 = vunpack.c.h.b16 %v2797
    %v3463 = vunpack.c.l.b16 %v2798
    %v3464 = vunpack.c.h.b16 %v2798
    %v3465 = vunpack.c.l.b16 %v2799
    %v3466 = vunpack.c.l.b16 %v2800
    %v3467 = vunpack.c.h.b16 %v2800
    %v3468 = vunpack.c.l.b16 %v2801
    %v3469 = vunpack.c.h.b16 %v2801
    %v3470 = vunpack.c.l.b16 %v2802
    %v3471 = vunpack.c.h.b16 %v2802
    %v3472 = vunpack.c.l.b16 %v2803
    %v3473 = vunpack.c.l.b16 %v2804
    %v3474 = vunpack.c.h.b16 %v2804
    %v3475 = vunpack.c.l.b16 %v2805
    %v3476 = vunpack.c.h.b16 %v2805
    %v3477 = vunpack.c.l.b16 %v2806
    %v3478 = vunpack.c.h.b16 %v2806
    %v3479 = vunpack.c.l.b16 %v2807
    %v3480 = vunpack.c.l.b16 %v2808
    %v3481 = vunpack.c.h.b16 %v2808
    %v3482 = vunpack.c.l.b16 %v2809
    %v3483 = vunpack.c.h.b16 %v2809
    %v3484 = vunpack.c.l.b16 %v2810
    %v3485 = vunpack.c.h.b16 %v2810
    %v3486 = vunpack.c.l.b16 %v2811
    %v3487 = vunpack.c.l.b16 %v2812
    %v3488 = vunpack.c.h.b16 %v2812
    %v3489 = vunpack.c.l.b16 %v2813
    %v3490 = vunpack.c.h.b16 %v2813
    %v3491 = vunpack.c.l.b16 %v2814
    %v3492 = vunpack.c.h.b16 %v2814
    %v3493 = vunpack.c.l.b16 %v2815
    %v3494 = vunpack.c.l.b16 %v2816
    %v3495 = vunpack.c.h.b16 %v2816
    %v3496 = vunpack.c.l.b16 %v2817
    %v3497 = vunpack.c.h.b16 %v2817
    %v3498 = vunpack.c.l.b16 %v2818
    %v3499 = vunpack.c.h.b16 %v2818
    %v3500 = vunpack.c.l.b16 %v2819
    %v3501 = vunpack.c.l.b16 %v2820
    %v3502 = vunpack.c.h.b16 %v2820
    %v3503 = vunpack.c.l.b16 %v2821
    %v3504 = vunpack.c.h.b16 %v2821
    %v3505 = vunpack.c.l.b16 %v2822
    %v3506 = vunpack.c.h.b16 %v2822
    %v3507 = vunpack.c.l.b16 %v2823
    %v3508 = vunpack.c.l.b16 %v2824
    %v3509 = vunpack.c.h.b16 %v2824
    %v3510 = vunpack.c.l.b16 %v2825
    %v3511 = vunpack.c.h.b16 %v2825
    %v3512 = vunpack.c.l.b16 %v2826
    %v3513 = vunpack.c.h.b16 %v2826
    %v3514 = vunpack.c.l.b16 %v2827
    %v3515 = vunpack.c.l.b16 %v2828
    %v3516 = vunpack.c.h.b16 %v2828
    %v3517 = vunpack.c.l.b16 %v2829
    %v3518 = vunpack.c.h.b16 %v2829
    %v3519 = vunpack.c.l.b16 %v2830
    %v3520 = vunpack.c.h.b16 %v2830
    %v3521 = vunpack.c.l.b16 %v2831
    %v3522 = vunpack.c.l.b16 %v2832
    %v3523 = vunpack.c.h.b16 %v2832
    %v3524 = vunpack.c.l.b16 %v2833
    %v3525 = vunpack.c.h.b16 %v2833
    %v3526 = vunpack.c.l.b16 %v2834
    %v3527 = vunpack.c.h.b16 %v2834
    %v3528 = vunpack.c.l.b16 %v2835
    %v3529 = vunpack.c.l.b16 %v2836
    %v3530 = vunpack.c.h.b16 %v2836
    %v3531 = vunpack.c.l.b16 %v2837
    %v3532 = vunpack.c.h.b16 %v2837
    %v3533 = vunpack.c.l.b16 %v2838
    %v3534 = vunpack.c.h.b16 %v2838
    %v3535 = vunpack.c.l.b16 %v2839
    %v3536 = vunpack.c.l.b16 %v2840
    %v3537 = vunpack.c.h.b16 %v2840
    %v3538 = vunpack.c.l.b16 %v2841
    %v3539 = vunpack.c.h.b16 %v2841
    %v3540 = vunpack.c.l.b16 %v2842
    %v3541 = vunpack.c.h.b16 %v2842
    %v3542 = vunpack.c.l.b16 %v2843
    %v3543 = vunpack.c.l.b16 %v2844
    %v3544 = vunpack.c.h.b16 %v2844
    %v3545 = vunpack.c.l.b16 %v2845
    %v3546 = vunpack.c.h.b16 %v2845
    %v3547 = vunpack.c.l.b16 %v2846
    %v3548 = vunpack.c.h.b16 %v2846
    %v3549 = vunpack.c.l.b16 %v2847
    %v3550 = vunpack.c.l.b16 %v2848
    %v3551 = vunpack.c.h.b16 %v2848
    %v3552 = vunpack.c.l.b16 %v2849
    %v3553 = vunpack.c.h.b16 %v2849
    %v3554 = vunpack.c.l.b16 %v2850
    %v3555 = vunpack.c.h.b16 %v2850
    %v3556 = vunpack.c.l.b16 %v2851
    %v3557 = vunpack.c.l.b16 %v2852
    %v3558 = vunpack.c.h.b16 %v2852
    %v3559 = vunpack.c.l.b16 %v2853
    %v3560 = vunpack.c.h.b16 %v2853
    %v3561 = vunpack.c.l.b16 %v2854
    %v3562 = vunpack.c.h.b16 %v2854
    %v3563 = vunpack.c.l.b16 %v2855
    %v3564 = vunpack.c.l.b16 %v2856
    %v3565 = vunpack.c.h.b16 %v2856
    %v3566 = vunpack.c.l.b16 %v2857
    %v3567 = vunpack.c.h.b16 %v2857
    %v3568 = vunpack.c.l.b16 %v2858
    %v3569 = vunpack.c.h.b16 %v2858
    %v3570 = vunpack.c.l.b16 %v2859
    %v3571 = vunpack.c.l.b16 %v2860
    %v3572 = vunpack.c.h.b16 %v2860
    %v3573 = vunpack.c.l.b16 %v2861
    %v3574 = vunpack.c.h.b16 %v2861
    %v3575 = vunpack.c.l.b16 %v2862
    %v3576 = vunpack.c.h.b16 %v2862
    %v3577 = vunpack.c.l.b16 %v2863
    %v3578 = vunpack.c.l.b16 %v2864
    %v3579 = vunpack.c.h.b16 %v2864
    %v3580 = vunpack.c.l.b16 %v2865
    %v3581 = vunpack.c.h.b16 %v2865
    %v3582 = vunpack.c.l.b16 %v2866
    %v3583 = vunpack.c.h.b16 %v2866
    %v3584 = vunpack.c.l.b16 %v2867
    %v3585 = vunpack.c.l.b16 %v2868
    %v3586 = vunpack.c.h.b16 %v2868
    %v3587 = vunpack.c.l.b16 %v2869
    %v3588 = vunpack.c.h.b16 %v2869
    %v3589 = vunpack.c.l.b16 %v2870
    %v3590 = vunpack.c.h.b16 %v2870
    %v3591 = vunpack.c.l.b16 %v2871
    %v3592 = vunpack.c.l.b16 %v2872
    %v3593 = vunpack.c.h.b16 %v2872
    %v3594 = vunpack.c.l.b16 %v2873
    %v3595 = vunpack.c.h.b16 %v2873
    %v3596 = vunpack.c.l.b16 %v2874
    %v3597 = vunpack.c.h.b16 %v2874
    %v3598 = vunpack.c.l.b16 %v2875
    %v3599 = vunpack.c.l.b16 %v2876
    %v3600 = vunpack.c.h.b16 %v2876
    %v3601 = vunpack.c.l.b16 %v2877
    %v3602 = vunpack.c.h.b16 %v2877
    %v3603 = vunpack.c.l.b16 %v2878
    %v3604 = vunpack.c.h.b16 %v2878
    %v3605 = vunpack.c.l.b16 %v2879
    %v3606 = vunpack.c.l.b16 %v2880
    %v3607 = vunpack.c.h.b16 %v2880
    %v3608 = vunpack.c.l.b16 %v2881
    %v3609 = vunpack.c.h.b16 %v2881
    %v3610 = vunpack.c.l.b16 %v2882
    %v3611 = vunpack.c.h.b16 %v2882
    %v3612 = vunpack.c.l.b16 %v2883
    %v3613 = vunpack.c.l.b16 %v2884
    %v3614 = vunpack.c.h.b16 %v2884
    %v3615 = vunpack.c.l.b16 %v2885
    %v3616 = vunpack.c.h.b16 %v2885
    %v3617 = vunpack.c.l.b16 %v2886
    %v3618 = vunpack.c.h.b16 %v2886
    %v3619 = vunpack.c.l.b16 %v2887
    %v3620 = vunpack.c.l.b16 %v2888
    %v3621 = vunpack.c.h.b16 %v2888
    %v3622 = vunpack.c.l.b16 %v2889
    %v3623 = vunpack.c.h.b16 %v2889
    %v3624 = vunpack.c.l.b16 %v2890
    %v3625 = vunpack.c.h.b16 %v2890
    %v3626 = vunpack.c.l.b16 %v2891
    %v3627 = vunpack.c.l.b16 %v2892
    %v3628 = vunpack.c.h.b16 %v2892
    %v3629 = vunpack.c.l.b16 %v2893
    %v3630 = vunpack.c.h.b16 %v2893
    %v3631 = vunpack.c.l.b16 %v2894
    %v3632 = vunpack.c.h.b16 %v2894
    %v3633 = vunpack.c.l.b16 %v2895
    %v3634 = vunpack.c.l.b16 %v2896
    %v3635 = vunpack.c.h.b16 %v2896
    %v3636 = vunpack.c.l.b16 %v2897
    %v3637 = vunpack.c.h.b16 %v2897
    %v3638 = vunpack.c.l.b16 %v2898
    %v3639 = vunpack.c.h.b16 %v2898
    %v3640 = vunpack.c.l.b16 %v2899
    %v3641 = vpack.c.b16 %v3200, %v3193
    %v3642 = vpack.c.b16 %v3201, %v3194
    %v3643 = vpack.c.b16 %v3202, %v3195
    %v3644 = vpack.c.b16 %v3203, %v3196
    %v3645 = vpack.c.b16 %v3204, %v3197
    %v3646 = vpack.c.b16 %v3205, %v3198
    %v3647 = vpack.c.b16 %v3206, %v3199
    %v3648 = vpack.c.b16 %v3214, %v3207
    %v3649 = vpack.c.b16 %v3215, %v3208
    %v3650 = vpack.c.b16 %v3216, %v3209
    %v3651 = vpack.c.b16 %v3217, %v3210
    %v3652 = vpack.c.b16 %v3218, %v3211
    %v3653 = vpack.c.b16 %v3219, %v3212
    %v3654 = vpack.c.b16 %v3220, %v3213
    %v3655 = vpack.c.b16 %v3228, %v3221
    %v3656 = vpack.c.b16 %v3229, %v3222
    %v3657 = vpack.c.b16 %v3230, %v3223
    %v3658 = vpack.c.b16 %v3231, %v3224
    %v3659 = vpack.c.b16 %v3232, %v3225
    %v3660 = vpack.c.b16 %v3233, %v3226
    %v3661 = vpack.c.b16 %v3234, %v3227
    %v3662 = vpack.c.b16 %v3242, %v3235
    %v3663 = vpack.c.b16 %v3243, %v3236
    %v3664 = vpack.c.b16 %v3244, %v3237
    %v3665 = vpack.c.b16 %v3245, %v3238
    %v3666 = vpack.c.b16 %v3246, %v3239
    %v3667 = vpack.c.b16 %v3247, %v3240
    %v3668 = vpack.c.b16 %v3248, %v3241
    %v3669 = vpack.c.b16 %v3256, %v3249
    %v3670 = vpack.c.b16 %v3257, %v3250
    %v3671 = vpack.c.b16 %v3258, %v3251
    %v3672 = vpack.c.b16 %v3259, %v3252
    %v3673 = vpack.c.b16 %v3260, %v3253
    %v3674 = vpack.c.b16 %v3261, %v3254
    %v3675 = vpack.c.b16 %v3262, %v3255
    %v3676 = vpack.c.b16 %v3270, %v3263
    %v3677 = vpack.c.b16 %v3271, %v3264
    %v3678 = vpack.c.b16 %v3272, %v3265
    %v3679 = vpack.c.b16 %v3273, %v3266
    %v3680 = vpack.c.b16 %v3274, %v3267
    %v3681 = vpack.c.b16 %v3275, %v3268
    %v3682 = vpack.c.b16 %v3276, %v3269
    %v3683 = vpack.c.b16 %v3284, %v3277
    %v3684 = vpack.c.b16 %v3285, %v3278
    %v3685 = vpack.c.b16 %v3286, %v3279
    %v3686 = vpack.c.b16 %v3287, %v3280
    %v3687 = vpack.c.b16 %v3288, %v3281
    %v3688 = vpack.c.b16 %v3289, %v3282
    %v3689 = vpack.c.b16 %v3290, %v3283
    %v3690 = vpack.c.b16 %v3298, %v3291
    %v3691 = vpack.c.b16 %v3299, %v3292
    %v3692 = vpack.c.b16 %v3300, %v3293
    %v3693 = vpack.c.b16 %v3301, %v3294
    %v3694 = vpack.c.b16 %v3302, %v3295
    %v3695 = vpack.c.b16 %v3303, %v3296
    %v3696 = vpack.c.b16 %v3304, %v3297
    %v3697 = vpack.c.b16 %v3312, %v3305
    %v3698 = vpack.c.b16 %v3313, %v3306
    %v3699 = vpack.c.b16 %v3314, %v3307
    %v3700 = vpack.c.b16 %v3315, %v3308
    %v3701 = vpack.c.b16 %v3316, %v3309
    %v3702 = vpack.c.b16 %v3317, %v3310
    %v3703 = vpack.c.b16 %v3318, %v3311
    %v3704 = vpack.c.b16 %v3326, %v3319
    %v3705 = vpack.c.b16 %v3327, %v3320
    %v3706 = vpack.c.b16 %v3328, %v3321
    %v3707 = vpack.c.b16 %v3329, %v3322
    %v3708 = vpack.c.b16 %v3330, %v3323
    %v3709 = vpack.c.b16 %v3331, %v3324
    %v3710 = vpack.c.b16 %v3332, %v3325
    %v3711 = vpack.c.b16 %v3340, %v3333
    %v3712 = vpack.c.b16 %v3341, %v3334
    %v3713 = vpack.c.b16 %v3342, %v3335
    %v3714 = vpack.c.b16 %v3343, %v3336
    %v3715 = vpack.c.b16 %v3344, %v3337
    %v3716 = vpack.c.b16 %v3345, %v3338
    %v3717 = vpack.c.b16 %v3346, %v3339
    %v3718 = vpack.c.b16 %v3354, %v3347
    %v3719 = vpack.c.b16 %v3355, %v3348
    %v3720 = vpack.c.b16 %v3356, %v3349
    %v3721 = vpack.c.b16 %v3357, %v3350
    %v3722 = vpack.c.b16 %v3358, %v3351
    %v3723 = vpack.c.b16 %v3359, %v3352
    %v3724 = vpack.c.b16 %v3360, %v3353
    %v3725 = vpack.c.b16 %v3368, %v3361
    %v3726 = vpack.c.b16 %v3369, %v3362
    %v3727 = vpack.c.b16 %v3370, %v3363
    %v3728 = vpack.c.b16 %v3371, %v3364
    %v3729 = vpack.c.b16 %v3372, %v3365
    %v3730 = vpack.c.b16 %v3373, %v3366
    %v3731 = vpack.c.b16 %v3374, %v3367
    %v3732 = vpack.c.b16 %v3382, %v3375
    %v3733 = vpack.c.b16 %v3383, %v3376
    %v3734 = vpack.c.b16 %v3384, %v3377
    %v3735 = vpack.c.b16 %v3385, %v3378
    %v3736 = vpack.c.b16 %v3386, %v3379
    %v3737 = vpack.c.b16 %v3387, %v3380
    %v3738 = vpack.c.b16 %v3388, %v3381
    %v3739 = vpack.c.b16 %v3396, %v3389
    %v3740 = vpack.c.b16 %v3397, %v3390
    %v3741 = vpack.c.b16 %v3398, %v3391
    %v3742 = vpack.c.b16 %v3399, %v3392
    %v3743 = vpack.c.b16 %v3400, %v3393
    %v3744 = vpack.c.b16 %v3401, %v3394
    %v3745 = vpack.c.b16 %v3402, %v3395
    %v3746 = vpack.c.b16 %v3410, %v3403
    %v3747 = vpack.c.b16 %v3411, %v3404
    %v3748 = vpack.c.b16 %v3412, %v3405
    %v3749 = vpack.c.b16 %v3413, %v3406
    %v3750 = vpack.c.b16 %v3414, %v3407
    %v3751 = vpack.c.b16 %v3415, %v3408
    %v3752 = vpack.c.b16 %v3416, %v3409
    %v3753 = vpack.c.b16 %v3424, %v3417
    %v3754 = vpack.c.b16 %v3425, %v3418
    %v3755 = vpack.c.b16 %v3426, %v3419
    %v3756 = vpack.c.b16 %v3427, %v3420
    %v3757 = vpack.c.b16 %v3428, %v3421
    %v3758 = vpack.c.b16 %v3429, %v3422
    %v3759 = vpack.c.b16 %v3430, %v3423
    %v3760 = vpack.c.b16 %v3438, %v3431
    %v3761 = vpack.c.b16 %v3439, %v3432
    %v3762 = vpack.c.b16 %v3440, %v3433
    %v3763 = vpack.c.b16 %v3441, %v3434
    %v3764 = vpack.c.b16 %v3442, %v3435
    %v3765 = vpack.c.b16 %v3443, %v3436
    %v3766 = vpack.c.b16 %v3444, %v3437
    %v3767 = vpack.c.b16 %v3452, %v3445
    %v3768 = vpack.c.b16 %v3453, %v3446
    %v3769 = vpack.c.b16 %v3454, %v3447
    %v3770 = vpack.c.b16 %v3455, %v3448
    %v3771 = vpack.c.b16 %v3456, %v3449
    %v3772 = vpack.c.b16 %v3457, %v3450
    %v3773 = vpack.c.b16 %v3458, %v3451
    %v3774 = vpack.c.b16 %v3466, %v3459
    %v3775 = vpack.c.b16 %v3467, %v3460
    %v3776 = vpack.c.b16 %v3468, %v3461
    %v3777 = vpack.c.b16 %v3469, %v3462
    %v3778 = vpack.c.b16 %v3470, %v3463
    %v3779 = vpack.c.b16 %v3471, %v3464
    %v3780 = vpack.c.b16 %v3472, %v3465
    %v3781 = vpack.c.b16 %v3480, %v3473
    %v3782 = vpack.c.b16 %v3481, %v3474
    %v3783 = vpack.c.b16 %v3482, %v3475
    %v3784 = vpack.c.b16 %v3483, %v3476
    %v3785 = vpack.c.b16 %v3484, %v3477
    %v3786 = vpack.c.b16 %v3485, %v3478
    %v3787 = vpack.c.b16 %v3486, %v3479
    %v3788 = vpack.c.b16 %v3494, %v3487
    %v3789 = vpack.c.b16 %v3495, %v3488
    %v3790 = vpack.c.b16 %v3496, %v3489
    %v3791 = vpack.c.b16 %v3497, %v3490
    %v3792 = vpack.c.b16 %v3498, %v3491
    %v3793 = vpack.c.b16 %v3499, %v3492
    %v3794 = vpack.c.b16 %v3500, %v3493
    %v3795 = vpack.c.b16 %v3508, %v3501
    %v3796 = vpack.c.b16 %v3509, %v3502
    %v3797 = vpack.c.b16 %v3510, %v3503
    %v3798 = vpack.c.b16 %v3511, %v3504
    %v3799 = vpack.c.b16 %v3512, %v3505
    %v3800 = vpack.c.b16 %v3513, %v3506
    %v3801 = vpack.c.b16 %v3514, %v3507
    %v3802 = vpack.c.b16 %v3522, %v3515
    %v3803 = vpack.c.b16 %v3523, %v3516
    %v3804 = vpack.c.b16 %v3524, %v3517
    %v3805 = vpack.c.b16 %v3525, %v3518
    %v3806 = vpack.c.b16 %v3526, %v3519
    %v3807 = vpack.c.b16 %v3527, %v3520
    %v3808 = vpack.c.b16 %v3528, %v3521
    %v3809 = vpack.c.b16 %v3536, %v3529
    %v3810 = vpack.c.b16 %v3537, %v3530
    %v3811 = vpack.c.b16 %v3538, %v3531
    %v3812 = vpack.c.b16 %v3539, %v3532
    %v3813 = vpack.c.b16 %v3540, %v3533
    %v3814 = vpack.c.b16 %v3541, %v3534
    %v3815 = vpack.c.b16 %v3542, %v3535
    %v3816 = vpack.c.b16 %v3550, %v3543
    %v3817 = vpack.c.b16 %v3551, %v3544
    %v3818 = vpack.c.b16 %v3552, %v3545
    %v3819 = vpack.c.b16 %v3553, %v3546
    %v3820 = vpack.c.b16 %v3554, %v3547
    %v3821 = vpack.c.b16 %v3555, %v3548
    %v3822 = vpack.c.b16 %v3556, %v3549
    %v3823 = vpack.c.b16 %v3564, %v3557
    %v3824 = vpack.c.b16 %v3565, %v3558
    %v3825 = vpack.c.b16 %v3566, %v3559
    %v3826 = vpack.c.b16 %v3567, %v3560
    %v3827 = vpack.c.b16 %v3568, %v3561
    %v3828 = vpack.c.b16 %v3569, %v3562
    %v3829 = vpack.c.b16 %v3570, %v3563
    %v3830 = vpack.c.b16 %v3578, %v3571
    %v3831 = vpack.c.b16 %v3579, %v3572
    %v3832 = vpack.c.b16 %v3580, %v3573
    %v3833 = vpack.c.b16 %v3581, %v3574
    %v3834 = vpack.c.b16 %v3582, %v3575
    %v3835 = vpack.c.b16 %v3583, %v3576
    %v3836 = vpack.c.b16 %v3584, %v3577
    %v3837 = vpack.c.b16 %v3592, %v3585
    %v3838 = vpack.c.b16 %v3593, %v3586
    %v3839 = vpack.c.b16 %v3594, %v3587
    %v3840 = vpack.c.b16 %v3595, %v3588
    %v3841 = vpack.c.b16 %v3596, %v3589
    %v3842 = vpack.c.b16 %v3597, %v3590
    %v3843 = vpack.c.b16 %v3598, %v3591
    %v3844 = vpack.c.b16 %v3606, %v3599
    %v3845 = vpack.c.b16 %v3607, %v3600
    %v3846 = vpack.c.b16 %v3608, %v3601
    %v3847 = vpack.c.b16 %v3609, %v3602
    %v3848 = vpack.c.b16 %v3610, %v3603
    %v3849 = vpack.c.b16 %v3611, %v3604
    %v3850 = vpack.c.b16 %v3612, %v3605
    %v3851 = vpack.c.b16 %v3620, %v3613
    %v3852 = vpack.c.b16 %v3621, %v3614
    %v3853 = vpack.c.b16 %v3622, %v3615
    %v3854 = vpack.c.b16 %v3623, %v3616
    %v3855 = vpack.c.b16 %v3624, %v3617
    %v3856 = vpack.c.b16 %v3625, %v3618
    %v3857 = vpack.c.b16 %v3626, %v3619
    %v3858 = vpack.c.b16 %v3634, %v3627
    %v3859 = vpack.c.b16 %v3635, %v3628
    %v3860 = vpack.c.b16 %v3636, %v3629
    %v3861 = vpack.c.b16 %v3637, %v3630
    %v3862 = vpack.c.b16 %v3638, %v3631
    %v3863 = vpack.c.b16 %v3639, %v3632
    %v3864 = vpack.c.b16 %v3640, %v3633
    %4089 = vmatprep.subr.bf16.mxu0 %v3642
    %4090 = vmatpush1.bf16.msra.mxu0 %v3641
    %4091 = vmatprep.subr.bf16.mxu0 %v3649
    %4092 = vmatpush1.bf16.msra.mxu0 %v3648
    %4093 = vmatprep.subr.bf16.mxu0 %v3656
    %4094 = vmatpush1.bf16.msra.mxu0 %v3655
    %4095 = vmatprep.subr.bf16.mxu0 %v3663
    %4096 = vmatpush1.bf16.msra.mxu0 %v3662
    %4097 = vmatprep.subr.bf16.mxu0 %v3670
    %4098 = vmatpush1.bf16.msra.mxu0 %v3669
    %4099 = vmatprep.subr.bf16.mxu0 %v3677
    %4100 = vmatpush1.bf16.msra.mxu0 %v3676
    %4101 = vmatprep.subr.bf16.mxu0 %v3684
    %4102 = vmatpush1.bf16.msra.mxu0 %v3683
    %4103 = vmatprep.subr.bf16.mxu0 %v3691
    %4104 = vmatpush1.bf16.msra.mxu0 %v3690
    %4105 = vmatprep.subr.bf16.mxu0 %v3698
    %4106 = vmatpush1.bf16.msra.mxu0 %v3697
    %4107 = vmatprep.subr.bf16.mxu0 %v3705
    %4108 = vmatpush1.bf16.msra.mxu0 %v3704
    %4109 = vmatprep.subr.bf16.mxu0 %v3712
    %4110 = vmatpush1.bf16.msra.mxu0 %v3711
    %4111 = vmatprep.subr.bf16.mxu0 %v3719
    %4112 = vmatpush1.bf16.msra.mxu0 %v3718
    %4113 = vmatprep.subr.bf16.mxu0 %v3726
    %4114 = vmatpush1.bf16.msra.mxu0 %v3725
    %4115 = vmatprep.subr.bf16.mxu0 %v3733
    %4116 = vmatpush1.bf16.msra.mxu0 %v3732
    %4117 = vmatprep.subr.bf16.mxu0 %v3740
    %4118 = vmatpush1.bf16.msra.mxu0 %v3739
    %4119 = vmatprep.subr.bf16.mxu0 %v3747
    %4120 = vmatpush1.bf16.msra.mxu0 %v3746
    %4121 = vmatprep.mubr.bf16.mxu0 %v2641
    %4122 = vmatmul.mubr.bf16.gmra.mrb[0].mxu0 %v2640
    %v4123 = vpop.f32.mrb[0].mxu0
    %v4124 = vadd.f32 %v2905, %v4123
    %v4125 = vpop.f32.mrb[0].mxu0
    %v4126 = vadd.f32 %v2909, %v4125
    %v4127 = vpop.f32.mrb[0].mxu0
    %v4128 = vpop.f32.mrb[0].mxu0
    %4129 = vdwg.mxu0
    %4130 = vmatprep.subr.bf16.mxu0 %v3754
    %4131 = vmatpush1.bf16.msra.mxu0 %v3753
    %4132 = vmatprep.subr.bf16.mxu0 %v3761
    %4133 = vmatpush1.bf16.msra.mxu0 %v3760
    %4134 = vmatprep.subr.bf16.mxu0 %v3768
    %4135 = vmatpush1.bf16.msra.mxu0 %v3767
    %4136 = vmatprep.subr.bf16.mxu0 %v3775
    %4137 = vmatpush1.bf16.msra.mxu0 %v3774
    %4138 = vmatprep.subr.bf16.mxu0 %v3782
    %4139 = vmatpush1.bf16.msra.mxu0 %v3781
    %4140 = vmatprep.subr.bf16.mxu0 %v3789
    %4141 = vmatpush1.bf16.msra.mxu0 %v3788
    %4142 = vmatprep.subr.bf16.mxu0 %v3796
    %4143 = vmatpush1.bf16.msra.mxu0 %v3795
    %4144 = vmatprep.subr.bf16.mxu0 %v3803
    %4145 = vmatpush1.bf16.msra.mxu0 %v3802
    %4146 = vmatprep.subr.bf16.mxu0 %v3810
    %4147 = vmatpush1.bf16.msra.mxu0 %v3809
    %4148 = vmatprep.subr.bf16.mxu0 %v3817
    %4149 = vmatpush1.bf16.msra.mxu0 %v3816
    %4150 = vmatprep.subr.bf16.mxu0 %v3824
    %4151 = vmatpush1.bf16.msra.mxu0 %v3823
    %4152 = vmatprep.subr.bf16.mxu0 %v3831
    %4153 = vmatpush1.bf16.msra.mxu0 %v3830
    %4154 = vmatprep.subr.bf16.mxu0 %v3838
    %4155 = vmatpush1.bf16.msra.mxu0 %v3837
    %4156 = vmatprep.subr.bf16.mxu0 %v3845
    %4157 = vmatpush1.bf16.msra.mxu0 %v3844
    %4158 = vmatprep.subr.bf16.mxu0 %v3852
    %4159 = vmatpush1.bf16.msra.mxu0 %v3851
    %4160 = vmatprep.subr.bf16.mxu0 %v3859
    %4161 = vmatpush1.bf16.msra.mxu0 %v3858
    %4162 = vmatprep.mubr.bf16.mxu0 %v2643
    %4163 = vmatmul.mubr.bf16.gmra.mrb[0].mxu0 %v2642
    %v4164 = vpop.f32.mrb[0].mxu0
    %v4165 = vadd.f32 %v4124, %v4164
    %v4166 = vpop.f32.mrb[0].mxu0
    %v4167 = vadd.f32 %v4126, %v4166
    %v4168 = vpop.f32.mrb[0].mxu0
    %v4169 = vpop.f32.mrb[0].mxu0
    %4170 = vdwg.mxu0
    %4171 = vmatprep.subr.bf16.mxu0 %v3644
    %4172 = vmatpush1.bf16.msra.mxu0 %v3643
    %4173 = vmatprep.subr.bf16.mxu0 %v3651
    %4174 = vmatpush1.bf16.msra.mxu0 %v3650
    %4175 = vmatprep.subr.bf16.mxu0 %v3658
    %4176 = vmatpush1.bf16.msra.mxu0 %v3657
    %4177 = vmatprep.subr.bf16.mxu0 %v3665
    %4178 = vmatpush1.bf16.msra.mxu0 %v3664
    %4179 = vmatprep.subr.bf16.mxu0 %v3672
    %4180 = vmatpush1.bf16.msra.mxu0 %v3671
    %4181 = vmatprep.subr.bf16.mxu0 %v3679
    %4182 = vmatpush1.bf16.msra.mxu0 %v3678
    %4183 = vmatprep.subr.bf16.mxu0 %v3686
    %4184 = vmatpush1.bf16.msra.mxu0 %v3685
    %4185 = vmatprep.subr.bf16.mxu0 %v3693
    %4186 = vmatpush1.bf16.msra.mxu0 %v3692
    %4187 = vmatprep.subr.bf16.mxu0 %v3700
    %4188 = vmatpush1.bf16.msra.mxu0 %v3699
    %4189 = vmatprep.subr.bf16.mxu0 %v3707
    %4190 = vmatpush1.bf16.msra.mxu0 %v3706
    %4191 = vmatprep.subr.bf16.mxu0 %v3714
    %4192 = vmatpush1.bf16.msra.mxu0 %v3713
    %4193 = vmatprep.subr.bf16.mxu0 %v3721
    %4194 = vmatpush1.bf16.msra.mxu0 %v3720
    %4195 = vmatprep.subr.bf16.mxu0 %v3728
    %4196 = vmatpush1.bf16.msra.mxu0 %v3727
    %4197 = vmatprep.subr.bf16.mxu0 %v3735
    %4198 = vmatpush1.bf16.msra.mxu0 %v3734
    %4199 = vmatprep.subr.bf16.mxu0 %v3742
    %4200 = vmatpush1.bf16.msra.mxu0 %v3741
    %4201 = vmatprep.subr.bf16.mxu0 %v3749
    %4202 = vmatpush1.bf16.msra.mxu0 %v3748
    %4203 = vmatprep.mubr.bf16.mxu0 %v2641
    %4204 = vmatmul.mubr.bf16.gmra.mrb[0].mxu0 %v2640
    %v4205 = vpop.f32.mrb[0].mxu0
    %v4206 = vadd.f32 %v2913, %v4205
    %v4207 = vpop.f32.mrb[0].mxu0
    %v4208 = vadd.f32 %v2917, %v4207
    %v4209 = vpop.f32.mrb[0].mxu0
    %v4210 = vpop.f32.mrb[0].mxu0
    %4211 = vdwg.mxu0
    %4212 = vmatprep.subr.bf16.mxu0 %v3756
    %4213 = vmatpush1.bf16.msra.mxu0 %v3755
    %4214 = vmatprep.subr.bf16.mxu0 %v3763
    %4215 = vmatpush1.bf16.msra.mxu0 %v3762
    %4216 = vmatprep.subr.bf16.mxu0 %v3770
    %4217 = vmatpush1.bf16.msra.mxu0 %v3769
    %4218 = vmatprep.subr.bf16.mxu0 %v3777
    %4219 = vmatpush1.bf16.msra.mxu0 %v3776
    %4220 = vmatprep.subr.bf16.mxu0 %v3784
    %4221 = vmatpush1.bf16.msra.mxu0 %v3783
    %4222 = vmatprep.subr.bf16.mxu0 %v3791
    %4223 = vmatpush1.bf16.msra.mxu0 %v3790
    %4224 = vmatprep.subr.bf16.mxu0 %v3798
    %4225 = vmatpush1.bf16.msra.mxu0 %v3797
    %4226 = vmatprep.subr.bf16.mxu0 %v3805
    %4227 = vmatpush1.bf16.msra.mxu0 %v3804
    %4228 = vmatprep.subr.bf16.mxu0 %v3812
    %4229 = vmatpush1.bf16.msra.mxu0 %v3811
    %4230 = vmatprep.subr.bf16.mxu0 %v3819
    %4231 = vmatpush1.bf16.msra.mxu0 %v3818
    %4232 = vmatprep.subr.bf16.mxu0 %v3826
    %4233 = vmatpush1.bf16.msra.mxu0 %v3825
    %4234 = vmatprep.subr.bf16.mxu0 %v3833
    %4235 = vmatpush1.bf16.msra.mxu0 %v3832
    %4236 = vmatprep.subr.bf16.mxu0 %v3840
    %4237 = vmatpush1.bf16.msra.mxu0 %v3839
    %4238 = vmatprep.subr.bf16.mxu0 %v3847
    %4239 = vmatpush1.bf16.msra.mxu0 %v3846
    %4240 = vmatprep.subr.bf16.mxu0 %v3854
    %4241 = vmatpush1.bf16.msra.mxu0 %v3853
    %4242 = vmatprep.subr.bf16.mxu0 %v3861
    %4243 = vmatpush1.bf16.msra.mxu0 %v3860
    %4244 = vmatprep.mubr.bf16.mxu0 %v2643
    %4245 = vmatmul.mubr.bf16.gmra.mrb[0].mxu0 %v2642
    %v4246 = vpop.f32.mrb[0].mxu0
    %v4247 = vadd.f32 %v4206, %v4246
    %v4248 = vpop.f32.mrb[0].mxu0
    %v4249 = vadd.f32 %v4208, %v4248
    %v4250 = vpop.f32.mrb[0].mxu0
    %v4251 = vpop.f32.mrb[0].mxu0
    %4252 = vdwg.mxu0
    %4253 = vmatprep.subr.bf16.mxu0 %v3646
    %4254 = vmatpush1.bf16.msra.mxu0 %v3645
    %4255 = vmatprep.subr.bf16.mxu0 %v3653
    %4256 = vmatpush1.bf16.msra.mxu0 %v3652
    %4257 = vmatprep.subr.bf16.mxu0 %v3660
    %4258 = vmatpush1.bf16.msra.mxu0 %v3659
    %4259 = vmatprep.subr.bf16.mxu0 %v3667
    %4260 = vmatpush1.bf16.msra.mxu0 %v3666
    %4261 = vmatprep.subr.bf16.mxu0 %v3674
    %4262 = vmatpush1.bf16.msra.mxu0 %v3673
    %4263 = vmatprep.subr.bf16.mxu0 %v3681
    %4264 = vmatpush1.bf16.msra.mxu0 %v3680
    %4265 = vmatprep.subr.bf16.mxu0 %v3688
    %4266 = vmatpush1.bf16.msra.mxu0 %v3687
    %4267 = vmatprep.subr.bf16.mxu0 %v3695
    %4268 = vmatpush1.bf16.msra.mxu0 %v3694
    %4269 = vmatprep.subr.bf16.mxu0 %v3702
    %4270 = vmatpush1.bf16.msra.mxu0 %v3701
    %4271 = vmatprep.subr.bf16.mxu0 %v3709
    %4272 = vmatpush1.bf16.msra.mxu0 %v3708
    %4273 = vmatprep.subr.bf16.mxu0 %v3716
    %4274 = vmatpush1.bf16.msra.mxu0 %v3715
    %4275 = vmatprep.subr.bf16.mxu0 %v3723
    %4276 = vmatpush1.bf16.msra.mxu0 %v3722
    %4277 = vmatprep.subr.bf16.mxu0 %v3730
    %4278 = vmatpush1.bf16.msra.mxu0 %v3729
    %4279 = vmatprep.subr.bf16.mxu0 %v3737
    %4280 = vmatpush1.bf16.msra.mxu0 %v3736
    %4281 = vmatprep.subr.bf16.mxu0 %v3744
    %4282 = vmatpush1.bf16.msra.mxu0 %v3743
    %4283 = vmatprep.subr.bf16.mxu0 %v3751
    %4284 = vmatpush1.bf16.msra.mxu0 %v3750
    %4285 = vmatprep.mubr.bf16.mxu0 %v2641
    %4286 = vmatmul.mubr.bf16.gmra.mrb[0].mxu0 %v2640
    %v4287 = vpop.f32.mrb[0].mxu0
    %v4288 = vadd.f32 %v2921, %v4287
    %v4289 = vpop.f32.mrb[0].mxu0
    %v4290 = vadd.f32 %v2925, %v4289
    %v4291 = vpop.f32.mrb[0].mxu0
    %v4292 = vpop.f32.mrb[0].mxu0
    %4293 = vdwg.mxu0
    %4294 = vmatprep.subr.bf16.mxu0 %v3758
    %4295 = vmatpush1.bf16.msra.mxu0 %v3757
    %4296 = vmatprep.subr.bf16.mxu0 %v3765
    %4297 = vmatpush1.bf16.msra.mxu0 %v3764
    %4298 = vmatprep.subr.bf16.mxu0 %v3772
    %4299 = vmatpush1.bf16.msra.mxu0 %v3771
    %4300 = vmatprep.subr.bf16.mxu0 %v3779
    %4301 = vmatpush1.bf16.msra.mxu0 %v3778
    %4302 = vmatprep.subr.bf16.mxu0 %v3786
    %4303 = vmatpush1.bf16.msra.mxu0 %v3785
    %4304 = vmatprep.subr.bf16.mxu0 %v3793
    %4305 = vmatpush1.bf16.msra.mxu0 %v3792
    %4306 = vmatprep.subr.bf16.mxu0 %v3800
    %4307 = vmatpush1.bf16.msra.mxu0 %v3799
    %4308 = vmatprep.subr.bf16.mxu0 %v3807
    %4309 = vmatpush1.bf16.msra.mxu0 %v3806
    %4310 = vmatprep.subr.bf16.mxu0 %v3814
    %4311 = vmatpush1.bf16.msra.mxu0 %v3813
    %4312 = vmatprep.subr.bf16.mxu0 %v3821
    %4313 = vmatpush1.bf16.msra.mxu0 %v3820
    %4314 = vmatprep.subr.bf16.mxu0 %v3828
    %4315 = vmatpush1.bf16.msra.mxu0 %v3827
    %4316 = vmatprep.subr.bf16.mxu0 %v3835
    %4317 = vmatpush1.bf16.msra.mxu0 %v3834
    %4318 = vmatprep.subr.bf16.mxu0 %v3842
    %4319 = vmatpush1.bf16.msra.mxu0 %v3841
    %4320 = vmatprep.subr.bf16.mxu0 %v3849
    %4321 = vmatpush1.bf16.msra.mxu0 %v3848
    %4322 = vmatprep.subr.bf16.mxu0 %v3856
    %4323 = vmatpush1.bf16.msra.mxu0 %v3855
    %4324 = vmatprep.subr.bf16.mxu0 %v3863
    %4325 = vmatpush1.bf16.msra.mxu0 %v3862
    %4326 = vmatprep.mubr.bf16.mxu0 %v2643
    %4327 = vmatmul.mubr.bf16.gmra.mrb[0].mxu0 %v2642
    %v4328 = vpop.f32.mrb[0].mxu0
    %v4329 = vadd.f32 %v4288, %v4328
    %v4330 = vpop.f32.mrb[0].mxu0
    %v4331 = vadd.f32 %v4290, %v4330
    %v4332 = vpop.f32.mrb[0].mxu0
    %v4333 = vpop.f32.mrb[0].mxu0
    %4334 = vdwg.mxu0
    %4335 = vmatprep.subr.bf16.mxu0 0
    %4336 = vmatpush1.bf16.msra.mxu0 %v3647
    %4337 = vmatprep.subr.bf16.mxu0 0
    %4338 = vmatpush1.bf16.msra.mxu0 %v3654
    %4339 = vmatprep.subr.bf16.mxu0 0
    %4340 = vmatpush1.bf16.msra.mxu0 %v3661
    %4341 = vmatprep.subr.bf16.mxu0 0
    %4342 = vmatpush1.bf16.msra.mxu0 %v3668
    %4343 = vmatprep.subr.bf16.mxu0 0
    %4344 = vmatpush1.bf16.msra.mxu0 %v3675
    %4345 = vmatprep.subr.bf16.mxu0 0
    %4346 = vmatpush1.bf16.msra.mxu0 %v3682
    %4347 = vmatprep.subr.bf16.mxu0 0
    %4348 = vmatpush1.bf16.msra.mxu0 %v3689
    %4349 = vmatprep.subr.bf16.mxu0 0
    %4350 = vmatpush1.bf16.msra.mxu0 %v3696
    %4351 = vmatprep.subr.bf16.mxu0 0
    %4352 = vmatpush1.bf16.msra.mxu0 %v3703
    %4353 = vmatprep.subr.bf16.mxu0 0
    %4354 = vmatpush1.bf16.msra.mxu0 %v3710
    %4355 = vmatprep.subr.bf16.mxu0 0
    %4356 = vmatpush1.bf16.msra.mxu0 %v3717
    %4357 = vmatprep.subr.bf16.mxu0 0
    %4358 = vmatpush1.bf16.msra.mxu0 %v3724
    %4359 = vmatprep.subr.bf16.mxu0 0
    %4360 = vmatpush1.bf16.msra.mxu0 %v3731
    %4361 = vmatprep.subr.bf16.mxu0 0
    %4362 = vmatpush1.bf16.msra.mxu0 %v3738
    %4363 = vmatprep.subr.bf16.mxu0 0
    %4364 = vmatpush1.bf16.msra.mxu0 %v3745
    %4365 = vmatprep.subr.bf16.mxu0 0
    %4366 = vmatpush1.bf16.msra.mxu0 %v3752
    %4367 = vmatprep.mubr.bf16.mxu0 %v2641
    %4368 = vmatmul.mubr.bf16.gmra.mrb[0].mxu0 %v2640
    %v4369 = vpop.f32.mrb[0].mxu0
    %v4370 = vadd.f32 %v2929, %v4369
    %v4371 = vpop.f32.mrb[0].mxu0
    %v4372 = vpop.f32.mrb[0].mxu0
    %v4373 = vpop.f32.mrb[0].mxu0
    %4374 = vdwg.mxu0
    %4375 = vmatprep.subr.bf16.mxu0 0
    %4376 = vmatpush1.bf16.msra.mxu0 %v3759
    %4377 = vmatprep.subr.bf16.mxu0 0
    %4378 = vmatpush1.bf16.msra.mxu0 %v3766
    %4379 = vmatprep.subr.bf16.mxu0 0
    %4380 = vmatpush1.bf16.msra.mxu0 %v3773
    %4381 = vmatprep.subr.bf16.mxu0 0
    %4382 = vmatpush1.bf16.msra.mxu0 %v3780
    %4383 = vmatprep.subr.bf16.mxu0 0
    %4384 = vmatpush1.bf16.msra.mxu0 %v3787
    %4385 = vmatprep.subr.bf16.mxu0 0
    %4386 = vmatpush1.bf16.msra.mxu0 %v3794
    %4387 = vmatprep.subr.bf16.mxu0 0
    %4388 = vmatpush1.bf16.msra.mxu0 %v3801
    %4389 = vmatprep.subr.bf16.mxu0 0
    %4390 = vmatpush1.bf16.msra.mxu0 %v3808
    %4391 = vmatprep.subr.bf16.mxu0 0
    %4392 = vmatpush1.bf16.msra.mxu0 %v3815
    %4393 = vmatprep.subr.bf16.mxu0 0
    %4394 = vmatpush1.bf16.msra.mxu0 %v3822
    %4395 = vmatprep.subr.bf16.mxu0 0
    %4396 = vmatpush1.bf16.msra.mxu0 %v3829
    %4397 = vmatprep.subr.bf16.mxu0 0
    %4398 = vmatpush1.bf16.msra.mxu0 %v3836
    %4399 = vmatprep.subr.bf16.mxu0 0
    %4400 = vmatpush1.bf16.msra.mxu0 %v3843
    %4401 = vmatprep.subr.bf16.mxu0 0
    %4402 = vmatpush1.bf16.msra.mxu0 %v3850
    %4403 = vmatprep.subr.bf16.mxu0 0
    %4404 = vmatpush1.bf16.msra.mxu0 %v3857
    %4405 = vmatprep.subr.bf16.mxu0 0
    %4406 = vmatpush1.bf16.msra.mxu0 %v3864
    %4407 = vmatprep.mubr.bf16.mxu0 %v2643
    %4408 = vmatmul.mubr.bf16.gmra.mrb[0].mxu0 %v2642
    %v4409 = vpop.f32.mrb[0].mxu0
    %v4410 = vadd.f32 %v4370, %v4409
    %v4411 = vpop.f32.mrb[0].mxu0
    %v4412 = vpop.f32.mrb[0].mxu0
    %v4413 = vpop.f32.mrb[0].mxu0
    %4414 = vdwg.mxu0
    %v4415 = vxor.u32 %v4165, 2147483648
    %v4416 = vxor.u32 %v4167, 2147483648
    %v4417 = vxor.u32 %v4247, 2147483648
    %v4418 = vxor.u32 %v4249, 2147483648
    %v4419 = vxor.u32 %v4329, 2147483648
    %v4420 = vxor.u32 %v4331, 2147483648
    %v4421 = vxor.u32 %v4410, 2147483648
    %v4422 = vmul.f32 %v4415, 1.442695
    %v4423 = vpow.pop %v4422
    %v4424 = vmul.f32 %v4416, 1.442695
    %v4425 = vpow.pop %v4424
    %v4426 = vmul.f32 %v4417, 1.442695
    %v4427 = vpow.pop %v4426
    %v4428 = vmul.f32 %v4418, 1.442695
    %v4429 = vpow.pop %v4428
    %v4430 = vmul.f32 %v4419, 1.442695
    %v4431 = vpow.pop %v4430
    %v4432 = vmul.f32 %v4420, 1.442695
    %v4433 = vpow.pop %v4432
    %v4434 = vmul.f32 %v4421, 1.442695
    %v4435 = vpow.pop %v4434
    %v4436 = vadd.f32 %v4423, 1.0
    %v4437 = vadd.f32 %v4425, 1.0
    %v4438 = vadd.f32 %v4427, 1.0
    %v4439 = vadd.f32 %v4429, 1.0
    %v4440 = vadd.f32 %v4431, 1.0
    %v4441 = vadd.f32 %v4433, 1.0
    %v4442 = vadd.f32 %v4435, 1.0
    %v4443 = vrcp.pop %v4436
    %v4444 = vmul.f32 1.0, %v4443
    %v4445 = vrcp.pop %v4437
    %v4446 = vmul.f32 1.0, %v4445
    %v4447 = vrcp.pop %v4438
    %v4448 = vmul.f32 1.0, %v4447
    %v4449 = vrcp.pop %v4439
    %v4450 = vmul.f32 1.0, %v4449
    %v4451 = vrcp.pop %v4440
    %v4452 = vmul.f32 1.0, %v4451
    %v4453 = vrcp.pop %v4441
    %v4454 = vmul.f32 1.0, %v4453
    %v4455 = vrcp.pop %v4442
    %v4456 = vmul.f32 1.0, %v4455
    %4457 = vst [vmem:[#allocation13] sm:$0xff] %v4444
    %4458 = vst [vmem:[#allocation13 + $0x8] sm:$0xff] %v4446
    %4459 = vst [vmem:[#allocation13 + $0x10] sm:$0xff] %v4448
    %4460 = vst [vmem:[#allocation13 + $0x18] sm:$0xff] %v4450
    %4461 = vst [vmem:[#allocation13 + $0x20] sm:$0xff] %v4452
    %4462 = vst [vmem:[#allocation13 + $0x28] sm:$0xff] %v4454
    %4463 = vst [vmem:[#allocation13 + $0x30] sm:$0xff] %v4456
    // Predicated region
    $region66: #{tpu_custom_call.1} parent=1 // pred_check
      _
    $region67: #{tpu_custom_call.1} parent=1 // pred_check_branch
      %4465 = sbr.rel (0) target = $region69
    $region68: #{tpu_custom_call.1} parent=1 // pred_region
      %s4467 = ssub.s32 896, 896
      %4468 = vsyncadd [#allocation4], %s4467
      %s4470 = sshll.u32 [#allocation13], 4
      %s4471 = int_to_ptr.vmem [resolvable:$true] %s4470
      %4473 = dma.vmem_to_hbm [thread:$0]  %s4471, 896, %s10, [#allocation4]
    $region69: #{tpu_custom_call.1} parent=1 // pred_fallthru
      _
    // Predicated region
    $region70: #{tpu_custom_call.1} parent=1 // pred_check
      _
    $region71: #{tpu_custom_call.1} parent=1 // pred_check_branch
      %4475 = sbr.rel (0) target = $region73
    $region72: #{tpu_custom_call.1} parent=1 // pred_region
      %s4477 = ssub.s32 128, 128
      %4478 = vsyncadd [#allocation15], %s4477
      %s4480 = sshll.u32 [#allocation14], 4
      %s4481 = int_to_ptr.vmem [resolvable:$true] %s4480
      %4483 = dma.vmem_to_hbm [thread:$0]  %s4481, 128, %s11, [#allocation15]
    $region73: #{tpu_custom_call.1} parent=1 // pred_fallthru
      _
    // Predicated region
    $region74: #{tpu_custom_call.1} parent=1 // pred_check
      _
    $region75: #{tpu_custom_call.1} parent=1 // pred_check_branch
      %4485 = sbr.rel (0) target = $region77
    $region76: #{tpu_custom_call.1} parent=1 // pred_region
      %s4487 = ssub.s32 128, 128
      %4488 = vsyncadd [#allocation15], %s4487
      %s4490 = sshll.u32 [#allocation16], 4
      %s4491 = int_to_ptr.vmem [resolvable:$true] %s4490
      %4493 = dma.vmem_to_hbm [thread:$0]  %s4491, 128, %s12, [#allocation15]
    $region77: #{tpu_custom_call.1} parent=1 // pred_fallthru
      _
    // Predicated region
    $region78: #{tpu_custom_call.1} parent=1 // pred_check
      _
    $region79: #{tpu_custom_call.1} parent=1 // pred_check_branch
      %4495 = sbr.rel (0) target = $region81
    $region80: #{tpu_custom_call.1} parent=1 // pred_region
      %s4497 = ssub.s32 128, 128
      %4498 = vsyncadd [#allocation18], %s4497
      %s4500 = sshll.u32 [#allocation17], 4
      %s4501 = int_to_ptr.vmem [resolvable:$true] %s4500
      %4503 = dma.vmem_to_hbm [thread:$0]  %s4501, 128, %s13, [#allocation18]
    $region81: #{tpu_custom_call.1} parent=1 // pred_fallthru
      _
    // Predicated region
    $region82: #{tpu_custom_call.1} parent=1 // pred_check
      _
    $region83: #{tpu_custom_call.1} parent=1 // pred_check_branch
      %4505 = sbr.rel (0) target = $region85
    $region84: #{tpu_custom_call.1} parent=1 // pred_region
      %4506 = dma.done [#allocation4], 896
    $region85: #{tpu_custom_call.1} parent=1 // pred_fallthru
      _
    // Predicated region
    $region86: #{tpu_custom_call.1} parent=1 // pred_check
      _
    $region87: #{tpu_custom_call.1} parent=1 // pred_check_branch
      %4508 = sbr.rel (0) target = $region89
    $region88: #{tpu_custom_call.1} parent=1 // pred_region
      %4509 = dma.done [#allocation15], 128
    $region89: #{tpu_custom_call.1} parent=1 // pred_fallthru
      _
    // Predicated region
    $region90: #{tpu_custom_call.1} parent=1 // pred_check
      _
    $region91: #{tpu_custom_call.1} parent=1 // pred_check_branch
      %4511 = sbr.rel (0) target = $region93
    $region92: #{tpu_custom_call.1} parent=1 // pred_region
      %4512 = dma.done [#allocation15], 128
    $region93: #{tpu_custom_call.1} parent=1 // pred_fallthru
      _
    // Predicated region
    $region94: #{tpu_custom_call.1} parent=1 // pred_check
      _
    $region95: #{tpu_custom_call.1} parent=1 // pred_check_branch
      %4514 = sbr.rel (0) target = $region97
    $region96: #{tpu_custom_call.1} parent=1 // pred_region
      %4515 = dma.done [#allocation18], 128
    $region97: #{tpu_custom_call.1} parent=1 // pred_fallthru
      _
    %4516 = vsyncpa [#allocation3], 1
    %4517 = vsyncpa [#allocation6], 1
    %4518 = vsyncpa [#allocation9], 1
    %4519 = vsyncpa [#allocation12], 1
    %4520 = vsyncpa [#allocation4], 1
    %4521 = vsyncpa [#allocation15], 1
    %4522 = vsyncpa [#allocation18], 1

</llo_original>
